<compile_context>
chip_gen: v6e
topology: v6e:2x2x1
jax: 0.10.0
libtpu: 0.0.40
codegen_flags: <defaults>
</compile_context>

<pallas_src>
import functools
import math

import jax
import jax.numpy as jnp
from jax.experimental import pallas as pl
from jax.experimental.pallas import tpu as pltpu

_VMEM = pl.BlockSpec(memory_space=pltpu.MemorySpace.VMEM)
_BN_EPS = 1e-5
_LN_EPS = 1e-5
_BN_SCALE = float((1.0 + _BN_EPS) ** -0.5)  # eval BatchNorm1d with running stats (0, 1)


def _compiler_params():
    """Per-generation scoped-VMEM limit (75% of physical), with a safe fallback."""
    vmem_cap = 64 * 1024 * 1024
    try:
        info = pltpu.get_tpu_info()
        vmem_cap = int(getattr(info, "vmem_capacity_bytes", vmem_cap))
    except Exception:
        pass
    return pltpu.CompilerParams(vmem_limit_bytes=int(vmem_cap * 3 // 4))


# ----------------------------- Pallas kernels -----------------------------

def _fused_node_kernel(
    x_ref, ebias_ref, oh_ref, ohT_ref, invn_ref,
    win_ref, bin_ref,
    g1w_ref, g1a_ref, g1b_ref, ln1w_ref, ln1b_ref,
    g2w_ref, g2a_ref, g2b_ref, ln2w_ref, ln2b_ref,
    g3w_ref, g3a_ref, g3b_ref, ln3w_ref, ln3b_ref,
    tkw_ref,
    feat_ref, score_ref,
    *, heads, C, H, P, eps):
    """Fused: Linear(+BN)+ReLU -> [GATConv -> graph LayerNorm -> ReLU] x3 -> TopK score."""
    ebias = ebias_ref[...]      # (N, N) 0 on edges (dst i <- src j, self-loops in), -1e30 off
    oh = oh_ref[...]            # (N, G) batch one-hot
    ohT = ohT_ref[...]          # (G, N)
    inv_norm = invn_ref[...]    # (G, 1) 1 / (nodes_in_graph * H)

    # Per-head column masks (lane iota) -> keep multi-head outputs lane-dense (N, H)
    # in vregs instead of width-C masked scratch stores.
    col = jax.lax.broadcasted_iota(jnp.int32, (1, H), 1)
    head_cols = [(col >= hd * C) & (col < (hd + 1) * C) for hd in range(heads)]

    def gat(h, w_ref, a_ref, b_ref, nheads, concat):
        # a_ref: (nheads*chead, 2*P) block-diagonal attention params:
        # column hd = att_src[hd], column P+hd = att_dst[hd].
        hh = jnp.dot(h, w_ref[...], preferred_element_type=jnp.float32)     # (N, nheads*chead)
        ad = jnp.dot(hh, a_ref[...], preferred_element_type=jnp.float32)    # (N, 2P)
        adT = jnp.transpose(ad)                                             # (2P, N), tiny
        acc = None
        for hd in range(nheads):
            # e[i, j] = a_dst[i] + a_src[j]
            e = ad[:, P + hd:P + hd + 1] + adT[hd:hd + 1, :]                # (N, N)
            e = jnp.maximum(e, 0.2 * e)                                     # LeakyReLU(0.2)
            e = e + ebias                                                   # additive edge mask
            m = jnp.max(e, axis=1, keepdims=True)
            p = jnp.exp(e - m)                                              # exactly 0 off-edge
            inv_den = 1.0 / jnp.sum(p, axis=1, keepdims=True)               # (N, 1)
            # Zero the other heads' value columns so the per-head matmul output is
            # already a lane-dense (N, H) slab; deferred softmax normalization.
            hh_h = jnp.where(head_cols[hd], hh, 0.0) if nheads > 1 else hh
            out_h = jnp.dot(p, hh_h, preferred_element_type=jnp.float32) * inv_den
            acc = out_h if acc is None else acc + out_h
        if concat:
            return acc + b_ref[...]
        return acc * (1.0 / float(nheads)) + b_ref[...]

    def ln_relu(z, w_ref, b_ref):
        # torch_geometric LayerNorm mode='graph': stats over all nodes*channels per graph,
        # via skinny one-hot matmuls (no dense same-graph mask).
        rowsum = jnp.sum(z, axis=1, keepdims=True)                                    # (N, 1)
        rowsq = jnp.sum(z * z, axis=1, keepdims=True)                                 # (N, 1)
        mean_g = jnp.dot(ohT, rowsum, preferred_element_type=jnp.float32) * inv_norm  # (G, 1)
        ex2_g = jnp.dot(ohT, rowsq, preferred_element_type=jnp.float32) * inv_norm    # (G, 1)
        var_g = jnp.maximum(ex2_g - mean_g * mean_g, 0.0)
        scale_g = jax.lax.rsqrt(var_g + eps)                                          # (G, 1)
        mean_n = jnp.dot(oh, mean_g, preferred_element_type=jnp.float32)              # (N, 1)
        scale_n = jnp.dot(oh, scale_g, preferred_element_type=jnp.float32)            # (N, 1)
        out = (z - mean_n) * scale_n * w_ref[...] + b_ref[...]
        return jnp.maximum(out, 0.0)

    # process_input: Linear (eval-BN scale folded into weights) -> ReLU (Dropout = id, eval)
    h = jnp.maximum(
        jnp.dot(x_ref[...], win_ref[...], preferred_element_type=jnp.float32)
        + bin_ref[...], 0.0)

    h = gat(h, g1w_ref, g1a_ref, g1b_ref, heads, True)
    h = ln_relu(h, ln1w_ref, ln1b_ref)
    h = gat(h, g2w_ref, g2a_ref, g2b_ref, heads, True)
    h = ln_relu(h, ln2w_ref, ln2b_ref)
    h = gat(h, g3w_ref, g3a_ref, g3b_ref, 1, False)
    feat = ln_relu(h, ln3w_ref, ln3b_ref)

    feat_ref[...] = feat
    # TopKPooling score = tanh(x @ (w / ||w||)); the 1/||w|| is folded into tkw.
    score_ref[...] = jnp.tanh(
        jnp.dot(feat, tkw_ref[...], preferred_element_type=jnp.float32))


def _pool_cls_kernel(x_ref, ohT_ref, sel_ref, score_ref, invc_ref,
                     w1a_ref, w1b_ref, w1c_ref, w1d_ref, b1_ref,
                     w2_ref, b2_ref, w3_ref, b3_ref,
                     o_ref, *, G, n_per, H):
    """Fused multi-scale pooling (max/mean/add/topk-mean) + 3-layer classifier."""
    x = x_ref[...]              # (N, H) node features
    ohT = ohT_ref[...]          # (G, N)
    sel = sel_ref[...]          # (N, 1) top-k selection indicator
    score = score_ref[...]      # (N, 1) tanh scores
    inv_cnt = invc_ref[...]     # (G, 1) 1 / nodes per graph

    psum = jnp.dot(ohT, x, preferred_element_type=jnp.float32)              # (G, H) add pool
    pmean = psum * inv_cnt                                                   # mean pool
    weighted = x * (sel * score)                                             # x[perm]*score[perm]
    tk_sum = jnp.dot(ohT, weighted, preferred_element_type=jnp.float32)      # (G, H)
    tk_cnt = jnp.dot(ohT, sel, preferred_element_type=jnp.float32)           # (G, 1)
    ptopk = tk_sum / tk_cnt                                                   # topk mean pool

    # max pool: graphs are contiguous, equal-sized blocks -> one sublane reduction.
    pmax = jnp.max(x.reshape(G, n_per, H), axis=1)                            # (G, H)

    # classifier; the (G, 4H) concat is avoided by splitting W1 into four row blocks.
    z = (jnp.dot(pmax, w1a_ref[...], preferred_element_type=jnp.float32)
         + jnp.dot(pmean, w1b_ref[...], preferred_element_type=jnp.float32)
         + jnp.dot(psum, w1c_ref[...], preferred_element_type=jnp.float32)
         + jnp.dot(ptopk, w1d_ref[...], preferred_element_type=jnp.float32)
         + b1_ref[...])
    z = jnp.maximum(z, 0.0)
    z = jnp.maximum(jnp.dot(z, w2_ref[...], preferred_element_type=jnp.float32)
                    + b2_ref[...], 0.0)
    o_ref[...] = jnp.dot(z, w3_ref[...], preferred_element_type=jnp.float32) + b3_ref[...]


# ----------------------------- pallas_call wrappers -----------------------------

def _node_pipeline(x, edge_bias, oh, ohT, inv_norm, q, *, heads, C, H):
    N = x.shape[0]
    args = (x, edge_bias, oh, ohT, inv_norm,
            q["w_in"], q["b_in"],
            q["g1_w"], q["g1_att"], q["g1_b"], q["ln1_w"], q["ln1_b"],
            q["g2_w"], q["g2_att"], q["g2_b"], q["ln2_w"], q["ln2_b"],
            q["g3_w"], q["g3_att"], q["g3_b"], q["ln3_w"], q["ln3_b"],
            q["topk_w"])
    kern = functools.partial(_fused_node_kernel, heads=heads, C=C, H=H, P=heads,
                             eps=_LN_EPS)
    # TODO(synk): for large N (esp. v7x 64 MiB VMEM / 2 TCs) tile dst-node rows with a
    # parallel grid over edge_bias / x / outputs and cast the (N,N) bias to bf16; the
    # current all-VMEM, gridless launch targets small/medium graphs.
    return pl.pallas_call(
        kern,
        out_shape=(jax.ShapeDtypeStruct((N, H), jnp.float32),
                   jax.ShapeDtypeStruct((N, 1), jnp.float32)),
        in_specs=[_VMEM] * len(args),
        out_specs=(_VMEM, _VMEM),
        compiler_params=_compiler_params(),
    )(*args)


def _pool_classify(features, ohT, sel, score, inv_cnt, q, *, G, n_per, H):
    args = (features, ohT, sel, score, inv_cnt,
            q["cls_w1_max"], q["cls_w1_mean"], q["cls_w1_add"], q["cls_w1_topk"],
            q["cls_b1"], q["cls_w2"], q["cls_b2"], q["cls_w3"], q["cls_b3"])
    out_dim = q["cls_w3"].shape[1]
    kern = functools.partial(_pool_cls_kernel, G=G, n_per=n_per, H=H)
    return pl.pallas_call(
        kern,
        out_shape=jax.ShapeDtypeStruct((G, out_dim), jnp.float32),
        in_specs=[_VMEM] * len(args),
        out_specs=_VMEM,
        compiler_params=_compiler_params(),
    )(*args)


# ----------------------------- parameters -----------------------------

def init_params(key, node_feature_dim, hidden_dim, output_dim, heads):
    C = hidden_dim // heads
    ks = jax.random.split(key, 12)

    def xavier(k, fin, fout):
        s = (6.0 / (fin + fout)) ** 0.5
        return jax.random.uniform(k, (fin, fout), jnp.float32, -s, s)

    p = {}
    p["w_in"] = xavier(ks[0], node_feature_dim, hidden_dim)
    p["b_in"] = jnp.zeros((hidden_dim,), jnp.float32)
    for i, kk in zip((1, 2), (ks[1], ks[2])):
        k1, k2, k3 = jax.random.split(kk, 3)
        p[f"gat{i}_w"] = xavier(k1, hidden_dim, heads * C)
        p[f"gat{i}_asrc"] = 0.1 * jax.random.normal(k2, (heads, C), jnp.float32)
        p[f"gat{i}_adst"] = 0.1 * jax.random.normal(k3, (heads, C), jnp.float32)
        p[f"gat{i}_b"] = jnp.zeros((heads * C,), jnp.float32)
        p[f"ln{i}_w"] = jnp.ones((hidden_dim,), jnp.float32)
        p[f"ln{i}_b"] = jnp.zeros((hidden_dim,), jnp.float32)
    k1, k2, k3 = jax.random.split(ks[3], 3)
    p["gat3_w"] = xavier(k1, hidden_dim, hidden_dim)
    p["gat3_asrc"] = 0.1 * jax.random.normal(k2, (1, hidden_dim), jnp.float32)
    p["gat3_adst"] = 0.1 * jax.random.normal(k3, (1, hidden_dim), jnp.float32)
    p["gat3_b"] = jnp.zeros((hidden_dim,), jnp.float32)
    p["ln3_w"] = jnp.ones((hidden_dim,), jnp.float32)
    p["ln3_b"] = jnp.zeros((hidden_dim,), jnp.float32)
    p["topk_w"] = 0.1 * jax.random.normal(ks[4], (hidden_dim,), jnp.float32)
    p["cls_w1"] = xavier(ks[5], 4 * hidden_dim, 2 * hidden_dim)
    p["cls_b1"] = jnp.zeros((2 * hidden_dim,), jnp.float32)
    p["cls_w2"] = xavier(ks[6], 2 * hidden_dim, hidden_dim)
    p["cls_b2"] = jnp.zeros((hidden_dim,), jnp.float32)
    p["cls_w3"] = xavier(ks[7], hidden_dim, output_dim)
    p["cls_b3"] = jnp.zeros((output_dim,), jnp.float32)
    return p


def _att_matrix(att_src, att_dst, nh, c, pad):
    """Block-diagonal (nh*c, 2*pad): column hd = att_src[hd], column pad+hd = att_dst[hd]."""
    m = jnp.zeros((nh * c, 2 * pad), jnp.float32)
    for hd in range(nh):
        m = m.at[hd * c:(hd + 1) * c, hd].set(att_src[hd])
        m = m.at[hd * c:(hd + 1) * c, pad + hd].set(att_dst[hd])
    return m


def prepare_params(p, *, heads, hidden_dim):
    """Fold eval-BN scale / TopK weight norm into weights; reshape / split for the kernels."""
    C = hidden_dim // heads
    H = hidden_dim
    s = _BN_SCALE
    q = {}
    q["w_in"] = p["w_in"] * s
    q["b_in"] = (p["b_in"] * s).reshape(1, -1)
    for i in (1, 2):
        q[f"g{i}_w"] = p[f"gat{i}_w"]
        q[f"g{i}_att"] = _att_matrix(p[f"gat{i}_asrc"], p[f"gat{i}_adst"], heads, C, heads)
        q[f"g{i}_b"] = p[f"gat{i}_b"].reshape(1, -1)
        q[f"ln{i}_w"] = p[f"ln{i}_w"].reshape(1, -1)
        q[f"ln{i}_b"] = p[f"ln{i}_b"].reshape(1, -1)
    q["g3_w"] = p["gat3_w"]
    q["g3_att"] = _att_matrix(p["gat3_asrc"], p["gat3_adst"], 1, hidden_dim, heads)
    q["g3_b"] = p["gat3_b"].reshape(1, -1)
    q["ln3_w"] = p["ln3_w"].reshape(1, -1)
    q["ln3_b"] = p["ln3_b"].reshape(1, -1)
    w = p["topk_w"].reshape(-1)
    q["topk_w"] = (w / jnp.linalg.norm(w)).reshape(-1, 1)
    # Classifier first Linear split into 4 row blocks (max/mean/add/topk) -> no (G,4H) concat.
    w1 = p["cls_w1"] * s
    q["cls_w1_max"] = w1[0:H]
    q["cls_w1_mean"] = w1[H:2 * H]
    q["cls_w1_add"] = w1[2 * H:3 * H]
    q["cls_w1_topk"] = w1[3 * H:4 * H]
    q["cls_b1"] = (p["cls_b1"] * s).reshape(1, -1)
    q["cls_w2"] = p["cls_w2"] * s
    q["cls_b2"] = (p["cls_b2"] * s).reshape(1, -1)
    q["cls_w3"] = p["cls_w3"]
    q["cls_b3"] = p["cls_b3"].reshape(1, -1)
    return q


# ----------------------------- forward -----------------------------

def single_gat_forward(prep, x, adj, batch_onehot, *, heads, hidden_dim, ratio):
    N = x.shape[0]
    G = batch_onehot.shape[1]
    C = hidden_dim // heads

    counts = jnp.sum(batch_onehot, axis=0).reshape(G, 1)       # nodes per graph
    inv_cnt = 1.0 / counts                                      # (G, 1)
    inv_norm = inv_cnt / float(hidden_dim)                      # (G, 1) 1/(n_g * H) for graph LN
    ohT = jnp.transpose(batch_onehot)                           # (G, N)
    edge_bias = (adj - 1.0) * 1e30                              # 0 on edges, -1e30 off-edge

    # Fused kernel 1: node pipeline + TopK scoring (score stays on-chip with features).
    features, score = _node_pipeline(x, edge_bias, batch_onehot, ohT, inv_norm, prep,
                                     heads=heads, C=C, H=hidden_dim)

    # TODO(synk): per-graph top-k node selection (sorting) has no clean Pallas
    # equivalent; done in plain JAX (graphs are contiguous equal-sized blocks).
    n_per = N // G
    k = int(math.ceil(ratio * n_per))
    per_graph = score.reshape(G, n_per)
    _, idx = jax.lax.top_k(per_graph, k)
    sel = jnp.zeros((G, n_per), jnp.float32).at[jnp.arange(G)[:, None], idx].set(1.0)
    sel_ind = sel.reshape(N, 1)

    # Fused kernel 2: multi-scale pooling + classifier.
    logits = _pool_classify(features, ohT, sel_ind, score, inv_cnt, prep,
                            G=G, n_per=n_per, H=hidden_dim)
    return logits, features


# ----------------------------- main -----------------------------

if __name__ == "__main__":
    node_feature_dim, hidden_dim, output_dim, heads, ratio = 16, 32, 2, 4, 0.8
    n_graphs, nodes_per_graph = 2, 8
    N = n_graphs * nodes_per_graph

    key = jax.random.PRNGKey(0)
    kx, kp = jax.random.split(key)
    x = jax.random.normal(kx, (N, node_feature_dim), jnp.float32)
    params = init_params(kp, node_feature_dim, hidden_dim, output_dim, heads)
    prep = prepare_params(params, heads=heads, hidden_dim=hidden_dim)

    # Deterministic graph: each graph is a bidirectional ring of 8 nodes + one chord.
    src, dst = [], []
    for g in range(n_graphs):
        b = g * nodes_per_graph
        for i in range(nodes_per_graph):
            j = (i + 1) % nodes_per_graph
            src += [b + i, b + j]
            dst += [b + j, b + i]
        src += [b + 0, b + 4]
        dst += [b + 4, b + 0]
    src = jnp.array(src, jnp.int32)
    dst = jnp.array(dst, jnp.int32)
    adj = jnp.zeros((N, N), jnp.float32).at[dst, src].set(1.0)
    adj = jnp.maximum(adj, jnp.eye(N, dtype=jnp.float32))   # add_self_loops=True

    batch = jnp.repeat(jnp.arange(n_graphs, dtype=jnp.int32), nodes_per_graph)
    batch_onehot = jax.nn.one_hot(batch, n_graphs, dtype=jnp.float32)   # (N, G)

    fwd = jax.jit(functools.partial(single_gat_forward, heads=heads,
                                    hidden_dim=hidden_dim, ratio=ratio))
    logits, features = fwd(prep, x, adj, batch_onehot)
    logits = jax.block_until_ready(logits)
    features = jax.block_until_ready(features)

    assert logits.shape == (n_graphs, output_dim)
    assert features.shape == (N, hidden_dim)
    assert bool(jnp.all(jnp.isfinite(logits))) and bool(jnp.all(jnp.isfinite(features)))
    print("KERNEL_OK")
</pallas_src>

<mosaic_0001>
module attributes {stable_mosaic.version = 11 : i64} {
  func.func @_fused_node_kernel(%arg0: memref<16x16xf32, #tpu.memory_space<vmem>>, %arg1: memref<16x16xf32, #tpu.memory_space<vmem>>, %arg2: memref<16x2xf32, #tpu.memory_space<vmem>>, %arg3: memref<2x16xf32, #tpu.memory_space<vmem>>, %arg4: memref<2x1xf32, #tpu.memory_space<vmem>>, %arg5: memref<16x32xf32, #tpu.memory_space<vmem>>, %arg6: memref<1x32xf32, #tpu.memory_space<vmem>>, %arg7: memref<32x32xf32, #tpu.memory_space<vmem>>, %arg8: memref<32x8xf32, #tpu.memory_space<vmem>>, %arg9: memref<1x32xf32, #tpu.memory_space<vmem>>, %arg10: memref<1x32xf32, #tpu.memory_space<vmem>>, %arg11: memref<1x32xf32, #tpu.memory_space<vmem>>, %arg12: memref<32x32xf32, #tpu.memory_space<vmem>>, %arg13: memref<32x8xf32, #tpu.memory_space<vmem>>, %arg14: memref<1x32xf32, #tpu.memory_space<vmem>>, %arg15: memref<1x32xf32, #tpu.memory_space<vmem>>, %arg16: memref<1x32xf32, #tpu.memory_space<vmem>>, %arg17: memref<32x32xf32, #tpu.memory_space<vmem>>, %arg18: memref<32x8xf32, #tpu.memory_space<vmem>>, %arg19: memref<1x32xf32, #tpu.memory_space<vmem>>, %arg20: memref<1x32xf32, #tpu.memory_space<vmem>>, %arg21: memref<1x32xf32, #tpu.memory_space<vmem>>, %arg22: memref<32x1xf32, #tpu.memory_space<vmem>>, %arg23: memref<16x32xf32, #tpu.memory_space<vmem>>, %arg24: memref<16x1xf32, #tpu.memory_space<vmem>>) attributes {dimension_semantics = [], scalar_prefetch = 0 : i64, scratch_operands = 0 : i64, tpu.core_type = #tpu.core_type<tc>} {
    %c0 = arith.constant 0 : index
    %c0_0 = arith.constant 0 : index
    %0 = vector.load %arg1[%c0, %c0_0] : memref<16x16xf32, #tpu.memory_space<vmem>>, vector<16x16xf32>
    %c0_1 = arith.constant 0 : index
    %c0_2 = arith.constant 0 : index
    %1 = vector.load %arg2[%c0_1, %c0_2] : memref<16x2xf32, #tpu.memory_space<vmem>>, vector<16x2xf32>
    %c0_3 = arith.constant 0 : index
    %c0_4 = arith.constant 0 : index
    %2 = vector.load %arg3[%c0_3, %c0_4] : memref<2x16xf32, #tpu.memory_space<vmem>>, vector<2x16xf32>
    %c0_5 = arith.constant 0 : index
    %c0_6 = arith.constant 0 : index
    %3 = vector.load %arg4[%c0_5, %c0_6] : memref<2x1xf32, #tpu.memory_space<vmem>>, vector<2x1xf32>
    %4 = tpu.iota {dimensions = array<i32: 1>} : vector<1x32xi32>
    %c0_i32 = arith.constant 0 : i32
    %5 = vector.broadcast %c0_i32 : i32 to vector<1x32xi32>
    %6 = arith.cmpi sge, %4, %5 : vector<1x32xi32>
    %c8_i32 = arith.constant 8 : i32
    %7 = vector.broadcast %c8_i32 : i32 to vector<1x32xi32>
    %8 = arith.cmpi slt, %4, %7 : vector<1x32xi32>
    %9 = arith.andi %6, %8 : vector<1x32xi1>
    %c8_i32_7 = arith.constant 8 : i32
    %10 = vector.broadcast %c8_i32_7 : i32 to vector<1x32xi32>
    %11 = arith.cmpi sge, %4, %10 : vector<1x32xi32>
    %c16_i32 = arith.constant 16 : i32
    %12 = vector.broadcast %c16_i32 : i32 to vector<1x32xi32>
    %13 = arith.cmpi slt, %4, %12 : vector<1x32xi32>
    %14 = arith.andi %11, %13 : vector<1x32xi1>
    %c16_i32_8 = arith.constant 16 : i32
    %15 = vector.broadcast %c16_i32_8 : i32 to vector<1x32xi32>
    %16 = arith.cmpi sge, %4, %15 : vector<1x32xi32>
    %c24_i32 = arith.constant 24 : i32
    %17 = vector.broadcast %c24_i32 : i32 to vector<1x32xi32>
    %18 = arith.cmpi slt, %4, %17 : vector<1x32xi32>
    %19 = arith.andi %16, %18 : vector<1x32xi1>
    %c24_i32_9 = arith.constant 24 : i32
    %20 = vector.broadcast %c24_i32_9 : i32 to vector<1x32xi32>
    %21 = arith.cmpi sge, %4, %20 : vector<1x32xi32>
    %c32_i32 = arith.constant 32 : i32
    %22 = vector.broadcast %c32_i32 : i32 to vector<1x32xi32>
    %23 = arith.cmpi slt, %4, %22 : vector<1x32xi32>
    %24 = arith.andi %21, %23 : vector<1x32xi1>
    %c0_10 = arith.constant 0 : index
    %c0_11 = arith.constant 0 : index
    %25 = vector.load %arg0[%c0_10, %c0_11] : memref<16x16xf32, #tpu.memory_space<vmem>>, vector<16x16xf32>
    %c0_12 = arith.constant 0 : index
    %c0_13 = arith.constant 0 : index
    %26 = vector.load %arg5[%c0_12, %c0_13] : memref<16x32xf32, #tpu.memory_space<vmem>>, vector<16x32xf32>
    %cst = arith.constant dense<0.000000e+00> : vector<16x32xf32>
    %27 = tpu.matmul %25, %26, %cst {dimension_numbers = #tpu.dot_dimension_numbers<[1], [0], [0], [1], [0, 0, 1, 1], [], []>} : vector<16x16xf32>, vector<16x32xf32>, vector<16x32xf32> -> vector<16x32xf32>
    %c0_14 = arith.constant 0 : index
    %c0_15 = arith.constant 0 : index
    %28 = vector.load %arg6[%c0_14, %c0_15] : memref<1x32xf32, #tpu.memory_space<vmem>>, vector<1x32xf32>
    %29 = vector.broadcast %28 : vector<1x32xf32> to vector<16x32xf32>
    %30 = arith.addf %27, %29 : vector<16x32xf32>
    %cst_16 = arith.constant 0.000000e+00 : f32
    %31 = vector.broadcast %cst_16 : f32 to vector<16x32xf32>
    %32 = arith.maximumf %30, %31 : vector<16x32xf32>
    %c0_17 = arith.constant 0 : index
    %c0_18 = arith.constant 0 : index
    %33 = vector.load %arg7[%c0_17, %c0_18] : memref<32x32xf32, #tpu.memory_space<vmem>>, vector<32x32xf32>
    %cst_19 = arith.constant dense<0.000000e+00> : vector<16x32xf32>
    %34 = tpu.matmul %32, %33, %cst_19 {dimension_numbers = #tpu.dot_dimension_numbers<[1], [0], [0], [1], [0, 0, 1, 1], [], []>} : vector<16x32xf32>, vector<32x32xf32>, vector<16x32xf32> -> vector<16x32xf32>
    %c0_20 = arith.constant 0 : index
    %c0_21 = arith.constant 0 : index
    %35 = vector.load %arg8[%c0_20, %c0_21] : memref<32x8xf32, #tpu.memory_space<vmem>>, vector<32x8xf32>
    %cst_22 = arith.constant dense<0.000000e+00> : vector<16x8xf32>
    %36 = tpu.matmul %34, %35, %cst_22 {dimension_numbers = #tpu.dot_dimension_numbers<[1], [0], [0], [1], [0, 0, 1, 1], [], []>} : vector<16x32xf32>, vector<32x8xf32>, vector<16x8xf32> -> vector<16x8xf32>
    %37 = tpu.transpose %36, [1, 0] : vector<16x8xf32> -> vector<8x16xf32>
    %38 = vector.extract_strided_slice %36 {offsets = [0, 4], sizes = [16, 1], strides = [1, 1]} : vector<16x8xf32> to vector<16x1xf32>
    %39 = vector.extract_strided_slice %37 {offsets = [0, 0], sizes = [1, 16], strides = [1, 1]} : vector<8x16xf32> to vector<1x16xf32>
    %40 = vector.broadcast %38 : vector<16x1xf32> to vector<16x16xf32>
    %41 = vector.broadcast %39 : vector<1x16xf32> to vector<16x16xf32>
    %42 = arith.addf %40, %41 : vector<16x16xf32>
    %cst_23 = arith.constant 2.000000e-01 : f32
    %43 = vector.broadcast %cst_23 : f32 to vector<16x16xf32>
    %44 = arith.mulf %43, %42 : vector<16x16xf32>
    %45 = arith.maximumf %42, %44 : vector<16x16xf32>
    %46 = arith.addf %45, %0 : vector<16x16xf32>
    %cst_24 = arith.constant dense<0xFF800000> : vector<16xf32>
    %47 = vector.multi_reduction <maximumf>, %46, %cst_24 [1] : vector<16x16xf32> to vector<16xf32>
    %48 = vector.shape_cast %47 : vector<16xf32> to vector<16x1xf32>
    %49 = vector.broadcast %48 : vector<16x1xf32> to vector<16x16xf32>
    %50 = arith.subf %46, %49 : vector<16x16xf32>
    %51 = math.exp %50 : vector<16x16xf32>
    %cst_25 = arith.constant dense<0.000000e+00> : vector<16xf32>
    %52 = vector.multi_reduction <add>, %51, %cst_25 [1] : vector<16x16xf32> to vector<16xf32>
    %53 = vector.shape_cast %52 : vector<16xf32> to vector<16x1xf32>
    %cst_26 = arith.constant 1.000000e+00 : f32
    %54 = vector.broadcast %cst_26 : f32 to vector<16x1xf32>
    %55 = arith.divf %54, %53 : vector<16x1xf32>
    %cst_27 = arith.constant 0.000000e+00 : f32
    %56 = vector.shape_cast %9 : vector<1x32xi1> to vector<1x32xi1>
    %57 = vector.broadcast %56 : vector<1x32xi1> to vector<16x32xi1>
    %58 = vector.broadcast %cst_27 : f32 to vector<16x32xf32>
    %59 = arith.select %57, %34, %58 : vector<16x32xi1>, vector<16x32xf32>
    %cst_28 = arith.constant dense<0.000000e+00> : vector<16x32xf32>
    %60 = tpu.matmul %51, %59, %cst_28 {dimension_numbers = #tpu.dot_dimension_numbers<[1], [0], [0], [1], [0, 0, 1, 1], [], []>} : vector<16x16xf32>, vector<16x32xf32>, vector<16x32xf32> -> vector<16x32xf32>
    %61 = vector.broadcast %55 : vector<16x1xf32> to vector<16x32xf32>
    %62 = arith.mulf %60, %61 : vector<16x32xf32>
    %63 = vector.extract_strided_slice %36 {offsets = [0, 5], sizes = [16, 1], strides = [1, 1]} : vector<16x8xf32> to vector<16x1xf32>
    %64 = vector.extract_strided_slice %37 {offsets = [1, 0], sizes = [1, 16], strides = [1, 1]} : vector<8x16xf32> to vector<1x16xf32>
    %65 = vector.broadcast %63 : vector<16x1xf32> to vector<16x16xf32>
    %66 = vector.broadcast %64 : vector<1x16xf32> to vector<16x16xf32>
    %67 = arith.addf %65, %66 : vector<16x16xf32>
    %cst_29 = arith.constant 2.000000e-01 : f32
    %68 = vector.broadcast %cst_29 : f32 to vector<16x16xf32>
    %69 = arith.mulf %68, %67 : vector<16x16xf32>
    %70 = arith.maximumf %67, %69 : vector<16x16xf32>
    %71 = arith.addf %70, %0 : vector<16x16xf32>
    %cst_30 = arith.constant dense<0xFF800000> : vector<16xf32>
    %72 = vector.multi_reduction <maximumf>, %71, %cst_30 [1] : vector<16x16xf32> to vector<16xf32>
    %73 = vector.shape_cast %72 : vector<16xf32> to vector<16x1xf32>
    %74 = vector.broadcast %73 : vector<16x1xf32> to vector<16x16xf32>
    %75 = arith.subf %71, %74 : vector<16x16xf32>
    %76 = math.exp %75 : vector<16x16xf32>
    %cst_31 = arith.constant dense<0.000000e+00> : vector<16xf32>
    %77 = vector.multi_reduction <add>, %76, %cst_31 [1] : vector<16x16xf32> to vector<16xf32>
    %78 = vector.shape_cast %77 : vector<16xf32> to vector<16x1xf32>
    %cst_32 = arith.constant 1.000000e+00 : f32
    %79 = vector.broadcast %cst_32 : f32 to vector<16x1xf32>
    %80 = arith.divf %79, %78 : vector<16x1xf32>
    %cst_33 = arith.constant 0.000000e+00 : f32
    %81 = vector.shape_cast %14 : vector<1x32xi1> to vector<1x32xi1>
    %82 = vector.broadcast %81 : vector<1x32xi1> to vector<16x32xi1>
    %83 = vector.broadcast %cst_33 : f32 to vector<16x32xf32>
    %84 = arith.select %82, %34, %83 : vector<16x32xi1>, vector<16x32xf32>
    %cst_34 = arith.constant dense<0.000000e+00> : vector<16x32xf32>
    %85 = tpu.matmul %76, %84, %cst_34 {dimension_numbers = #tpu.dot_dimension_numbers<[1], [0], [0], [1], [0, 0, 1, 1], [], []>} : vector<16x16xf32>, vector<16x32xf32>, vector<16x32xf32> -> vector<16x32xf32>
    %86 = vector.broadcast %80 : vector<16x1xf32> to vector<16x32xf32>
    %87 = arith.mulf %85, %86 : vector<16x32xf32>
    %88 = arith.addf %62, %87 : vector<16x32xf32>
    %89 = vector.extract_strided_slice %36 {offsets = [0, 6], sizes = [16, 1], strides = [1, 1]} : vector<16x8xf32> to vector<16x1xf32>
    %90 = vector.extract_strided_slice %37 {offsets = [2, 0], sizes = [1, 16], strides = [1, 1]} : vector<8x16xf32> to vector<1x16xf32>
    %91 = vector.broadcast %89 : vector<16x1xf32> to vector<16x16xf32>
    %92 = vector.broadcast %90 : vector<1x16xf32> to vector<16x16xf32>
    %93 = arith.addf %91, %92 : vector<16x16xf32>
    %cst_35 = arith.constant 2.000000e-01 : f32
    %94 = vector.broadcast %cst_35 : f32 to vector<16x16xf32>
    %95 = arith.mulf %94, %93 : vector<16x16xf32>
    %96 = arith.maximumf %93, %95 : vector<16x16xf32>
    %97 = arith.addf %96, %0 : vector<16x16xf32>
    %cst_36 = arith.constant dense<0xFF800000> : vector<16xf32>
    %98 = vector.multi_reduction <maximumf>, %97, %cst_36 [1] : vector<16x16xf32> to vector<16xf32>
    %99 = vector.shape_cast %98 : vector<16xf32> to vector<16x1xf32>
    %100 = vector.broadcast %99 : vector<16x1xf32> to vector<16x16xf32>
    %101 = arith.subf %97, %100 : vector<16x16xf32>
    %102 = math.exp %101 : vector<16x16xf32>
    %cst_37 = arith.constant dense<0.000000e+00> : vector<16xf32>
    %103 = vector.multi_reduction <add>, %102, %cst_37 [1] : vector<16x16xf32> to vector<16xf32>
    %104 = vector.shape_cast %103 : vector<16xf32> to vector<16x1xf32>
    %cst_38 = arith.constant 1.000000e+00 : f32
    %105 = vector.broadcast %cst_38 : f32 to vector<16x1xf32>
    %106 = arith.divf %105, %104 : vector<16x1xf32>
    %cst_39 = arith.constant 0.000000e+00 : f32
    %107 = vector.shape_cast %19 : vector<1x32xi1> to vector<1x32xi1>
    %108 = vector.broadcast %107 : vector<1x32xi1> to vector<16x32xi1>
    %109 = vector.broadcast %cst_39 : f32 to vector<16x32xf32>
    %110 = arith.select %108, %34, %109 : vector<16x32xi1>, vector<16x32xf32>
    %cst_40 = arith.constant dense<0.000000e+00> : vector<16x32xf32>
    %111 = tpu.matmul %102, %110, %cst_40 {dimension_numbers = #tpu.dot_dimension_numbers<[1], [0], [0], [1], [0, 0, 1, 1], [], []>} : vector<16x16xf32>, vector<16x32xf32>, vector<16x32xf32> -> vector<16x32xf32>
    %112 = vector.broadcast %106 : vector<16x1xf32> to vector<16x32xf32>
    %113 = arith.mulf %111, %112 : vector<16x32xf32>
    %114 = arith.addf %88, %113 : vector<16x32xf32>
    %115 = vector.extract_strided_slice %36 {offsets = [0, 7], sizes = [16, 1], strides = [1, 1]} : vector<16x8xf32> to vector<16x1xf32>
    %116 = vector.extract_strided_slice %37 {offsets = [3, 0], sizes = [1, 16], strides = [1, 1]} : vector<8x16xf32> to vector<1x16xf32>
    %117 = vector.broadcast %115 : vector<16x1xf32> to vector<16x16xf32>
    %118 = vector.broadcast %116 : vector<1x16xf32> to vector<16x16xf32>
    %119 = arith.addf %117, %118 : vector<16x16xf32>
    %cst_41 = arith.constant 2.000000e-01 : f32
    %120 = vector.broadcast %cst_41 : f32 to vector<16x16xf32>
    %121 = arith.mulf %120, %119 : vector<16x16xf32>
    %122 = arith.maximumf %119, %121 : vector<16x16xf32>
    %123 = arith.addf %122, %0 : vector<16x16xf32>
    %cst_42 = arith.constant dense<0xFF800000> : vector<16xf32>
    %124 = vector.multi_reduction <maximumf>, %123, %cst_42 [1] : vector<16x16xf32> to vector<16xf32>
    %125 = vector.shape_cast %124 : vector<16xf32> to vector<16x1xf32>
    %126 = vector.broadcast %125 : vector<16x1xf32> to vector<16x16xf32>
    %127 = arith.subf %123, %126 : vector<16x16xf32>
    %128 = math.exp %127 : vector<16x16xf32>
    %cst_43 = arith.constant dense<0.000000e+00> : vector<16xf32>
    %129 = vector.multi_reduction <add>, %128, %cst_43 [1] : vector<16x16xf32> to vector<16xf32>
    %130 = vector.shape_cast %129 : vector<16xf32> to vector<16x1xf32>
    %cst_44 = arith.constant 1.000000e+00 : f32
    %131 = vector.broadcast %cst_44 : f32 to vector<16x1xf32>
    %132 = arith.divf %131, %130 : vector<16x1xf32>
    %cst_45 = arith.constant 0.000000e+00 : f32
    %133 = vector.shape_cast %24 : vector<1x32xi1> to vector<1x32xi1>
    %134 = vector.broadcast %133 : vector<1x32xi1> to vector<16x32xi1>
    %135 = vector.broadcast %cst_45 : f32 to vector<16x32xf32>
    %136 = arith.select %134, %34, %135 : vector<16x32xi1>, vector<16x32xf32>
    %cst_46 = arith.constant dense<0.000000e+00> : vector<16x32xf32>
    %137 = tpu.matmul %128, %136, %cst_46 {dimension_numbers = #tpu.dot_dimension_numbers<[1], [0], [0], [1], [0, 0, 1, 1], [], []>} : vector<16x16xf32>, vector<16x32xf32>, vector<16x32xf32> -> vector<16x32xf32>
    %138 = vector.broadcast %132 : vector<16x1xf32> to vector<16x32xf32>
    %139 = arith.mulf %137, %138 : vector<16x32xf32>
    %140 = arith.addf %114, %139 : vector<16x32xf32>
    %c0_47 = arith.constant 0 : index
    %c0_48 = arith.constant 0 : index
    %141 = vector.load %arg9[%c0_47, %c0_48] : memref<1x32xf32, #tpu.memory_space<vmem>>, vector<1x32xf32>
    %142 = vector.broadcast %141 : vector<1x32xf32> to vector<16x32xf32>
    %143 = arith.addf %140, %142 : vector<16x32xf32>
    %cst_49 = arith.constant dense<0.000000e+00> : vector<16xf32>
    %144 = vector.multi_reduction <add>, %143, %cst_49 [1] : vector<16x32xf32> to vector<16xf32>
    %145 = vector.shape_cast %144 : vector<16xf32> to vector<16x1xf32>
    %146 = arith.mulf %143, %143 : vector<16x32xf32>
    %cst_50 = arith.constant dense<0.000000e+00> : vector<16xf32>
    %147 = vector.multi_reduction <add>, %146, %cst_50 [1] : vector<16x32xf32> to vector<16xf32>
    %148 = vector.shape_cast %147 : vector<16xf32> to vector<16x1xf32>
    %cst_51 = arith.constant dense<0.000000e+00> : vector<2x1xf32>
    %149 = tpu.matmul %2, %145, %cst_51 {dimension_numbers = #tpu.dot_dimension_numbers<[1], [0], [0], [1], [0, 0, 1, 1], [], []>} : vector<2x16xf32>, vector<16x1xf32>, vector<2x1xf32> -> vector<2x1xf32>
    %150 = arith.mulf %149, %3 : vector<2x1xf32>
    %cst_52 = arith.constant dense<0.000000e+00> : vector<2x1xf32>
    %151 = tpu.matmul %2, %148, %cst_52 {dimension_numbers = #tpu.dot_dimension_numbers<[1], [0], [0], [1], [0, 0, 1, 1], [], []>} : vector<2x16xf32>, vector<16x1xf32>, vector<2x1xf32> -> vector<2x1xf32>
    %152 = arith.mulf %151, %3 : vector<2x1xf32>
    %153 = arith.mulf %150, %150 : vector<2x1xf32>
    %154 = arith.subf %152, %153 : vector<2x1xf32>
    %cst_53 = arith.constant 0.000000e+00 : f32
    %155 = vector.broadcast %cst_53 : f32 to vector<2x1xf32>
    %156 = arith.maximumf %154, %155 : vector<2x1xf32>
    %cst_54 = arith.constant 9.99999974E-6 : f32
    %157 = vector.broadcast %cst_54 : f32 to vector<2x1xf32>
    %158 = arith.addf %156, %157 : vector<2x1xf32>
    %159 = math.rsqrt %158 : vector<2x1xf32>
    %cst_55 = arith.constant dense<0.000000e+00> : vector<16x1xf32>
    %160 = tpu.matmul %1, %150, %cst_55 {dimension_numbers = #tpu.dot_dimension_numbers<[1], [0], [0], [1], [0, 0, 1, 1], [], []>} : vector<16x2xf32>, vector<2x1xf32>, vector<16x1xf32> -> vector<16x1xf32>
    %cst_56 = arith.constant dense<0.000000e+00> : vector<16x1xf32>
    %161 = tpu.matmul %1, %159, %cst_56 {dimension_numbers = #tpu.dot_dimension_numbers<[1], [0], [0], [1], [0, 0, 1, 1], [], []>} : vector<16x2xf32>, vector<2x1xf32>, vector<16x1xf32> -> vector<16x1xf32>
    %162 = vector.broadcast %160 : vector<16x1xf32> to vector<16x32xf32>
    %163 = arith.subf %143, %162 : vector<16x32xf32>
    %164 = vector.broadcast %161 : vector<16x1xf32> to vector<16x32xf32>
    %165 = arith.mulf %163, %164 : vector<16x32xf32>
    %c0_57 = arith.constant 0 : index
    %c0_58 = arith.constant 0 : index
    %166 = vector.load %arg10[%c0_57, %c0_58] : memref<1x32xf32, #tpu.memory_space<vmem>>, vector<1x32xf32>
    %167 = vector.broadcast %166 : vector<1x32xf32> to vector<16x32xf32>
    %168 = arith.mulf %165, %167 : vector<16x32xf32>
    %c0_59 = arith.constant 0 : index
    %c0_60 = arith.constant 0 : index
    %169 = vector.load %arg11[%c0_59, %c0_60] : memref<1x32xf32, #tpu.memory_space<vmem>>, vector<1x32xf32>
    %170 = vector.broadcast %169 : vector<1x32xf32> to vector<16x32xf32>
    %171 = arith.addf %168, %170 : vector<16x32xf32>
    %cst_61 = arith.constant 0.000000e+00 : f32
    %172 = vector.broadcast %cst_61 : f32 to vector<16x32xf32>
    %173 = arith.maximumf %171, %172 : vector<16x32xf32>
    %c0_62 = arith.constant 0 : index
    %c0_63 = arith.constant 0 : index
    %174 = vector.load %arg12[%c0_62, %c0_63] : memref<32x32xf32, #tpu.memory_space<vmem>>, vector<32x32xf32>
    %cst_64 = arith.constant dense<0.000000e+00> : vector<16x32xf32>
    %175 = tpu.matmul %173, %174, %cst_64 {dimension_numbers = #tpu.dot_dimension_numbers<[1], [0], [0], [1], [0, 0, 1, 1], [], []>} : vector<16x32xf32>, vector<32x32xf32>, vector<16x32xf32> -> vector<16x32xf32>
    %c0_65 = arith.constant 0 : index
    %c0_66 = arith.constant 0 : index
    %176 = vector.load %arg13[%c0_65, %c0_66] : memref<32x8xf32, #tpu.memory_space<vmem>>, vector<32x8xf32>
    %cst_67 = arith.constant dense<0.000000e+00> : vector<16x8xf32>
    %177 = tpu.matmul %175, %176, %cst_67 {dimension_numbers = #tpu.dot_dimension_numbers<[1], [0], [0], [1], [0, 0, 1, 1], [], []>} : vector<16x32xf32>, vector<32x8xf32>, vector<16x8xf32> -> vector<16x8xf32>
    %178 = tpu.transpose %177, [1, 0] : vector<16x8xf32> -> vector<8x16xf32>
    %179 = vector.extract_strided_slice %177 {offsets = [0, 4], sizes = [16, 1], strides = [1, 1]} : vector<16x8xf32> to vector<16x1xf32>
    %180 = vector.extract_strided_slice %178 {offsets = [0, 0], sizes = [1, 16], strides = [1, 1]} : vector<8x16xf32> to vector<1x16xf32>
    %181 = vector.broadcast %179 : vector<16x1xf32> to vector<16x16xf32>
    %182 = vector.broadcast %180 : vector<1x16xf32> to vector<16x16xf32>
    %183 = arith.addf %181, %182 : vector<16x16xf32>
    %cst_68 = arith.constant 2.000000e-01 : f32
    %184 = vector.broadcast %cst_68 : f32 to vector<16x16xf32>
    %185 = arith.mulf %184, %183 : vector<16x16xf32>
    %186 = arith.maximumf %183, %185 : vector<16x16xf32>
    %187 = arith.addf %186, %0 : vector<16x16xf32>
    %cst_69 = arith.constant dense<0xFF800000> : vector<16xf32>
    %188 = vector.multi_reduction <maximumf>, %187, %cst_69 [1] : vector<16x16xf32> to vector<16xf32>
    %189 = vector.shape_cast %188 : vector<16xf32> to vector<16x1xf32>
    %190 = vector.broadcast %189 : vector<16x1xf32> to vector<16x16xf32>
    %191 = arith.subf %187, %190 : vector<16x16xf32>
    %192 = math.exp %191 : vector<16x16xf32>
    %cst_70 = arith.constant dense<0.000000e+00> : vector<16xf32>
    %193 = vector.multi_reduction <add>, %192, %cst_70 [1] : vector<16x16xf32> to vector<16xf32>
    %194 = vector.shape_cast %193 : vector<16xf32> to vector<16x1xf32>
    %cst_71 = arith.constant 1.000000e+00 : f32
    %195 = vector.broadcast %cst_71 : f32 to vector<16x1xf32>
    %196 = arith.divf %195, %194 : vector<16x1xf32>
    %cst_72 = arith.constant 0.000000e+00 : f32
    %197 = vector.shape_cast %9 : vector<1x32xi1> to vector<1x32xi1>
    %198 = vector.broadcast %197 : vector<1x32xi1> to vector<16x32xi1>
    %199 = vector.broadcast %cst_72 : f32 to vector<16x32xf32>
    %200 = arith.select %198, %175, %199 : vector<16x32xi1>, vector<16x32xf32>
    %cst_73 = arith.constant dense<0.000000e+00> : vector<16x32xf32>
    %201 = tpu.matmul %192, %200, %cst_73 {dimension_numbers = #tpu.dot_dimension_numbers<[1], [0], [0], [1], [0, 0, 1, 1], [], []>} : vector<16x16xf32>, vector<16x32xf32>, vector<16x32xf32> -> vector<16x32xf32>
    %202 = vector.broadcast %196 : vector<16x1xf32> to vector<16x32xf32>
    %203 = arith.mulf %201, %202 : vector<16x32xf32>
    %204 = vector.extract_strided_slice %177 {offsets = [0, 5], sizes = [16, 1], strides = [1, 1]} : vector<16x8xf32> to vector<16x1xf32>
    %205 = vector.extract_strided_slice %178 {offsets = [1, 0], sizes = [1, 16], strides = [1, 1]} : vector<8x16xf32> to vector<1x16xf32>
    %206 = vector.broadcast %204 : vector<16x1xf32> to vector<16x16xf32>
    %207 = vector.broadcast %205 : vector<1x16xf32> to vector<16x16xf32>
    %208 = arith.addf %206, %207 : vector<16x16xf32>
    %cst_74 = arith.constant 2.000000e-01 : f32
    %209 = vector.broadcast %cst_74 : f32 to vector<16x16xf32>
    %210 = arith.mulf %209, %208 : vector<16x16xf32>
    %211 = arith.maximumf %208, %210 : vector<16x16xf32>
    %212 = arith.addf %211, %0 : vector<16x16xf32>
    %cst_75 = arith.constant dense<0xFF800000> : vector<16xf32>
    %213 = vector.multi_reduction <maximumf>, %212, %cst_75 [1] : vector<16x16xf32> to vector<16xf32>
    %214 = vector.shape_cast %213 : vector<16xf32> to vector<16x1xf32>
    %215 = vector.broadcast %214 : vector<16x1xf32> to vector<16x16xf32>
    %216 = arith.subf %212, %215 : vector<16x16xf32>
    %217 = math.exp %216 : vector<16x16xf32>
    %cst_76 = arith.constant dense<0.000000e+00> : vector<16xf32>
    %218 = vector.multi_reduction <add>, %217, %cst_76 [1] : vector<16x16xf32> to vector<16xf32>
    %219 = vector.shape_cast %218 : vector<16xf32> to vector<16x1xf32>
    %cst_77 = arith.constant 1.000000e+00 : f32
    %220 = vector.broadcast %cst_77 : f32 to vector<16x1xf32>
    %221 = arith.divf %220, %219 : vector<16x1xf32>
    %cst_78 = arith.constant 0.000000e+00 : f32
    %222 = vector.shape_cast %14 : vector<1x32xi1> to vector<1x32xi1>
    %223 = vector.broadcast %222 : vector<1x32xi1> to vector<16x32xi1>
    %224 = vector.broadcast %cst_78 : f32 to vector<16x32xf32>
    %225 = arith.select %223, %175, %224 : vector<16x32xi1>, vector<16x32xf32>
    %cst_79 = arith.constant dense<0.000000e+00> : vector<16x32xf32>
    %226 = tpu.matmul %217, %225, %cst_79 {dimension_numbers = #tpu.dot_dimension_numbers<[1], [0], [0], [1], [0, 0, 1, 1], [], []>} : vector<16x16xf32>, vector<16x32xf32>, vector<16x32xf32> -> vector<16x32xf32>
    %227 = vector.broadcast %221 : vector<16x1xf32> to vector<16x32xf32>
    %228 = arith.mulf %226, %227 : vector<16x32xf32>
    %229 = arith.addf %203, %228 : vector<16x32xf32>
    %230 = vector.extract_strided_slice %177 {offsets = [0, 6], sizes = [16, 1], strides = [1, 1]} : vector<16x8xf32> to vector<16x1xf32>
    %231 = vector.extract_strided_slice %178 {offsets = [2, 0], sizes = [1, 16], strides = [1, 1]} : vector<8x16xf32> to vector<1x16xf32>
    %232 = vector.broadcast %230 : vector<16x1xf32> to vector<16x16xf32>
    %233 = vector.broadcast %231 : vector<1x16xf32> to vector<16x16xf32>
    %234 = arith.addf %232, %233 : vector<16x16xf32>
    %cst_80 = arith.constant 2.000000e-01 : f32
    %235 = vector.broadcast %cst_80 : f32 to vector<16x16xf32>
    %236 = arith.mulf %235, %234 : vector<16x16xf32>
    %237 = arith.maximumf %234, %236 : vector<16x16xf32>
    %238 = arith.addf %237, %0 : vector<16x16xf32>
    %cst_81 = arith.constant dense<0xFF800000> : vector<16xf32>
    %239 = vector.multi_reduction <maximumf>, %238, %cst_81 [1] : vector<16x16xf32> to vector<16xf32>
    %240 = vector.shape_cast %239 : vector<16xf32> to vector<16x1xf32>
    %241 = vector.broadcast %240 : vector<16x1xf32> to vector<16x16xf32>
    %242 = arith.subf %238, %241 : vector<16x16xf32>
    %243 = math.exp %242 : vector<16x16xf32>
    %cst_82 = arith.constant dense<0.000000e+00> : vector<16xf32>
    %244 = vector.multi_reduction <add>, %243, %cst_82 [1] : vector<16x16xf32> to vector<16xf32>
    %245 = vector.shape_cast %244 : vector<16xf32> to vector<16x1xf32>
    %cst_83 = arith.constant 1.000000e+00 : f32
    %246 = vector.broadcast %cst_83 : f32 to vector<16x1xf32>
    %247 = arith.divf %246, %245 : vector<16x1xf32>
    %cst_84 = arith.constant 0.000000e+00 : f32
    %248 = vector.shape_cast %19 : vector<1x32xi1> to vector<1x32xi1>
    %249 = vector.broadcast %248 : vector<1x32xi1> to vector<16x32xi1>
    %250 = vector.broadcast %cst_84 : f32 to vector<16x32xf32>
    %251 = arith.select %249, %175, %250 : vector<16x32xi1>, vector<16x32xf32>
    %cst_85 = arith.constant dense<0.000000e+00> : vector<16x32xf32>
    %252 = tpu.matmul %243, %251, %cst_85 {dimension_numbers = #tpu.dot_dimension_numbers<[1], [0], [0], [1], [0, 0, 1, 1], [], []>} : vector<16x16xf32>, vector<16x32xf32>, vector<16x32xf32> -> vector<16x32xf32>
    %253 = vector.broadcast %247 : vector<16x1xf32> to vector<16x32xf32>
    %254 = arith.mulf %252, %253 : vector<16x32xf32>
    %255 = arith.addf %229, %254 : vector<16x32xf32>
    %256 = vector.extract_strided_slice %177 {offsets = [0, 7], sizes = [16, 1], strides = [1, 1]} : vector<16x8xf32> to vector<16x1xf32>
    %257 = vector.extract_strided_slice %178 {offsets = [3, 0], sizes = [1, 16], strides = [1, 1]} : vector<8x16xf32> to vector<1x16xf32>
    %258 = vector.broadcast %256 : vector<16x1xf32> to vector<16x16xf32>
    %259 = vector.broadcast %257 : vector<1x16xf32> to vector<16x16xf32>
    %260 = arith.addf %258, %259 : vector<16x16xf32>
    %cst_86 = arith.constant 2.000000e-01 : f32
    %261 = vector.broadcast %cst_86 : f32 to vector<16x16xf32>
    %262 = arith.mulf %261, %260 : vector<16x16xf32>
    %263 = arith.maximumf %260, %262 : vector<16x16xf32>
    %264 = arith.addf %263, %0 : vector<16x16xf32>
    %cst_87 = arith.constant dense<0xFF800000> : vector<16xf32>
    %265 = vector.multi_reduction <maximumf>, %264, %cst_87 [1] : vector<16x16xf32> to vector<16xf32>
    %266 = vector.shape_cast %265 : vector<16xf32> to vector<16x1xf32>
    %267 = vector.broadcast %266 : vector<16x1xf32> to vector<16x16xf32>
    %268 = arith.subf %264, %267 : vector<16x16xf32>
    %269 = math.exp %268 : vector<16x16xf32>
    %cst_88 = arith.constant dense<0.000000e+00> : vector<16xf32>
    %270 = vector.multi_reduction <add>, %269, %cst_88 [1] : vector<16x16xf32> to vector<16xf32>
    %271 = vector.shape_cast %270 : vector<16xf32> to vector<16x1xf32>
    %cst_89 = arith.constant 1.000000e+00 : f32
    %272 = vector.broadcast %cst_89 : f32 to vector<16x1xf32>
    %273 = arith.divf %272, %271 : vector<16x1xf32>
    %cst_90 = arith.constant 0.000000e+00 : f32
    %274 = vector.shape_cast %24 : vector<1x32xi1> to vector<1x32xi1>
    %275 = vector.broadcast %274 : vector<1x32xi1> to vector<16x32xi1>
    %276 = vector.broadcast %cst_90 : f32 to vector<16x32xf32>
    %277 = arith.select %275, %175, %276 : vector<16x32xi1>, vector<16x32xf32>
    %cst_91 = arith.constant dense<0.000000e+00> : vector<16x32xf32>
    %278 = tpu.matmul %269, %277, %cst_91 {dimension_numbers = #tpu.dot_dimension_numbers<[1], [0], [0], [1], [0, 0, 1, 1], [], []>} : vector<16x16xf32>, vector<16x32xf32>, vector<16x32xf32> -> vector<16x32xf32>
    %279 = vector.broadcast %273 : vector<16x1xf32> to vector<16x32xf32>
    %280 = arith.mulf %278, %279 : vector<16x32xf32>
    %281 = arith.addf %255, %280 : vector<16x32xf32>
    %c0_92 = arith.constant 0 : index
    %c0_93 = arith.constant 0 : index
    %282 = vector.load %arg14[%c0_92, %c0_93] : memref<1x32xf32, #tpu.memory_space<vmem>>, vector<1x32xf32>
    %283 = vector.broadcast %282 : vector<1x32xf32> to vector<16x32xf32>
    %284 = arith.addf %281, %283 : vector<16x32xf32>
    %cst_94 = arith.constant dense<0.000000e+00> : vector<16xf32>
    %285 = vector.multi_reduction <add>, %284, %cst_94 [1] : vector<16x32xf32> to vector<16xf32>
    %286 = vector.shape_cast %285 : vector<16xf32> to vector<16x1xf32>
    %287 = arith.mulf %284, %284 : vector<16x32xf32>
    %cst_95 = arith.constant dense<0.000000e+00> : vector<16xf32>
    %288 = vector.multi_reduction <add>, %287, %cst_95 [1] : vector<16x32xf32> to vector<16xf32>
    %289 = vector.shape_cast %288 : vector<16xf32> to vector<16x1xf32>
    %cst_96 = arith.constant dense<0.000000e+00> : vector<2x1xf32>
    %290 = tpu.matmul %2, %286, %cst_96 {dimension_numbers = #tpu.dot_dimension_numbers<[1], [0], [0], [1], [0, 0, 1, 1], [], []>} : vector<2x16xf32>, vector<16x1xf32>, vector<2x1xf32> -> vector<2x1xf32>
    %291 = arith.mulf %290, %3 : vector<2x1xf32>
    %cst_97 = arith.constant dense<0.000000e+00> : vector<2x1xf32>
    %292 = tpu.matmul %2, %289, %cst_97 {dimension_numbers = #tpu.dot_dimension_numbers<[1], [0], [0], [1], [0, 0, 1, 1], [], []>} : vector<2x16xf32>, vector<16x1xf32>, vector<2x1xf32> -> vector<2x1xf32>
    %293 = arith.mulf %292, %3 : vector<2x1xf32>
    %294 = arith.mulf %291, %291 : vector<2x1xf32>
    %295 = arith.subf %293, %294 : vector<2x1xf32>
    %cst_98 = arith.constant 0.000000e+00 : f32
    %296 = vector.broadcast %cst_98 : f32 to vector<2x1xf32>
    %297 = arith.maximumf %295, %296 : vector<2x1xf32>
    %cst_99 = arith.constant 9.99999974E-6 : f32
    %298 = vector.broadcast %cst_99 : f32 to vector<2x1xf32>
    %299 = arith.addf %297, %298 : vector<2x1xf32>
    %300 = math.rsqrt %299 : vector<2x1xf32>
    %cst_100 = arith.constant dense<0.000000e+00> : vector<16x1xf32>
    %301 = tpu.matmul %1, %291, %cst_100 {dimension_numbers = #tpu.dot_dimension_numbers<[1], [0], [0], [1], [0, 0, 1, 1], [], []>} : vector<16x2xf32>, vector<2x1xf32>, vector<16x1xf32> -> vector<16x1xf32>
    %cst_101 = arith.constant dense<0.000000e+00> : vector<16x1xf32>
    %302 = tpu.matmul %1, %300, %cst_101 {dimension_numbers = #tpu.dot_dimension_numbers<[1], [0], [0], [1], [0, 0, 1, 1], [], []>} : vector<16x2xf32>, vector<2x1xf32>, vector<16x1xf32> -> vector<16x1xf32>
    %303 = vector.broadcast %301 : vector<16x1xf32> to vector<16x32xf32>
    %304 = arith.subf %284, %303 : vector<16x32xf32>
    %305 = vector.broadcast %302 : vector<16x1xf32> to vector<16x32xf32>
    %306 = arith.mulf %304, %305 : vector<16x32xf32>
    %c0_102 = arith.constant 0 : index
    %c0_103 = arith.constant 0 : index
    %307 = vector.load %arg15[%c0_102, %c0_103] : memref<1x32xf32, #tpu.memory_space<vmem>>, vector<1x32xf32>
    %308 = vector.broadcast %307 : vector<1x32xf32> to vector<16x32xf32>
    %309 = arith.mulf %306, %308 : vector<16x32xf32>
    %c0_104 = arith.constant 0 : index
    %c0_105 = arith.constant 0 : index
    %310 = vector.load %arg16[%c0_104, %c0_105] : memref<1x32xf32, #tpu.memory_space<vmem>>, vector<1x32xf32>
    %311 = vector.broadcast %310 : vector<1x32xf32> to vector<16x32xf32>
    %312 = arith.addf %309, %311 : vector<16x32xf32>
    %cst_106 = arith.constant 0.000000e+00 : f32
    %313 = vector.broadcast %cst_106 : f32 to vector<16x32xf32>
    %314 = arith.maximumf %312, %313 : vector<16x32xf32>
    %c0_107 = arith.constant 0 : index
    %c0_108 = arith.constant 0 : index
    %315 = vector.load %arg17[%c0_107, %c0_108] : memref<32x32xf32, #tpu.memory_space<vmem>>, vector<32x32xf32>
    %cst_109 = arith.constant dense<0.000000e+00> : vector<16x32xf32>
    %316 = tpu.matmul %314, %315, %cst_109 {dimension_numbers = #tpu.dot_dimension_numbers<[1], [0], [0], [1], [0, 0, 1, 1], [], []>} : vector<16x32xf32>, vector<32x32xf32>, vector<16x32xf32> -> vector<16x32xf32>
    %c0_110 = arith.constant 0 : index
    %c0_111 = arith.constant 0 : index
    %317 = vector.load %arg18[%c0_110, %c0_111] : memref<32x8xf32, #tpu.memory_space<vmem>>, vector<32x8xf32>
    %cst_112 = arith.constant dense<0.000000e+00> : vector<16x8xf32>
    %318 = tpu.matmul %316, %317, %cst_112 {dimension_numbers = #tpu.dot_dimension_numbers<[1], [0], [0], [1], [0, 0, 1, 1], [], []>} : vector<16x32xf32>, vector<32x8xf32>, vector<16x8xf32> -> vector<16x8xf32>
    %319 = tpu.transpose %318, [1, 0] : vector<16x8xf32> -> vector<8x16xf32>
    %320 = vector.extract_strided_slice %318 {offsets = [0, 4], sizes = [16, 1], strides = [1, 1]} : vector<16x8xf32> to vector<16x1xf32>
    %321 = vector.extract_strided_slice %319 {offsets = [0, 0], sizes = [1, 16], strides = [1, 1]} : vector<8x16xf32> to vector<1x16xf32>
    %322 = vector.broadcast %320 : vector<16x1xf32> to vector<16x16xf32>
    %323 = vector.broadcast %321 : vector<1x16xf32> to vector<16x16xf32>
    %324 = arith.addf %322, %323 : vector<16x16xf32>
    %cst_113 = arith.constant 2.000000e-01 : f32
    %325 = vector.broadcast %cst_113 : f32 to vector<16x16xf32>
    %326 = arith.mulf %325, %324 : vector<16x16xf32>
    %327 = arith.maximumf %324, %326 : vector<16x16xf32>
    %328 = arith.addf %327, %0 : vector<16x16xf32>
    %cst_114 = arith.constant dense<0xFF800000> : vector<16xf32>
    %329 = vector.multi_reduction <maximumf>, %328, %cst_114 [1] : vector<16x16xf32> to vector<16xf32>
    %330 = vector.shape_cast %329 : vector<16xf32> to vector<16x1xf32>
    %331 = vector.broadcast %330 : vector<16x1xf32> to vector<16x16xf32>
    %332 = arith.subf %328, %331 : vector<16x16xf32>
    %333 = math.exp %332 : vector<16x16xf32>
    %cst_115 = arith.constant dense<0.000000e+00> : vector<16xf32>
    %334 = vector.multi_reduction <add>, %333, %cst_115 [1] : vector<16x16xf32> to vector<16xf32>
    %335 = vector.shape_cast %334 : vector<16xf32> to vector<16x1xf32>
    %cst_116 = arith.constant 1.000000e+00 : f32
    %336 = vector.broadcast %cst_116 : f32 to vector<16x1xf32>
    %337 = arith.divf %336, %335 : vector<16x1xf32>
    %cst_117 = arith.constant dense<0.000000e+00> : vector<16x32xf32>
    %338 = tpu.matmul %333, %316, %cst_117 {dimension_numbers = #tpu.dot_dimension_numbers<[1], [0], [0], [1], [0, 0, 1, 1], [], []>} : vector<16x16xf32>, vector<16x32xf32>, vector<16x32xf32> -> vector<16x32xf32>
    %339 = vector.broadcast %337 : vector<16x1xf32> to vector<16x32xf32>
    %340 = arith.mulf %338, %339 : vector<16x32xf32>
    %cst_118 = arith.constant 1.000000e+00 : f32
    %341 = vector.broadcast %cst_118 : f32 to vector<16x32xf32>
    %342 = arith.mulf %340, %341 : vector<16x32xf32>
    %c0_119 = arith.constant 0 : index
    %c0_120 = arith.constant 0 : index
    %343 = vector.load %arg19[%c0_119, %c0_120] : memref<1x32xf32, #tpu.memory_space<vmem>>, vector<1x32xf32>
    %344 = vector.broadcast %343 : vector<1x32xf32> to vector<16x32xf32>
    %345 = arith.addf %342, %344 : vector<16x32xf32>
    %cst_121 = arith.constant dense<0.000000e+00> : vector<16xf32>
    %346 = vector.multi_reduction <add>, %345, %cst_121 [1] : vector<16x32xf32> to vector<16xf32>
    %347 = vector.shape_cast %346 : vector<16xf32> to vector<16x1xf32>
    %348 = arith.mulf %345, %345 : vector<16x32xf32>
    %cst_122 = arith.constant dense<0.000000e+00> : vector<16xf32>
    %349 = vector.multi_reduction <add>, %348, %cst_122 [1] : vector<16x32xf32> to vector<16xf32>
    %350 = vector.shape_cast %349 : vector<16xf32> to vector<16x1xf32>
    %cst_123 = arith.constant dense<0.000000e+00> : vector<2x1xf32>
    %351 = tpu.matmul %2, %347, %cst_123 {dimension_numbers = #tpu.dot_dimension_numbers<[1], [0], [0], [1], [0, 0, 1, 1], [], []>} : vector<2x16xf32>, vector<16x1xf32>, vector<2x1xf32> -> vector<2x1xf32>
    %352 = arith.mulf %351, %3 : vector<2x1xf32>
    %cst_124 = arith.constant dense<0.000000e+00> : vector<2x1xf32>
    %353 = tpu.matmul %2, %350, %cst_124 {dimension_numbers = #tpu.dot_dimension_numbers<[1], [0], [0], [1], [0, 0, 1, 1], [], []>} : vector<2x16xf32>, vector<16x1xf32>, vector<2x1xf32> -> vector<2x1xf32>
    %354 = arith.mulf %353, %3 : vector<2x1xf32>
    %355 = arith.mulf %352, %352 : vector<2x1xf32>
    %356 = arith.subf %354, %355 : vector<2x1xf32>
    %cst_125 = arith.constant 0.000000e+00 : f32
    %357 = vector.broadcast %cst_125 : f32 to vector<2x1xf32>
    %358 = arith.maximumf %356, %357 : vector<2x1xf32>
    %cst_126 = arith.constant 9.99999974E-6 : f32
    %359 = vector.broadcast %cst_126 : f32 to vector<2x1xf32>
    %360 = arith.addf %358, %359 : vector<2x1xf32>
    %361 = math.rsqrt %360 : vector<2x1xf32>
    %cst_127 = arith.constant dense<0.000000e+00> : vector<16x1xf32>
    %362 = tpu.matmul %1, %352, %cst_127 {dimension_numbers = #tpu.dot_dimension_numbers<[1], [0], [0], [1], [0, 0, 1, 1], [], []>} : vector<16x2xf32>, vector<2x1xf32>, vector<16x1xf32> -> vector<16x1xf32>
    %cst_128 = arith.constant dense<0.000000e+00> : vector<16x1xf32>
    %363 = tpu.matmul %1, %361, %cst_128 {dimension_numbers = #tpu.dot_dimension_numbers<[1], [0], [0], [1], [0, 0, 1, 1], [], []>} : vector<16x2xf32>, vector<2x1xf32>, vector<16x1xf32> -> vector<16x1xf32>
    %364 = vector.broadcast %362 : vector<16x1xf32> to vector<16x32xf32>
    %365 = arith.subf %345, %364 : vector<16x32xf32>
    %366 = vector.broadcast %363 : vector<16x1xf32> to vector<16x32xf32>
    %367 = arith.mulf %365, %366 : vector<16x32xf32>
    %c0_129 = arith.constant 0 : index
    %c0_130 = arith.constant 0 : index
    %368 = vector.load %arg20[%c0_129, %c0_130] : memref<1x32xf32, #tpu.memory_space<vmem>>, vector<1x32xf32>
    %369 = vector.broadcast %368 : vector<1x32xf32> to vector<16x32xf32>
    %370 = arith.mulf %367, %369 : vector<16x32xf32>
    %c0_131 = arith.constant 0 : index
    %c0_132 = arith.constant 0 : index
    %371 = vector.load %arg21[%c0_131, %c0_132] : memref<1x32xf32, #tpu.memory_space<vmem>>, vector<1x32xf32>
    %372 = vector.broadcast %371 : vector<1x32xf32> to vector<16x32xf32>
    %373 = arith.addf %370, %372 : vector<16x32xf32>
    %cst_133 = arith.constant 0.000000e+00 : f32
    %374 = vector.broadcast %cst_133 : f32 to vector<16x32xf32>
    %375 = arith.maximumf %373, %374 : vector<16x32xf32>
    %c0_134 = arith.constant 0 : index
    %c0_135 = arith.constant 0 : index
    %376 = vector.load %arg23[%c0_134, %c0_135] : memref<16x32xf32, #tpu.memory_space<vmem>>, vector<16x32xf32>
    tpu.vector_store %arg23[%c0_134, %c0_135], %375 {strides = array<i32>} : memref<16x32xf32, #tpu.memory_space<vmem>>, vector<16x32xf32>,
    %c0_136 = arith.constant 0 : index
    %c0_137 = arith.constant 0 : index
    %377 = vector.load %arg22[%c0_136, %c0_137] : memref<32x1xf32, #tpu.memory_space<vmem>>, vector<32x1xf32>
    %cst_138 = arith.constant dense<0.000000e+00> : vector<16x1xf32>
    %378 = tpu.matmul %375, %377, %cst_138 {dimension_numbers = #tpu.dot_dimension_numbers<[1], [0], [0], [1], [0, 0, 1, 1], [], []>} : vector<16x32xf32>, vector<32x1xf32>, vector<16x1xf32> -> vector<16x1xf32>
    %379 = math.tanh %378 : vector<16x1xf32>
    %c0_139 = arith.constant 0 : index
    %c0_140 = arith.constant 0 : index
    %380 = vector.load %arg24[%c0_139, %c0_140] : memref<16x1xf32, #tpu.memory_space<vmem>>, vector<16x1xf32>
    tpu.vector_store %arg24[%c0_139, %c0_140], %379 {strides = array<i32>} : memref<16x1xf32, #tpu.memory_space<vmem>>, vector<16x1xf32>,
    return
  }
}

module attributes {stable_mosaic.version = 11 : i64} {
  func.func @_pool_cls_kernel(%arg0: memref<16x32xf32, #tpu.memory_space<vmem>>, %arg1: memref<2x16xf32, #tpu.memory_space<vmem>>, %arg2: memref<16x1xf32, #tpu.memory_space<vmem>>, %arg3: memref<16x1xf32, #tpu.memory_space<vmem>>, %arg4: memref<2x1xf32, #tpu.memory_space<vmem>>, %arg5: memref<32x64xf32, #tpu.memory_space<vmem>>, %arg6: memref<32x64xf32, #tpu.memory_space<vmem>>, %arg7: memref<32x64xf32, #tpu.memory_space<vmem>>, %arg8: memref<32x64xf32, #tpu.memory_space<vmem>>, %arg9: memref<1x64xf32, #tpu.memory_space<vmem>>, %arg10: memref<64x32xf32, #tpu.memory_space<vmem>>, %arg11: memref<1x32xf32, #tpu.memory_space<vmem>>, %arg12: memref<32x2xf32, #tpu.memory_space<vmem>>, %arg13: memref<1x2xf32, #tpu.memory_space<vmem>>, %arg14: memref<2x2xf32, #tpu.memory_space<vmem>>) attributes {dimension_semantics = [], scalar_prefetch = 0 : i64, scratch_operands = 0 : i64, tpu.core_type = #tpu.core_type<tc>} {
    %c0 = arith.constant 0 : index
    %c0_0 = arith.constant 0 : index
    %0 = vector.load %arg0[%c0, %c0_0] : memref<16x32xf32, #tpu.memory_space<vmem>>, vector<16x32xf32>
    %c0_1 = arith.constant 0 : index
    %c0_2 = arith.constant 0 : index
    %1 = vector.load %arg1[%c0_1, %c0_2] : memref<2x16xf32, #tpu.memory_space<vmem>>, vector<2x16xf32>
    %c0_3 = arith.constant 0 : index
    %c0_4 = arith.constant 0 : index
    %2 = vector.load %arg2[%c0_3, %c0_4] : memref<16x1xf32, #tpu.memory_space<vmem>>, vector<16x1xf32>
    %c0_5 = arith.constant 0 : index
    %c0_6 = arith.constant 0 : index
    %3 = vector.load %arg3[%c0_5, %c0_6] : memref<16x1xf32, #tpu.memory_space<vmem>>, vector<16x1xf32>
    %c0_7 = arith.constant 0 : index
    %c0_8 = arith.constant 0 : index
    %4 = vector.load %arg4[%c0_7, %c0_8] : memref<2x1xf32, #tpu.memory_space<vmem>>, vector<2x1xf32>
    %cst = arith.constant dense<0.000000e+00> : vector<2x32xf32>
    %5 = tpu.matmul %1, %0, %cst {dimension_numbers = #tpu.dot_dimension_numbers<[1], [0], [0], [1], [0, 0, 1, 1], [], []>} : vector<2x16xf32>, vector<16x32xf32>, vector<2x32xf32> -> vector<2x32xf32>
    %6 = vector.broadcast %4 : vector<2x1xf32> to vector<2x32xf32>
    %7 = arith.mulf %5, %6 : vector<2x32xf32>
    %8 = arith.mulf %2, %3 : vector<16x1xf32>
    %9 = vector.broadcast %8 : vector<16x1xf32> to vector<16x32xf32>
    %10 = arith.mulf %0, %9 : vector<16x32xf32>
    %cst_9 = arith.constant dense<0.000000e+00> : vector<2x32xf32>
    %11 = tpu.matmul %1, %10, %cst_9 {dimension_numbers = #tpu.dot_dimension_numbers<[1], [0], [0], [1], [0, 0, 1, 1], [], []>} : vector<2x16xf32>, vector<16x32xf32>, vector<2x32xf32> -> vector<2x32xf32>
    %cst_10 = arith.constant dense<0.000000e+00> : vector<2x1xf32>
    %12 = tpu.matmul %1, %2, %cst_10 {dimension_numbers = #tpu.dot_dimension_numbers<[1], [0], [0], [1], [0, 0, 1, 1], [], []>} : vector<2x16xf32>, vector<16x1xf32>, vector<2x1xf32> -> vector<2x1xf32>
    %13 = vector.broadcast %12 : vector<2x1xf32> to vector<2x32xf32>
    %14 = arith.divf %11, %13 : vector<2x32xf32>
    %15 = vector.shape_cast %0 : vector<16x32xf32> to vector<2x8x32xf32>
    %cst_11 = arith.constant dense<0xFF800000> : vector<2x32xf32>
    %16 = vector.multi_reduction <maximumf>, %15, %cst_11 [1] : vector<2x8x32xf32> to vector<2x32xf32>
    %c0_12 = arith.constant 0 : index
    %c0_13 = arith.constant 0 : index
    %17 = vector.load %arg5[%c0_12, %c0_13] : memref<32x64xf32, #tpu.memory_space<vmem>>, vector<32x64xf32>
    %cst_14 = arith.constant dense<0.000000e+00> : vector<2x64xf32>
    %18 = tpu.matmul %16, %17, %cst_14 {dimension_numbers = #tpu.dot_dimension_numbers<[1], [0], [0], [1], [0, 0, 1, 1], [], []>} : vector<2x32xf32>, vector<32x64xf32>, vector<2x64xf32> -> vector<2x64xf32>
    %c0_15 = arith.constant 0 : index
    %c0_16 = arith.constant 0 : index
    %19 = vector.load %arg6[%c0_15, %c0_16] : memref<32x64xf32, #tpu.memory_space<vmem>>, vector<32x64xf32>
    %cst_17 = arith.constant dense<0.000000e+00> : vector<2x64xf32>
    %20 = tpu.matmul %7, %19, %cst_17 {dimension_numbers = #tpu.dot_dimension_numbers<[1], [0], [0], [1], [0, 0, 1, 1], [], []>} : vector<2x32xf32>, vector<32x64xf32>, vector<2x64xf32> -> vector<2x64xf32>
    %21 = arith.addf %18, %20 : vector<2x64xf32>
    %c0_18 = arith.constant 0 : index
    %c0_19 = arith.constant 0 : index
    %22 = vector.load %arg7[%c0_18, %c0_19] : memref<32x64xf32, #tpu.memory_space<vmem>>, vector<32x64xf32>
    %cst_20 = arith.constant dense<0.000000e+00> : vector<2x64xf32>
    %23 = tpu.matmul %5, %22, %cst_20 {dimension_numbers = #tpu.dot_dimension_numbers<[1], [0], [0], [1], [0, 0, 1, 1], [], []>} : vector<2x32xf32>, vector<32x64xf32>, vector<2x64xf32> -> vector<2x64xf32>
    %24 = arith.addf %21, %23 : vector<2x64xf32>
    %c0_21 = arith.constant 0 : index
    %c0_22 = arith.constant 0 : index
    %25 = vector.load %arg8[%c0_21, %c0_22] : memref<32x64xf32, #tpu.memory_space<vmem>>, vector<32x64xf32>
    %cst_23 = arith.constant dense<0.000000e+00> : vector<2x64xf32>
    %26 = tpu.matmul %14, %25, %cst_23 {dimension_numbers = #tpu.dot_dimension_numbers<[1], [0], [0], [1], [0, 0, 1, 1], [], []>} : vector<2x32xf32>, vector<32x64xf32>, vector<2x64xf32> -> vector<2x64xf32>
    %27 = arith.addf %24, %26 : vector<2x64xf32>
    %c0_24 = arith.constant 0 : index
    %c0_25 = arith.constant 0 : index
    %28 = vector.load %arg9[%c0_24, %c0_25] : memref<1x64xf32, #tpu.memory_space<vmem>>, vector<1x64xf32>
    %29 = vector.broadcast %28 : vector<1x64xf32> to vector<2x64xf32>
    %30 = arith.addf %27, %29 : vector<2x64xf32>
    %cst_26 = arith.constant 0.000000e+00 : f32
    %31 = vector.broadcast %cst_26 : f32 to vector<2x64xf32>
    %32 = arith.maximumf %30, %31 : vector<2x64xf32>
    %c0_27 = arith.constant 0 : index
    %c0_28 = arith.constant 0 : index
    %33 = vector.load %arg10[%c0_27, %c0_28] : memref<64x32xf32, #tpu.memory_space<vmem>>, vector<64x32xf32>
    %cst_29 = arith.constant dense<0.000000e+00> : vector<2x32xf32>
    %34 = tpu.matmul %32, %33, %cst_29 {dimension_numbers = #tpu.dot_dimension_numbers<[1], [0], [0], [1], [0, 0, 1, 1], [], []>} : vector<2x64xf32>, vector<64x32xf32>, vector<2x32xf32> -> vector<2x32xf32>
    %c0_30 = arith.constant 0 : index
    %c0_31 = arith.constant 0 : index
    %35 = vector.load %arg11[%c0_30, %c0_31] : memref<1x32xf32, #tpu.memory_space<vmem>>, vector<1x32xf32>
    %36 = vector.broadcast %35 : vector<1x32xf32> to vector<2x32xf32>
    %37 = arith.addf %34, %36 : vector<2x32xf32>
    %cst_32 = arith.constant 0.000000e+00 : f32
    %38 = vector.broadcast %cst_32 : f32 to vector<2x32xf32>
    %39 = arith.maximumf %37, %38 : vector<2x32xf32>
    %c0_33 = arith.constant 0 : index
    %c0_34 = arith.constant 0 : index
    %40 = vector.load %arg12[%c0_33, %c0_34] : memref<32x2xf32, #tpu.memory_space<vmem>>, vector<32x2xf32>
    %cst_35 = arith.constant dense<0.000000e+00> : vector<2x2xf32>
    %41 = tpu.matmul %39, %40, %cst_35 {dimension_numbers = #tpu.dot_dimension_numbers<[1], [0], [0], [1], [0, 0, 1, 1], [], []>} : vector<2x32xf32>, vector<32x2xf32>, vector<2x2xf32> -> vector<2x2xf32>
    %c0_36 = arith.constant 0 : index
    %c0_37 = arith.constant 0 : index
    %42 = vector.load %arg13[%c0_36, %c0_37] : memref<1x2xf32, #tpu.memory_space<vmem>>, vector<1x2xf32>
    %43 = vector.broadcast %42 : vector<1x2xf32> to vector<2x2xf32>
    %44 = arith.addf %41, %43 : vector<2x2xf32>
    %c0_38 = arith.constant 0 : index
    %c0_39 = arith.constant 0 : index
    %45 = vector.load %arg14[%c0_38, %c0_39] : memref<2x2xf32, #tpu.memory_space<vmem>>, vector<2x2xf32>
    tpu.vector_store %arg14[%c0_38, %c0_39], %44 {strides = array<i32>} : memref<2x2xf32, #tpu.memory_space<vmem>>, vector<2x2xf32>,
    return
  }
}

</mosaic_0001>

<llo_original>
// kernel: single_gat_forward.3
$region0: #{single_gat_forward.3}
  #allocation0 [shape = 'u32[]', space=smem, size = 0x4, offset = 0x4, fixed_abs, tag = 'smem constant byte address 0x4 - core index']
  #allocation1 [shape = 'u32[144,128]{1,0:T(1,128)}', space=vmem, size = 0x12000, scoped, tag = 'internal scratch']
  %s0 = inlined_call_operand.vmem [shape: f32[16,32], index: 0, kind: input, shape index: {}]
  %s1 = inlined_call_operand.vmem [shape: f32[2,16], index: 1, kind: input, shape index: {}]
  %s2 = inlined_call_operand.vmem [shape: f32[16,1], index: 2, kind: input, shape index: {}]
  %s3 = inlined_call_operand.vmem [shape: f32[16,1], index: 3, kind: input, shape index: {}]
  %s4 = inlined_call_operand.vmem [shape: f32[2,1], index: 4, kind: input, shape index: {}]
  %s5 = inlined_call_operand.vmem [shape: f32[32,64], index: 5, kind: input, shape index: {}]
  %s6 = inlined_call_operand.vmem [shape: f32[32,64], index: 6, kind: input, shape index: {}]
  %s7 = inlined_call_operand.vmem [shape: f32[32,64], index: 7, kind: input, shape index: {}]
  %s8 = inlined_call_operand.vmem [shape: f32[32,64], index: 8, kind: input, shape index: {}]
  %s9 = inlined_call_operand.vmem [shape: f32[1,64], index: 9, kind: input, shape index: {}]
  %s10 = inlined_call_operand.vmem [shape: f32[64,32], index: 10, kind: input, shape index: {}]
  %s11 = inlined_call_operand.vmem [shape: f32[1,32], index: 11, kind: input, shape index: {}]
  %s12 = inlined_call_operand.vmem [shape: f32[32,2], index: 12, kind: input, shape index: {}]
  %s13 = inlined_call_operand.vmem [shape: f32[1,2], index: 13, kind: input, shape index: {}]
  %s14 = inlined_call_operand.hbm [shape: f32[2,2], index: 14, kind: output, shape index: {}]
  %s15 = sld [smem:[#allocation0]]
  $region66: #{single_gat_forward.3} parent=0
    _
  %s17 = ssub.s32 1, %s15
  %s18 = scalar_select 0, %s17, %s15
  $region1: #{single_gat_forward.3} parent=0
    #allocation2 [shape = 'u8[1024]{0}', space=vmem, size = 0x400, scoped, tag = 'output window, operand 0, single buffered']
    #allocation3 [shape = 's32[1]{0}', space=sflag, size = 0x4, scoped, tag = 'scoped memory for single_gat_forward.3']
    %19 = vsyncpa [#allocation3], 0
    // Predicated region
    $region2: #{single_gat_forward.3} parent=1 // pred_check
      _
    $region3: #{single_gat_forward.3} parent=1 // pred_check_branch
      %21 = sbr.rel (0) target = $region5
    $region4: #{single_gat_forward.3} parent=1 // pred_region
      _
    $region5: #{single_gat_forward.3} parent=1 // pred_fallthru
      _
    // Predicated region
    $region6: #{single_gat_forward.3} parent=1 // pred_check
      _
    $region7: #{single_gat_forward.3} parent=1 // pred_check_branch
      %23 = sbr.rel (0) target = $region9
    $region8: #{single_gat_forward.3} parent=1 // pred_region
      _
    $region9: #{single_gat_forward.3} parent=1 // pred_fallthru
      _
    // Predicated region
    $region10: #{single_gat_forward.3} parent=1 // pred_check
      _
    $region11: #{single_gat_forward.3} parent=1 // pred_check_branch
      %25 = sbr.rel (0) target = $region13
    $region12: #{single_gat_forward.3} parent=1 // pred_region
      _
    $region13: #{single_gat_forward.3} parent=1 // pred_fallthru
      _
    // Predicated region
    $region14: #{single_gat_forward.3} parent=1 // pred_check
      _
    $region15: #{single_gat_forward.3} parent=1 // pred_check_branch
      %27 = sbr.rel (0) target = $region17
    $region16: #{single_gat_forward.3} parent=1 // pred_region
      _
    $region17: #{single_gat_forward.3} parent=1 // pred_fallthru
      _
    // Predicated region
    $region18: #{single_gat_forward.3} parent=1 // pred_check
      _
    $region19: #{single_gat_forward.3} parent=1 // pred_check_branch
      %29 = sbr.rel (0) target = $region21
    $region20: #{single_gat_forward.3} parent=1 // pred_region
      _
    $region21: #{single_gat_forward.3} parent=1 // pred_fallthru
      _
    // Predicated region
    $region22: #{single_gat_forward.3} parent=1 // pred_check
      _
    $region23: #{single_gat_forward.3} parent=1 // pred_check_branch
      %31 = sbr.rel (0) target = $region25
    $region24: #{single_gat_forward.3} parent=1 // pred_region
      _
    $region25: #{single_gat_forward.3} parent=1 // pred_fallthru
      _
    // Predicated region
    $region26: #{single_gat_forward.3} parent=1 // pred_check
      _
    $region27: #{single_gat_forward.3} parent=1 // pred_check_branch
      %33 = sbr.rel (0) target = $region29
    $region28: #{single_gat_forward.3} parent=1 // pred_region
      _
    $region29: #{single_gat_forward.3} parent=1 // pred_fallthru
      _
    // Predicated region
    $region30: #{single_gat_forward.3} parent=1 // pred_check
      _
    $region31: #{single_gat_forward.3} parent=1 // pred_check_branch
      %35 = sbr.rel (0) target = $region33
    $region32: #{single_gat_forward.3} parent=1 // pred_region
      _
    $region33: #{single_gat_forward.3} parent=1 // pred_fallthru
      _
    // Predicated region
    $region34: #{single_gat_forward.3} parent=1 // pred_check
      _
    $region35: #{single_gat_forward.3} parent=1 // pred_check_branch
      %37 = sbr.rel (0) target = $region37
    $region36: #{single_gat_forward.3} parent=1 // pred_region
      _
    $region37: #{single_gat_forward.3} parent=1 // pred_fallthru
      _
    // Predicated region
    $region38: #{single_gat_forward.3} parent=1 // pred_check
      _
    $region39: #{single_gat_forward.3} parent=1 // pred_check_branch
      %39 = sbr.rel (0) target = $region41
    $region40: #{single_gat_forward.3} parent=1 // pred_region
      _
    $region41: #{single_gat_forward.3} parent=1 // pred_fallthru
      _
    // Predicated region
    $region42: #{single_gat_forward.3} parent=1 // pred_check
      _
    $region43: #{single_gat_forward.3} parent=1 // pred_check_branch
      %41 = sbr.rel (0) target = $region45
    $region44: #{single_gat_forward.3} parent=1 // pred_region
      _
    $region45: #{single_gat_forward.3} parent=1 // pred_fallthru
      _
    // Predicated region
    $region46: #{single_gat_forward.3} parent=1 // pred_check
      _
    $region47: #{single_gat_forward.3} parent=1 // pred_check_branch
      %43 = sbr.rel (0) target = $region49
    $region48: #{single_gat_forward.3} parent=1 // pred_region
      _
    $region49: #{single_gat_forward.3} parent=1 // pred_fallthru
      _
    // Predicated region
    $region50: #{single_gat_forward.3} parent=1 // pred_check
      _
    $region51: #{single_gat_forward.3} parent=1 // pred_check_branch
      %45 = sbr.rel (0) target = $region53
    $region52: #{single_gat_forward.3} parent=1 // pred_region
      _
    $region53: #{single_gat_forward.3} parent=1 // pred_fallthru
      _
    // Predicated region
    $region54: #{single_gat_forward.3} parent=1 // pred_check
      _
    $region55: #{single_gat_forward.3} parent=1 // pred_check_branch
      %47 = sbr.rel (0) target = $region57
    $region56: #{single_gat_forward.3} parent=1 // pred_region
      _
    $region57: #{single_gat_forward.3} parent=1 // pred_fallthru
      _
    %v48 = vld [vmem:[%s0] sm:$0xff]
    %v49 = vld [vmem:[%s0 + $0x8] sm:$0xff]
    %v50 = vld [vmem:[%s1] sm:$0x3]
    %v51 = vld [vmem:[%s2] sm:$0xff]
    %v52 = vld [vmem:[%s2 + $0x8] sm:$0xff]
    %v53 = vld [vmem:[%s3] sm:$0xff]
    %v54 = vld [vmem:[%s3 + $0x8] sm:$0xff]
    %v55 = vld [vmem:[%s4] sm:$0x3]
    %vm56 = vcmask 130048
    %v58 = vsel %vm56, %v50, 0
    %60 = vmatprep.subr.mxu0 0.0
    %61 = vmatpush1.msra.mxu0 0.0
    %62 = vmatprep.subr.mxu0 0.0
    %63 = vmatpush1.msra.mxu0 0.0
    %64 = vmatprep.subr.mxu0 0.0
    %65 = vmatpush1.msra.mxu0 0.0
    %66 = vmatprep.subr.mxu0 0.0
    %67 = vmatpush1.msra.mxu0 0.0
    %68 = vmatprep.subr.mxu0 0.0
    %69 = vmatpush1.msra.mxu0 0.0
    %70 = vmatprep.subr.mxu0 0.0
    %71 = vmatpush1.msra.mxu0 0.0
    %72 = vmatprep.subr.mxu0 0.0
    %73 = vmatpush1.msra.mxu0 0.0
    %74 = vmatprep.subr.mxu0 0.0
    %75 = vmatpush1.msra.mxu0 0.0
    %76 = vmatprep.subr.mxu0 0.0
    %77 = vmatpush1.msra.mxu0 0.0
    %78 = vmatprep.subr.mxu0 0.0
    %79 = vmatpush1.msra.mxu0 0.0
    %80 = vmatprep.subr.mxu0 0.0
    %81 = vmatpush1.msra.mxu0 0.0
    %82 = vmatprep.subr.mxu0 0.0
    %83 = vmatpush1.msra.mxu0 0.0
    %84 = vmatprep.subr.mxu0 0.0
    %85 = vmatpush1.msra.mxu0 0.0
    %86 = vmatprep.subr.mxu0 0.0
    %87 = vmatpush1.msra.mxu0 0.0
    %88 = vmatprep.subr.mxu0 0.0
    %89 = vmatpush1.msra.mxu0 %v49
    %90 = vmatprep.subr.mxu0 0.0
    %91 = vmatpush1.msra.mxu0 %v48
    %92 = vmatprep.subr.mxu0 0.0
    %93 = vmatpush2.msra.mxu0 0.0
    %94 = vmatprep.subr.mxu0 0.0
    %95 = vmatpush2.msra.mxu0 0.0
    %96 = vmatprep.subr.mxu0 0.0
    %97 = vmatpush2.msra.mxu0 0.0
    %98 = vmatprep.subr.mxu0 0.0
    %99 = vmatpush2.msra.mxu0 0.0
    %100 = vmatprep.subr.mxu0 0.0
    %101 = vmatpush2.msra.mxu0 0.0
    %102 = vmatprep.subr.mxu0 0.0
    %103 = vmatpush2.msra.mxu0 0.0
    %104 = vmatprep.subr.mxu0 0.0
    %105 = vmatpush2.msra.mxu0 0.0
    %106 = vmatprep.subr.mxu0 0.0
    %107 = vmatpush2.msra.mxu0 0.0
    %108 = vmatprep.subr.mxu0 0.0
    %109 = vmatpush2.msra.mxu0 0.0
    %110 = vmatprep.subr.mxu0 0.0
    %111 = vmatpush2.msra.mxu0 0.0
    %112 = vmatprep.subr.mxu0 0.0
    %113 = vmatpush2.msra.mxu0 0.0
    %114 = vmatprep.subr.mxu0 0.0
    %115 = vmatpush2.msra.mxu0 0.0
    %116 = vmatprep.subr.mxu0 0.0
    %117 = vmatpush2.msra.mxu0 0.0
    %118 = vmatprep.subr.mxu0 0.0
    %119 = vmatpush2.msra.mxu0 0.0
    %120 = vmatprep.subr.mxu0 0.0
    %121 = vmatpush2.msra.mxu0 0.0
    %122 = vmatprep.subr.mxu0 0.0
    %123 = vmatpush2.msra.mxu0 0.0
    %124 = vmatprep.mubr.f32.mxu0 0.0
    %125 = vmatmul.mubr.f32.gmra.mxu0 %v58
    %v126 = vpop.f32.mrf.mxu0
    %v127 = vadd.f32 0.0, %v126
    %v128 = vpop.f32.mrf.mxu0
    %129 = vdwg.mxu0
    %131 = vset.pattern.permute.xlu0 0
    %132 = vperm.xlu0 %131, %v55
    %v133 = vpop.permute.xlu0 %132
    %v135 = vmul.f32 %v127, %v133
    %v136 = vmul.f32 %v51, %v53
    %v137 = vmul.f32 %v52, %v54
    %139 = vset.pattern.permute.xlu0 0
    %140 = vperm.xlu0 %139, %v136
    %v141 = vpop.permute.xlu0 %140
    %144 = vset.pattern.permute.xlu0 0
    %145 = vperm.xlu0 %144, %v137
    %v146 = vpop.permute.xlu0 %145
    %v148 = vmul.f32 %v48, %v141
    %v149 = vmul.f32 %v49, %v146
    %150 = vmatprep.subr.mxu0 0.0
    %151 = vmatpush1.msra.mxu0 0.0
    %152 = vmatprep.subr.mxu0 0.0
    %153 = vmatpush1.msra.mxu0 0.0
    %154 = vmatprep.subr.mxu0 0.0
    %155 = vmatpush1.msra.mxu0 0.0
    %156 = vmatprep.subr.mxu0 0.0
    %157 = vmatpush1.msra.mxu0 0.0
    %158 = vmatprep.subr.mxu0 0.0
    %159 = vmatpush1.msra.mxu0 0.0
    %160 = vmatprep.subr.mxu0 0.0
    %161 = vmatpush1.msra.mxu0 0.0
    %162 = vmatprep.subr.mxu0 0.0
    %163 = vmatpush1.msra.mxu0 0.0
    %164 = vmatprep.subr.mxu0 0.0
    %165 = vmatpush1.msra.mxu0 0.0
    %166 = vmatprep.subr.mxu0 0.0
    %167 = vmatpush1.msra.mxu0 0.0
    %168 = vmatprep.subr.mxu0 0.0
    %169 = vmatpush1.msra.mxu0 0.0
    %170 = vmatprep.subr.mxu0 0.0
    %171 = vmatpush1.msra.mxu0 0.0
    %172 = vmatprep.subr.mxu0 0.0
    %173 = vmatpush1.msra.mxu0 0.0
    %174 = vmatprep.subr.mxu0 0.0
    %175 = vmatpush1.msra.mxu0 0.0
    %176 = vmatprep.subr.mxu0 0.0
    %177 = vmatpush1.msra.mxu0 0.0
    %178 = vmatprep.subr.mxu0 0.0
    %179 = vmatpush1.msra.mxu0 %v149
    %180 = vmatprep.subr.mxu0 0.0
    %181 = vmatpush1.msra.mxu0 %v148
    %182 = vmatprep.subr.mxu0 0.0
    %183 = vmatpush2.msra.mxu0 0.0
    %184 = vmatprep.subr.mxu0 0.0
    %185 = vmatpush2.msra.mxu0 0.0
    %186 = vmatprep.subr.mxu0 0.0
    %187 = vmatpush2.msra.mxu0 0.0
    %188 = vmatprep.subr.mxu0 0.0
    %189 = vmatpush2.msra.mxu0 0.0
    %190 = vmatprep.subr.mxu0 0.0
    %191 = vmatpush2.msra.mxu0 0.0
    %192 = vmatprep.subr.mxu0 0.0
    %193 = vmatpush2.msra.mxu0 0.0
    %194 = vmatprep.subr.mxu0 0.0
    %195 = vmatpush2.msra.mxu0 0.0
    %196 = vmatprep.subr.mxu0 0.0
    %197 = vmatpush2.msra.mxu0 0.0
    %198 = vmatprep.subr.mxu0 0.0
    %199 = vmatpush2.msra.mxu0 0.0
    %200 = vmatprep.subr.mxu0 0.0
    %201 = vmatpush2.msra.mxu0 0.0
    %202 = vmatprep.subr.mxu0 0.0
    %203 = vmatpush2.msra.mxu0 0.0
    %204 = vmatprep.subr.mxu0 0.0
    %205 = vmatpush2.msra.mxu0 0.0
    %206 = vmatprep.subr.mxu0 0.0
    %207 = vmatpush2.msra.mxu0 0.0
    %208 = vmatprep.subr.mxu0 0.0
    %209 = vmatpush2.msra.mxu0 0.0
    %210 = vmatprep.subr.mxu0 0.0
    %211 = vmatpush2.msra.mxu0 0.0
    %212 = vmatprep.subr.mxu0 0.0
    %213 = vmatpush2.msra.mxu0 0.0
    %214 = vmatprep.mubr.f32.mxu0 0.0
    %215 = vmatmul.mubr.f32.gmra.mxu0 %v58
    %v216 = vpop.f32.mrf.mxu0
    %v217 = vadd.f32 0.0, %v216
    %v218 = vpop.f32.mrf.mxu0
    %219 = vdwg.mxu0
    %220 = vmatprep.subr.mxu0 0.0
    %221 = vmatpush1.msra.mxu0 0.0
    %222 = vmatprep.subr.mxu0 0.0
    %223 = vmatpush1.msra.mxu0 0.0
    %224 = vmatprep.subr.mxu0 0.0
    %225 = vmatpush1.msra.mxu0 0.0
    %226 = vmatprep.subr.mxu0 0.0
    %227 = vmatpush1.msra.mxu0 0.0
    %228 = vmatprep.subr.mxu0 0.0
    %229 = vmatpush1.msra.mxu0 0.0
    %230 = vmatprep.subr.mxu0 0.0
    %231 = vmatpush1.msra.mxu0 0.0
    %232 = vmatprep.subr.mxu0 0.0
    %233 = vmatpush1.msra.mxu0 0.0
    %234 = vmatprep.subr.mxu0 0.0
    %235 = vmatpush1.msra.mxu0 0.0
    %236 = vmatprep.subr.mxu0 0.0
    %237 = vmatpush1.msra.mxu0 0.0
    %238 = vmatprep.subr.mxu0 0.0
    %239 = vmatpush1.msra.mxu0 0.0
    %240 = vmatprep.subr.mxu0 0.0
    %241 = vmatpush1.msra.mxu0 0.0
    %242 = vmatprep.subr.mxu0 0.0
    %243 = vmatpush1.msra.mxu0 0.0
    %244 = vmatprep.subr.mxu0 0.0
    %245 = vmatpush1.msra.mxu0 0.0
    %246 = vmatprep.subr.mxu0 0.0
    %247 = vmatpush1.msra.mxu0 0.0
    %248 = vmatprep.subr.mxu0 0.0
    %249 = vmatpush1.msra.mxu0 %v52
    %250 = vmatprep.subr.mxu0 0.0
    %251 = vmatpush1.msra.mxu0 %v51
    %252 = vmatprep.subr.mxu0 0.0
    %253 = vmatpush2.msra.mxu0 0.0
    %254 = vmatprep.subr.mxu0 0.0
    %255 = vmatpush2.msra.mxu0 0.0
    %256 = vmatprep.subr.mxu0 0.0
    %257 = vmatpush2.msra.mxu0 0.0
    %258 = vmatprep.subr.mxu0 0.0
    %259 = vmatpush2.msra.mxu0 0.0
    %260 = vmatprep.subr.mxu0 0.0
    %261 = vmatpush2.msra.mxu0 0.0
    %262 = vmatprep.subr.mxu0 0.0
    %263 = vmatpush2.msra.mxu0 0.0
    %264 = vmatprep.subr.mxu0 0.0
    %265 = vmatpush2.msra.mxu0 0.0
    %266 = vmatprep.subr.mxu0 0.0
    %267 = vmatpush2.msra.mxu0 0.0
    %268 = vmatprep.subr.mxu0 0.0
    %269 = vmatpush2.msra.mxu0 0.0
    %270 = vmatprep.subr.mxu0 0.0
    %271 = vmatpush2.msra.mxu0 0.0
    %272 = vmatprep.subr.mxu0 0.0
    %273 = vmatpush2.msra.mxu0 0.0
    %274 = vmatprep.subr.mxu0 0.0
    %275 = vmatpush2.msra.mxu0 0.0
    %276 = vmatprep.subr.mxu0 0.0
    %277 = vmatpush2.msra.mxu0 0.0
    %278 = vmatprep.subr.mxu0 0.0
    %279 = vmatpush2.msra.mxu0 0.0
    %280 = vmatprep.subr.mxu0 0.0
    %281 = vmatpush2.msra.mxu0 0.0
    %282 = vmatprep.subr.mxu0 0.0
    %283 = vmatpush2.msra.mxu0 0.0
    %284 = vmatprep.mubr.f32.mxu0 0.0
    %285 = vmatmul.mubr.f32.gmra.mxu0 %v58
    %v286 = vpop.f32.mrf.mxu0
    %v287 = vadd.f32 0.0, %v286
    %v288 = vpop.f32.mrf.mxu0
    %289 = vdwg.mxu0
    %291 = vset.pattern.permute.xlu0 0
    %292 = vperm.xlu0 %291, %v287
    %v293 = vpop.permute.xlu0 %292
    %v295 = vrcp.pop %v293
    %v296 = vmul.f32 %v217, %v295
    %vm297 = vcmask 261120
    %v298 = vsel %vm297, %v48, -inf
    %v299 = vrot.slane %v298, 4
    %v300 = vmax.f32 %v298, %v299
    %v301 = vrot.slane %v300, 2
    %v302 = vmax.f32 %v300, %v301
    %v303 = vrot.slane %v302, 1
    %v304 = vmax.f32 %v302, %v303
    %v305 = vsel %vm297, %v49, -inf
    %v306 = vrot.slane %v305, 4
    %v307 = vmax.f32 %v305, %v306
    %v308 = vrot.slane %v307, 2
    %v309 = vmax.f32 %v307, %v308
    %v310 = vrot.slane %v309, 1
    %v311 = vmax.f32 %v309, %v310
    %v312 = vld [vmem:[%s5] sm:$0xff]
    %v313 = vld [vmem:[%s5 + $0x8] sm:$0xff]
    %v314 = vld [vmem:[%s5 + $0x10] sm:$0xff]
    %v315 = vld [vmem:[%s5 + $0x18] sm:$0xff]
    %v316 = vld [vmem:[%s6] sm:$0xff]
    %v317 = vld [vmem:[%s6 + $0x8] sm:$0xff]
    %v318 = vld [vmem:[%s6 + $0x10] sm:$0xff]
    %v319 = vld [vmem:[%s6 + $0x18] sm:$0xff]
    %v321 = vsel %vm297, %v135, 0
    %323 = vmatprep.subr.mxu0 0.0
    %324 = vmatpush1.msra.mxu0 0.0
    %325 = vmatprep.subr.mxu0 0.0
    %326 = vmatpush1.msra.mxu0 0.0
    %327 = vmatprep.subr.mxu0 0.0
    %328 = vmatpush1.msra.mxu0 0.0
    %329 = vmatprep.subr.mxu0 0.0
    %330 = vmatpush1.msra.mxu0 0.0
    %331 = vmatprep.subr.mxu0 0.0
    %332 = vmatpush1.msra.mxu0 0.0
    %333 = vmatprep.subr.mxu0 0.0
    %334 = vmatpush1.msra.mxu0 0.0
    %335 = vmatprep.subr.mxu0 0.0
    %336 = vmatpush1.msra.mxu0 0.0
    %337 = vmatprep.subr.mxu0 0.0
    %338 = vmatpush1.msra.mxu0 0.0
    %339 = vmatprep.subr.mxu0 0.0
    %340 = vmatpush1.msra.mxu0 0.0
    %341 = vmatprep.subr.mxu0 0.0
    %342 = vmatpush1.msra.mxu0 0.0
    %343 = vmatprep.subr.mxu0 0.0
    %344 = vmatpush1.msra.mxu0 0.0
    %345 = vmatprep.subr.mxu0 0.0
    %346 = vmatpush1.msra.mxu0 0.0
    %347 = vmatprep.subr.mxu0 0.0
    %348 = vmatpush1.msra.mxu0 %v319
    %349 = vmatprep.subr.mxu0 0.0
    %350 = vmatpush1.msra.mxu0 %v318
    %351 = vmatprep.subr.mxu0 0.0
    %352 = vmatpush1.msra.mxu0 %v317
    %353 = vmatprep.subr.mxu0 0.0
    %354 = vmatpush1.msra.mxu0 %v316
    %355 = vmatprep.subr.mxu0 0.0
    %356 = vmatpush2.msra.mxu0 0.0
    %357 = vmatprep.subr.mxu0 0.0
    %358 = vmatpush2.msra.mxu0 0.0
    %359 = vmatprep.subr.mxu0 0.0
    %360 = vmatpush2.msra.mxu0 0.0
    %361 = vmatprep.subr.mxu0 0.0
    %362 = vmatpush2.msra.mxu0 0.0
    %363 = vmatprep.subr.mxu0 0.0
    %364 = vmatpush2.msra.mxu0 0.0
    %365 = vmatprep.subr.mxu0 0.0
    %366 = vmatpush2.msra.mxu0 0.0
    %367 = vmatprep.subr.mxu0 0.0
    %368 = vmatpush2.msra.mxu0 0.0
    %369 = vmatprep.subr.mxu0 0.0
    %370 = vmatpush2.msra.mxu0 0.0
    %371 = vmatprep.subr.mxu0 0.0
    %372 = vmatpush2.msra.mxu0 0.0
    %373 = vmatprep.subr.mxu0 0.0
    %374 = vmatpush2.msra.mxu0 0.0
    %375 = vmatprep.subr.mxu0 0.0
    %376 = vmatpush2.msra.mxu0 0.0
    %377 = vmatprep.subr.mxu0 0.0
    %378 = vmatpush2.msra.mxu0 0.0
    %379 = vmatprep.subr.mxu0 0.0
    %380 = vmatpush2.msra.mxu0 0.0
    %381 = vmatprep.subr.mxu0 0.0
    %382 = vmatpush2.msra.mxu0 0.0
    %383 = vmatprep.subr.mxu0 0.0
    %384 = vmatpush2.msra.mxu0 0.0
    %385 = vmatprep.subr.mxu0 0.0
    %386 = vmatpush2.msra.mxu0 0.0
    %387 = vmatprep.mubr.f32.mxu0 0.0
    %388 = vmatmul.mubr.f32.gmra.mxu0 %v321
    %v389 = vpop.f32.mrf.mxu0
    %v390 = vadd.f32 0.0, %v389
    %v391 = vpop.f32.mrf.mxu0
    %392 = vdwg.mxu0
    %vm395 = vcmask 1041409
    %v396 = vsel %vm395, %v311, %v304
    %v397 = vsel %vm297, %v396, 0
    %399 = vmatprep.subr.mxu0 0.0
    %400 = vmatpush1.msra.mxu0 0.0
    %401 = vmatprep.subr.mxu0 0.0
    %402 = vmatpush1.msra.mxu0 0.0
    %403 = vmatprep.subr.mxu0 0.0
    %404 = vmatpush1.msra.mxu0 0.0
    %405 = vmatprep.subr.mxu0 0.0
    %406 = vmatpush1.msra.mxu0 0.0
    %407 = vmatprep.subr.mxu0 0.0
    %408 = vmatpush1.msra.mxu0 0.0
    %409 = vmatprep.subr.mxu0 0.0
    %410 = vmatpush1.msra.mxu0 0.0
    %411 = vmatprep.subr.mxu0 0.0
    %412 = vmatpush1.msra.mxu0 0.0
    %413 = vmatprep.subr.mxu0 0.0
    %414 = vmatpush1.msra.mxu0 0.0
    %415 = vmatprep.subr.mxu0 0.0
    %416 = vmatpush1.msra.mxu0 0.0
    %417 = vmatprep.subr.mxu0 0.0
    %418 = vmatpush1.msra.mxu0 0.0
    %419 = vmatprep.subr.mxu0 0.0
    %420 = vmatpush1.msra.mxu0 0.0
    %421 = vmatprep.subr.mxu0 0.0
    %422 = vmatpush1.msra.mxu0 0.0
    %423 = vmatprep.subr.mxu0 0.0
    %424 = vmatpush1.msra.mxu0 %v315
    %425 = vmatprep.subr.mxu0 0.0
    %426 = vmatpush1.msra.mxu0 %v314
    %427 = vmatprep.subr.mxu0 0.0
    %428 = vmatpush1.msra.mxu0 %v313
    %429 = vmatprep.subr.mxu0 0.0
    %430 = vmatpush1.msra.mxu0 %v312
    %431 = vmatprep.subr.mxu0 0.0
    %432 = vmatpush2.msra.mxu0 0.0
    %433 = vmatprep.subr.mxu0 0.0
    %434 = vmatpush2.msra.mxu0 0.0
    %435 = vmatprep.subr.mxu0 0.0
    %436 = vmatpush2.msra.mxu0 0.0
    %437 = vmatprep.subr.mxu0 0.0
    %438 = vmatpush2.msra.mxu0 0.0
    %439 = vmatprep.subr.mxu0 0.0
    %440 = vmatpush2.msra.mxu0 0.0
    %441 = vmatprep.subr.mxu0 0.0
    %442 = vmatpush2.msra.mxu0 0.0
    %443 = vmatprep.subr.mxu0 0.0
    %444 = vmatpush2.msra.mxu0 0.0
    %445 = vmatprep.subr.mxu0 0.0
    %446 = vmatpush2.msra.mxu0 0.0
    %447 = vmatprep.subr.mxu0 0.0
    %448 = vmatpush2.msra.mxu0 0.0
    %449 = vmatprep.subr.mxu0 0.0
    %450 = vmatpush2.msra.mxu0 0.0
    %451 = vmatprep.subr.mxu0 0.0
    %452 = vmatpush2.msra.mxu0 0.0
    %453 = vmatprep.subr.mxu0 0.0
    %454 = vmatpush2.msra.mxu0 0.0
    %455 = vmatprep.subr.mxu0 0.0
    %456 = vmatpush2.msra.mxu0 0.0
    %457 = vmatprep.subr.mxu0 0.0
    %458 = vmatpush2.msra.mxu0 0.0
    %459 = vmatprep.subr.mxu0 0.0
    %460 = vmatpush2.msra.mxu0 0.0
    %461 = vmatprep.subr.mxu0 0.0
    %462 = vmatpush2.msra.mxu0 0.0
    %463 = vmatprep.mubr.f32.mxu0 0.0
    %464 = vmatmul.mubr.f32.gmra.mxu0 %v397
    %v465 = vpop.f32.mrf.mxu0
    %v466 = vadd.f32 %v390, %v465
    %v467 = vpop.f32.mrf.mxu0
    %468 = vdwg.mxu0
    %v469 = vld [vmem:[%s7] sm:$0xff]
    %v470 = vld [vmem:[%s7 + $0x8] sm:$0xff]
    %v471 = vld [vmem:[%s7 + $0x10] sm:$0xff]
    %v472 = vld [vmem:[%s7 + $0x18] sm:$0xff]
    %v474 = vsel %vm297, %v127, 0
    %476 = vmatprep.subr.mxu0 0.0
    %477 = vmatpush1.msra.mxu0 0.0
    %478 = vmatprep.subr.mxu0 0.0
    %479 = vmatpush1.msra.mxu0 0.0
    %480 = vmatprep.subr.mxu0 0.0
    %481 = vmatpush1.msra.mxu0 0.0
    %482 = vmatprep.subr.mxu0 0.0
    %483 = vmatpush1.msra.mxu0 0.0
    %484 = vmatprep.subr.mxu0 0.0
    %485 = vmatpush1.msra.mxu0 0.0
    %486 = vmatprep.subr.mxu0 0.0
    %487 = vmatpush1.msra.mxu0 0.0
    %488 = vmatprep.subr.mxu0 0.0
    %489 = vmatpush1.msra.mxu0 0.0
    %490 = vmatprep.subr.mxu0 0.0
    %491 = vmatpush1.msra.mxu0 0.0
    %492 = vmatprep.subr.mxu0 0.0
    %493 = vmatpush1.msra.mxu0 0.0
    %494 = vmatprep.subr.mxu0 0.0
    %495 = vmatpush1.msra.mxu0 0.0
    %496 = vmatprep.subr.mxu0 0.0
    %497 = vmatpush1.msra.mxu0 0.0
    %498 = vmatprep.subr.mxu0 0.0
    %499 = vmatpush1.msra.mxu0 0.0
    %500 = vmatprep.subr.mxu0 0.0
    %501 = vmatpush1.msra.mxu0 %v472
    %502 = vmatprep.subr.mxu0 0.0
    %503 = vmatpush1.msra.mxu0 %v471
    %504 = vmatprep.subr.mxu0 0.0
    %505 = vmatpush1.msra.mxu0 %v470
    %506 = vmatprep.subr.mxu0 0.0
    %507 = vmatpush1.msra.mxu0 %v469
    %508 = vmatprep.subr.mxu0 0.0
    %509 = vmatpush2.msra.mxu0 0.0
    %510 = vmatprep.subr.mxu0 0.0
    %511 = vmatpush2.msra.mxu0 0.0
    %512 = vmatprep.subr.mxu0 0.0
    %513 = vmatpush2.msra.mxu0 0.0
    %514 = vmatprep.subr.mxu0 0.0
    %515 = vmatpush2.msra.mxu0 0.0
    %516 = vmatprep.subr.mxu0 0.0
    %517 = vmatpush2.msra.mxu0 0.0
    %518 = vmatprep.subr.mxu0 0.0
    %519 = vmatpush2.msra.mxu0 0.0
    %520 = vmatprep.subr.mxu0 0.0
    %521 = vmatpush2.msra.mxu0 0.0
    %522 = vmatprep.subr.mxu0 0.0
    %523 = vmatpush2.msra.mxu0 0.0
    %524 = vmatprep.subr.mxu0 0.0
    %525 = vmatpush2.msra.mxu0 0.0
    %526 = vmatprep.subr.mxu0 0.0
    %527 = vmatpush2.msra.mxu0 0.0
    %528 = vmatprep.subr.mxu0 0.0
    %529 = vmatpush2.msra.mxu0 0.0
    %530 = vmatprep.subr.mxu0 0.0
    %531 = vmatpush2.msra.mxu0 0.0
    %532 = vmatprep.subr.mxu0 0.0
    %533 = vmatpush2.msra.mxu0 0.0
    %534 = vmatprep.subr.mxu0 0.0
    %535 = vmatpush2.msra.mxu0 0.0
    %536 = vmatprep.subr.mxu0 0.0
    %537 = vmatpush2.msra.mxu0 0.0
    %538 = vmatprep.subr.mxu0 0.0
    %539 = vmatpush2.msra.mxu0 0.0
    %540 = vmatprep.mubr.f32.mxu0 0.0
    %541 = vmatmul.mubr.f32.gmra.mxu0 %v474
    %v542 = vpop.f32.mrf.mxu0
    %v543 = vadd.f32 0.0, %v542
    %v544 = vpop.f32.mrf.mxu0
    %545 = vdwg.mxu0
    %v546 = vadd.f32 %v466, %v543
    %v547 = vld [vmem:[%s8] sm:$0xff]
    %v548 = vld [vmem:[%s8 + $0x8] sm:$0xff]
    %v549 = vld [vmem:[%s8 + $0x10] sm:$0xff]
    %v550 = vld [vmem:[%s8 + $0x18] sm:$0xff]
    %v552 = vsel %vm297, %v296, 0
    %554 = vmatprep.subr.mxu0 0.0
    %555 = vmatpush1.msra.mxu0 0.0
    %556 = vmatprep.subr.mxu0 0.0
    %557 = vmatpush1.msra.mxu0 0.0
    %558 = vmatprep.subr.mxu0 0.0
    %559 = vmatpush1.msra.mxu0 0.0
    %560 = vmatprep.subr.mxu0 0.0
    %561 = vmatpush1.msra.mxu0 0.0
    %562 = vmatprep.subr.mxu0 0.0
    %563 = vmatpush1.msra.mxu0 0.0
    %564 = vmatprep.subr.mxu0 0.0
    %565 = vmatpush1.msra.mxu0 0.0
    %566 = vmatprep.subr.mxu0 0.0
    %567 = vmatpush1.msra.mxu0 0.0
    %568 = vmatprep.subr.mxu0 0.0
    %569 = vmatpush1.msra.mxu0 0.0
    %570 = vmatprep.subr.mxu0 0.0
    %571 = vmatpush1.msra.mxu0 0.0
    %572 = vmatprep.subr.mxu0 0.0
    %573 = vmatpush1.msra.mxu0 0.0
    %574 = vmatprep.subr.mxu0 0.0
    %575 = vmatpush1.msra.mxu0 0.0
    %576 = vmatprep.subr.mxu0 0.0
    %577 = vmatpush1.msra.mxu0 0.0
    %578 = vmatprep.subr.mxu0 0.0
    %579 = vmatpush1.msra.mxu0 %v550
    %580 = vmatprep.subr.mxu0 0.0
    %581 = vmatpush1.msra.mxu0 %v549
    %582 = vmatprep.subr.mxu0 0.0
    %583 = vmatpush1.msra.mxu0 %v548
    %584 = vmatprep.subr.mxu0 0.0
    %585 = vmatpush1.msra.mxu0 %v547
    %586 = vmatprep.subr.mxu0 0.0
    %587 = vmatpush2.msra.mxu0 0.0
    %588 = vmatprep.subr.mxu0 0.0
    %589 = vmatpush2.msra.mxu0 0.0
    %590 = vmatprep.subr.mxu0 0.0
    %591 = vmatpush2.msra.mxu0 0.0
    %592 = vmatprep.subr.mxu0 0.0
    %593 = vmatpush2.msra.mxu0 0.0
    %594 = vmatprep.subr.mxu0 0.0
    %595 = vmatpush2.msra.mxu0 0.0
    %596 = vmatprep.subr.mxu0 0.0
    %597 = vmatpush2.msra.mxu0 0.0
    %598 = vmatprep.subr.mxu0 0.0
    %599 = vmatpush2.msra.mxu0 0.0
    %600 = vmatprep.subr.mxu0 0.0
    %601 = vmatpush2.msra.mxu0 0.0
    %602 = vmatprep.subr.mxu0 0.0
    %603 = vmatpush2.msra.mxu0 0.0
    %604 = vmatprep.subr.mxu0 0.0
    %605 = vmatpush2.msra.mxu0 0.0
    %606 = vmatprep.subr.mxu0 0.0
    %607 = vmatpush2.msra.mxu0 0.0
    %608 = vmatprep.subr.mxu0 0.0
    %609 = vmatpush2.msra.mxu0 0.0
    %610 = vmatprep.subr.mxu0 0.0
    %611 = vmatpush2.msra.mxu0 0.0
    %612 = vmatprep.subr.mxu0 0.0
    %613 = vmatpush2.msra.mxu0 0.0
    %614 = vmatprep.subr.mxu0 0.0
    %615 = vmatpush2.msra.mxu0 0.0
    %616 = vmatprep.subr.mxu0 0.0
    %617 = vmatpush2.msra.mxu0 0.0
    %618 = vmatprep.mubr.f32.mxu0 0.0
    %619 = vmatmul.mubr.f32.gmra.mxu0 %v552
    %v620 = vpop.f32.mrf.mxu0
    %v621 = vadd.f32 0.0, %v620
    %v622 = vpop.f32.mrf.mxu0
    %623 = vdwg.mxu0
    %v624 = vadd.f32 %v546, %v621
    %v625 = vld [vmem:[%s9] sm:$0x1]
    %v627 = vlaneseq
    %v628 = vshrl.u32 %v627, 7
    %v629 = vsub.s32 0, %v628
    %v630 = vrot.slane %v625, %v629
    %v632 = vadd.f32 %v624, %v630
    %v633 = vmax.f32 %v632, 0.0
    %v634 = vld [vmem:[%s10] sm:$0xff]
    %v635 = vld [vmem:[%s10 + $0x8] sm:$0xff]
    %v636 = vld [vmem:[%s10 + $0x10] sm:$0xff]
    %v637 = vld [vmem:[%s10 + $0x18] sm:$0xff]
    %v638 = vld [vmem:[%s10 + $0x20] sm:$0xff]
    %v639 = vld [vmem:[%s10 + $0x28] sm:$0xff]
    %v640 = vld [vmem:[%s10 + $0x30] sm:$0xff]
    %v641 = vld [vmem:[%s10 + $0x38] sm:$0xff]
    %v642 = vld [vmem:[%s11] sm:$0x1]
    %v644 = vlaneseq
    %v645 = vshrl.u32 %v644, 7
    %v646 = vsub.s32 0, %v645
    %v647 = vrot.slane %v642, %v646
    %vm649 = vcmask 523264
    %v651 = vsel %vm649, %v633, 0
    %653 = vmatprep.subr.mxu0 0.0
    %654 = vmatpush1.msra.mxu0 0.0
    %655 = vmatprep.subr.mxu0 0.0
    %656 = vmatpush1.msra.mxu0 0.0
    %657 = vmatprep.subr.mxu0 0.0
    %658 = vmatpush1.msra.mxu0 0.0
    %659 = vmatprep.subr.mxu0 0.0
    %660 = vmatpush1.msra.mxu0 0.0
    %661 = vmatprep.subr.mxu0 0.0
    %662 = vmatpush1.msra.mxu0 0.0
    %663 = vmatprep.subr.mxu0 0.0
    %664 = vmatpush1.msra.mxu0 0.0
    %665 = vmatprep.subr.mxu0 0.0
    %666 = vmatpush1.msra.mxu0 0.0
    %667 = vmatprep.subr.mxu0 0.0
    %668 = vmatpush1.msra.mxu0 0.0
    %669 = vmatprep.subr.mxu0 0.0
    %670 = vmatpush1.msra.mxu0 %v641
    %671 = vmatprep.subr.mxu0 0.0
    %672 = vmatpush1.msra.mxu0 %v640
    %673 = vmatprep.subr.mxu0 0.0
    %674 = vmatpush1.msra.mxu0 %v639
    %675 = vmatprep.subr.mxu0 0.0
    %676 = vmatpush1.msra.mxu0 %v638
    %677 = vmatprep.subr.mxu0 0.0
    %678 = vmatpush1.msra.mxu0 %v637
    %679 = vmatprep.subr.mxu0 0.0
    %680 = vmatpush1.msra.mxu0 %v636
    %681 = vmatprep.subr.mxu0 0.0
    %682 = vmatpush1.msra.mxu0 %v635
    %683 = vmatprep.subr.mxu0 0.0
    %684 = vmatpush1.msra.mxu0 %v634
    %685 = vmatprep.subr.mxu0 0.0
    %686 = vmatpush2.msra.mxu0 0.0
    %687 = vmatprep.subr.mxu0 0.0
    %688 = vmatpush2.msra.mxu0 0.0
    %689 = vmatprep.subr.mxu0 0.0
    %690 = vmatpush2.msra.mxu0 0.0
    %691 = vmatprep.subr.mxu0 0.0
    %692 = vmatpush2.msra.mxu0 0.0
    %693 = vmatprep.subr.mxu0 0.0
    %694 = vmatpush2.msra.mxu0 0.0
    %695 = vmatprep.subr.mxu0 0.0
    %696 = vmatpush2.msra.mxu0 0.0
    %697 = vmatprep.subr.mxu0 0.0
    %698 = vmatpush2.msra.mxu0 0.0
    %699 = vmatprep.subr.mxu0 0.0
    %700 = vmatpush2.msra.mxu0 0.0
    %701 = vmatprep.subr.mxu0 0.0
    %702 = vmatpush2.msra.mxu0 0.0
    %703 = vmatprep.subr.mxu0 0.0
    %704 = vmatpush2.msra.mxu0 0.0
    %705 = vmatprep.subr.mxu0 0.0
    %706 = vmatpush2.msra.mxu0 0.0
    %707 = vmatprep.subr.mxu0 0.0
    %708 = vmatpush2.msra.mxu0 0.0
    %709 = vmatprep.subr.mxu0 0.0
    %710 = vmatpush2.msra.mxu0 0.0
    %711 = vmatprep.subr.mxu0 0.0
    %712 = vmatpush2.msra.mxu0 0.0
    %713 = vmatprep.subr.mxu0 0.0
    %714 = vmatpush2.msra.mxu0 0.0
    %715 = vmatprep.subr.mxu0 0.0
    %716 = vmatpush2.msra.mxu0 0.0
    %717 = vmatprep.mubr.f32.mxu0 0.0
    %718 = vmatmul.mubr.f32.gmra.mxu0 %v651
    %v719 = vpop.f32.mrf.mxu0
    %v720 = vadd.f32 %v647, %v719
    %v721 = vpop.f32.mrf.mxu0
    %722 = vdwg.mxu0
    %v723 = vmax.f32 %v720, 0.0
    %v724 = vld [vmem:[%s12] sm:$0xff]
    %v725 = vld [vmem:[%s12 + $0x8] sm:$0xff]
    %v726 = vld [vmem:[%s12 + $0x10] sm:$0xff]
    %v727 = vld [vmem:[%s12 + $0x18] sm:$0xff]
    %v728 = vld [vmem:[%s13] sm:$0x1]
    %v730 = vlaneseq
    %v731 = vshrl.u32 %v730, 7
    %v732 = vsub.s32 0, %v731
    %v733 = vrot.slane %v728, %v732
    %v736 = vsel %vm297, %v723, 0
    %738 = vmatprep.subr.mxu0 0.0
    %739 = vmatpush1.msra.mxu0 0.0
    %740 = vmatprep.subr.mxu0 0.0
    %741 = vmatpush1.msra.mxu0 0.0
    %742 = vmatprep.subr.mxu0 0.0
    %743 = vmatpush1.msra.mxu0 0.0
    %744 = vmatprep.subr.mxu0 0.0
    %745 = vmatpush1.msra.mxu0 0.0
    %746 = vmatprep.subr.mxu0 0.0
    %747 = vmatpush1.msra.mxu0 0.0
    %748 = vmatprep.subr.mxu0 0.0
    %749 = vmatpush1.msra.mxu0 0.0
    %750 = vmatprep.subr.mxu0 0.0
    %751 = vmatpush1.msra.mxu0 0.0
    %752 = vmatprep.subr.mxu0 0.0
    %753 = vmatpush1.msra.mxu0 0.0
    %754 = vmatprep.subr.mxu0 0.0
    %755 = vmatpush1.msra.mxu0 0.0
    %756 = vmatprep.subr.mxu0 0.0
    %757 = vmatpush1.msra.mxu0 0.0
    %758 = vmatprep.subr.mxu0 0.0
    %759 = vmatpush1.msra.mxu0 0.0
    %760 = vmatprep.subr.mxu0 0.0
    %761 = vmatpush1.msra.mxu0 0.0
    %762 = vmatprep.subr.mxu0 0.0
    %763 = vmatpush1.msra.mxu0 %v727
    %764 = vmatprep.subr.mxu0 0.0
    %765 = vmatpush1.msra.mxu0 %v726
    %766 = vmatprep.subr.mxu0 0.0
    %767 = vmatpush1.msra.mxu0 %v725
    %768 = vmatprep.subr.mxu0 0.0
    %769 = vmatpush1.msra.mxu0 %v724
    %770 = vmatprep.subr.mxu0 0.0
    %771 = vmatpush2.msra.mxu0 0.0
    %772 = vmatprep.subr.mxu0 0.0
    %773 = vmatpush2.msra.mxu0 0.0
    %774 = vmatprep.subr.mxu0 0.0
    %775 = vmatpush2.msra.mxu0 0.0
    %776 = vmatprep.subr.mxu0 0.0
    %777 = vmatpush2.msra.mxu0 0.0
    %778 = vmatprep.subr.mxu0 0.0
    %779 = vmatpush2.msra.mxu0 0.0
    %780 = vmatprep.subr.mxu0 0.0
    %781 = vmatpush2.msra.mxu0 0.0
    %782 = vmatprep.subr.mxu0 0.0
    %783 = vmatpush2.msra.mxu0 0.0
    %784 = vmatprep.subr.mxu0 0.0
    %785 = vmatpush2.msra.mxu0 0.0
    %786 = vmatprep.subr.mxu0 0.0
    %787 = vmatpush2.msra.mxu0 0.0
    %788 = vmatprep.subr.mxu0 0.0
    %789 = vmatpush2.msra.mxu0 0.0
    %790 = vmatprep.subr.mxu0 0.0
    %791 = vmatpush2.msra.mxu0 0.0
    %792 = vmatprep.subr.mxu0 0.0
    %793 = vmatpush2.msra.mxu0 0.0
    %794 = vmatprep.subr.mxu0 0.0
    %795 = vmatpush2.msra.mxu0 0.0
    %796 = vmatprep.subr.mxu0 0.0
    %797 = vmatpush2.msra.mxu0 0.0
    %798 = vmatprep.subr.mxu0 0.0
    %799 = vmatpush2.msra.mxu0 0.0
    %800 = vmatprep.subr.mxu0 0.0
    %801 = vmatpush2.msra.mxu0 0.0
    %802 = vmatprep.mubr.f32.mxu0 0.0
    %803 = vmatmul.mubr.f32.gmra.mxu0 %v736
    %v804 = vpop.f32.mrf.mxu0
    %v805 = vadd.f32 %v733, %v804
    %v806 = vpop.f32.mrf.mxu0
    %807 = vdwg.mxu0
    %vm808 = vcmask 9216
    %809 = vst.msk [vmem:[#allocation2] sm:$0x3] %vm808, %v805
    // Predicated region
    $region58: #{single_gat_forward.3} parent=1 // pred_check
      _
    $region59: #{single_gat_forward.3} parent=1 // pred_check_branch
      %811 = sbr.rel (0) target = $region61
    $region60: #{single_gat_forward.3} parent=1 // pred_region
      %s813 = ssub.s32 32, 32
      %814 = vsyncadd [#allocation3], %s813
      %s816 = sshll.u32 [#allocation2], 4
      %s817 = int_to_ptr.vmem [resolvable:$true] %s816
      %819 = dma.vmem_to_hbm [thread:$0]  %s817, 32, %s14, [#allocation3]
    $region61: #{single_gat_forward.3} parent=1 // pred_fallthru
      _
    // Predicated region
    $region62: #{single_gat_forward.3} parent=1 // pred_check
      _
    $region63: #{single_gat_forward.3} parent=1 // pred_check_branch
      %821 = sbr.rel (0) target = $region65
    $region64: #{single_gat_forward.3} parent=1 // pred_region
      %822 = dma.done [#allocation3], 32
    $region65: #{single_gat_forward.3} parent=1 // pred_fallthru
      _
    %823 = vsyncpa [#allocation3], 1

// kernel: single_gat_forward.2
$region0: #{single_gat_forward.2}
  #allocation0 [shape = 'u32[]', space=smem, size = 0x4, offset = 0x4, fixed_abs, tag = 'smem constant byte address 0x4 - core index']
  #allocation1 [shape = 'u32[144,128]{1,0:T(1,128)}', space=vmem, size = 0x12000, scoped, tag = 'internal scratch']
  %s0 = inlined_call_operand.vmem [shape: f32[16,16], index: 0, kind: input, shape index: {}]
  %s1 = inlined_call_operand.vmem [shape: f32[16,16], index: 1, kind: input, shape index: {}]
  %s2 = inlined_call_operand.vmem [shape: f32[16,2], index: 2, kind: input, shape index: {}]
  %s3 = inlined_call_operand.vmem [shape: f32[2,16], index: 3, kind: input, shape index: {}]
  %s4 = inlined_call_operand.vmem [shape: f32[2,1], index: 4, kind: input, shape index: {}]
  %s5 = inlined_call_operand.vmem [shape: f32[16,32], index: 5, kind: input, shape index: {}]
  %s6 = inlined_call_operand.vmem [shape: f32[1,32], index: 6, kind: input, shape index: {}]
  %s7 = inlined_call_operand.vmem [shape: f32[32,32], index: 7, kind: input, shape index: {}]
  %s8 = inlined_call_operand.vmem [shape: f32[32,8], index: 8, kind: input, shape index: {}]
  %s9 = inlined_call_operand.vmem [shape: f32[1,32], index: 9, kind: input, shape index: {}]
  %s10 = inlined_call_operand.vmem [shape: f32[1,32], index: 10, kind: input, shape index: {}]
  %s11 = inlined_call_operand.vmem [shape: f32[1,32], index: 11, kind: input, shape index: {}]
  %s12 = inlined_call_operand.vmem [shape: f32[32,32], index: 12, kind: input, shape index: {}]
  %s13 = inlined_call_operand.vmem [shape: f32[32,8], index: 13, kind: input, shape index: {}]
  %s14 = inlined_call_operand.vmem [shape: f32[1,32], index: 14, kind: input, shape index: {}]
  %s15 = inlined_call_operand.vmem [shape: f32[1,32], index: 15, kind: input, shape index: {}]
  %s16 = inlined_call_operand.vmem [shape: f32[1,32], index: 16, kind: input, shape index: {}]
  %s17 = inlined_call_operand.vmem [shape: f32[32,32], index: 17, kind: input, shape index: {}]
  %s18 = inlined_call_operand.vmem [shape: f32[32,8], index: 18, kind: input, shape index: {}]
  %s19 = inlined_call_operand.vmem [shape: f32[1,32], index: 19, kind: input, shape index: {}]
  %s20 = inlined_call_operand.vmem [shape: f32[1,32], index: 20, kind: input, shape index: {}]
  %s21 = inlined_call_operand.vmem [shape: f32[1,32], index: 21, kind: input, shape index: {}]
  %s22 = inlined_call_operand.vmem [shape: f32[32,1], index: 22, kind: input, shape index: {}]
  %s23 = inlined_call_operand.vmem [shape: f32[16,32], index: 23, kind: output, shape index: {0}]
  %s24 = inlined_call_operand.vmem [shape: f32[16,1], index: 24, kind: output, shape index: {1}]
  %25 = xla_tuple %s23, %s24
  %s26 = sld [smem:[#allocation0]]
  $region110: #{single_gat_forward.2} parent=0
    _
  %s28 = ssub.s32 1, %s26
  %s29 = scalar_select 0, %s28, %s26
  // Predicated region
  $region2: #{single_gat_forward.2} parent=0 // pred_check
    _
  $region3: #{single_gat_forward.2} parent=0 // pred_check_branch
    %31 = sbr.rel (0) target = $region5
  $region4: #{single_gat_forward.2} parent=0 // pred_region
    _
  $region5: #{single_gat_forward.2} parent=0 // pred_fallthru
    _
  // Predicated region
  $region6: #{single_gat_forward.2} parent=0 // pred_check
    _
  $region7: #{single_gat_forward.2} parent=0 // pred_check_branch
    %33 = sbr.rel (0) target = $region9
  $region8: #{single_gat_forward.2} parent=0 // pred_region
    _
  $region9: #{single_gat_forward.2} parent=0 // pred_fallthru
    _
  // Predicated region
  $region10: #{single_gat_forward.2} parent=0 // pred_check
    _
  $region11: #{single_gat_forward.2} parent=0 // pred_check_branch
    %35 = sbr.rel (0) target = $region13
  $region12: #{single_gat_forward.2} parent=0 // pred_region
    _
  $region13: #{single_gat_forward.2} parent=0 // pred_fallthru
    _
  // Predicated region
  $region14: #{single_gat_forward.2} parent=0 // pred_check
    _
  $region15: #{single_gat_forward.2} parent=0 // pred_check_branch
    %37 = sbr.rel (0) target = $region17
  $region16: #{single_gat_forward.2} parent=0 // pred_region
    _
  $region17: #{single_gat_forward.2} parent=0 // pred_fallthru
    _
  // Predicated region
  $region18: #{single_gat_forward.2} parent=0 // pred_check
    _
  $region19: #{single_gat_forward.2} parent=0 // pred_check_branch
    %39 = sbr.rel (0) target = $region21
  $region20: #{single_gat_forward.2} parent=0 // pred_region
    _
  $region21: #{single_gat_forward.2} parent=0 // pred_fallthru
    _
  // Predicated region
  $region22: #{single_gat_forward.2} parent=0 // pred_check
    _
  $region23: #{single_gat_forward.2} parent=0 // pred_check_branch
    %41 = sbr.rel (0) target = $region25
  $region24: #{single_gat_forward.2} parent=0 // pred_region
    _
  $region25: #{single_gat_forward.2} parent=0 // pred_fallthru
    _
  // Predicated region
  $region26: #{single_gat_forward.2} parent=0 // pred_check
    _
  $region27: #{single_gat_forward.2} parent=0 // pred_check_branch
    %43 = sbr.rel (0) target = $region29
  $region28: #{single_gat_forward.2} parent=0 // pred_region
    _
  $region29: #{single_gat_forward.2} parent=0 // pred_fallthru
    _
  // Predicated region
  $region30: #{single_gat_forward.2} parent=0 // pred_check
    _
  $region31: #{single_gat_forward.2} parent=0 // pred_check_branch
    %45 = sbr.rel (0) target = $region33
  $region32: #{single_gat_forward.2} parent=0 // pred_region
    _
  $region33: #{single_gat_forward.2} parent=0 // pred_fallthru
    _
  // Predicated region
  $region34: #{single_gat_forward.2} parent=0 // pred_check
    _
  $region35: #{single_gat_forward.2} parent=0 // pred_check_branch
    %47 = sbr.rel (0) target = $region37
  $region36: #{single_gat_forward.2} parent=0 // pred_region
    _
  $region37: #{single_gat_forward.2} parent=0 // pred_fallthru
    _
  // Predicated region
  $region38: #{single_gat_forward.2} parent=0 // pred_check
    _
  $region39: #{single_gat_forward.2} parent=0 // pred_check_branch
    %49 = sbr.rel (0) target = $region41
  $region40: #{single_gat_forward.2} parent=0 // pred_region
    _
  $region41: #{single_gat_forward.2} parent=0 // pred_fallthru
    _
  // Predicated region
  $region42: #{single_gat_forward.2} parent=0 // pred_check
    _
  $region43: #{single_gat_forward.2} parent=0 // pred_check_branch
    %51 = sbr.rel (0) target = $region45
  $region44: #{single_gat_forward.2} parent=0 // pred_region
    _
  $region45: #{single_gat_forward.2} parent=0 // pred_fallthru
    _
  // Predicated region
  $region46: #{single_gat_forward.2} parent=0 // pred_check
    _
  $region47: #{single_gat_forward.2} parent=0 // pred_check_branch
    %53 = sbr.rel (0) target = $region49
  $region48: #{single_gat_forward.2} parent=0 // pred_region
    _
  $region49: #{single_gat_forward.2} parent=0 // pred_fallthru
    _
  // Predicated region
  $region50: #{single_gat_forward.2} parent=0 // pred_check
    _
  $region51: #{single_gat_forward.2} parent=0 // pred_check_branch
    %55 = sbr.rel (0) target = $region53
  $region52: #{single_gat_forward.2} parent=0 // pred_region
    _
  $region53: #{single_gat_forward.2} parent=0 // pred_fallthru
    _
  // Predicated region
  $region54: #{single_gat_forward.2} parent=0 // pred_check
    _
  $region55: #{single_gat_forward.2} parent=0 // pred_check_branch
    %57 = sbr.rel (0) target = $region57
  $region56: #{single_gat_forward.2} parent=0 // pred_region
    _
  $region57: #{single_gat_forward.2} parent=0 // pred_fallthru
    _
  // Predicated region
  $region58: #{single_gat_forward.2} parent=0 // pred_check
    _
  $region59: #{single_gat_forward.2} parent=0 // pred_check_branch
    %59 = sbr.rel (0) target = $region61
  $region60: #{single_gat_forward.2} parent=0 // pred_region
    _
  $region61: #{single_gat_forward.2} parent=0 // pred_fallthru
    _
  // Predicated region
  $region62: #{single_gat_forward.2} parent=0 // pred_check
    _
  $region63: #{single_gat_forward.2} parent=0 // pred_check_branch
    %61 = sbr.rel (0) target = $region65
  $region64: #{single_gat_forward.2} parent=0 // pred_region
    _
  $region65: #{single_gat_forward.2} parent=0 // pred_fallthru
    _
  // Predicated region
  $region66: #{single_gat_forward.2} parent=0 // pred_check
    _
  $region67: #{single_gat_forward.2} parent=0 // pred_check_branch
    %63 = sbr.rel (0) target = $region69
  $region68: #{single_gat_forward.2} parent=0 // pred_region
    _
  $region69: #{single_gat_forward.2} parent=0 // pred_fallthru
    _
  // Predicated region
  $region70: #{single_gat_forward.2} parent=0 // pred_check
    _
  $region71: #{single_gat_forward.2} parent=0 // pred_check_branch
    %65 = sbr.rel (0) target = $region73
  $region72: #{single_gat_forward.2} parent=0 // pred_region
    _
  $region73: #{single_gat_forward.2} parent=0 // pred_fallthru
    _
  // Predicated region
  $region74: #{single_gat_forward.2} parent=0 // pred_check
    _
  $region75: #{single_gat_forward.2} parent=0 // pred_check_branch
    %67 = sbr.rel (0) target = $region77
  $region76: #{single_gat_forward.2} parent=0 // pred_region
    _
  $region77: #{single_gat_forward.2} parent=0 // pred_fallthru
    _
  // Predicated region
  $region78: #{single_gat_forward.2} parent=0 // pred_check
    _
  $region79: #{single_gat_forward.2} parent=0 // pred_check_branch
    %69 = sbr.rel (0) target = $region81
  $region80: #{single_gat_forward.2} parent=0 // pred_region
    _
  $region81: #{single_gat_forward.2} parent=0 // pred_fallthru
    _
  // Predicated region
  $region82: #{single_gat_forward.2} parent=0 // pred_check
    _
  $region83: #{single_gat_forward.2} parent=0 // pred_check_branch
    %71 = sbr.rel (0) target = $region85
  $region84: #{single_gat_forward.2} parent=0 // pred_region
    _
  $region85: #{single_gat_forward.2} parent=0 // pred_fallthru
    _
  // Predicated region
  $region86: #{single_gat_forward.2} parent=0 // pred_check
    _
  $region87: #{single_gat_forward.2} parent=0 // pred_check_branch
    %73 = sbr.rel (0) target = $region89
  $region88: #{single_gat_forward.2} parent=0 // pred_region
    _
  $region89: #{single_gat_forward.2} parent=0 // pred_fallthru
    _
  // Predicated region
  $region90: #{single_gat_forward.2} parent=0 // pred_check
    _
  $region91: #{single_gat_forward.2} parent=0 // pred_check_branch
    %75 = sbr.rel (0) target = $region93
  $region92: #{single_gat_forward.2} parent=0 // pred_region
    _
  $region93: #{single_gat_forward.2} parent=0 // pred_fallthru
    _
  %v76 = vld [vmem:[%s1] sm:$0xff]
  %v77 = vld [vmem:[%s1 + $0x8] sm:$0xff]
  %v78 = vld [vmem:[%s2] sm:$0xff]
  %v79 = vld [vmem:[%s2 + $0x8] sm:$0xff]
  %v80 = vld [vmem:[%s3] sm:$0x3]
  %v81 = vld [vmem:[%s4] sm:$0x3]
  %v82 = vlaneseq
  %v83 = vand.u32 %v82, 127
  %vm84 = vcmp.ge.s32.totalorder %v83, 0
  %vm85 = vcmp.lt.s32.totalorder %v83, 8
  %vm86 = vmand %vm84, %vm85
  %vm87 = vcmp.ge.s32.totalorder %v83, 8
  %vm88 = vcmp.lt.s32.totalorder %v83, 16
  %vm89 = vmand %vm87, %vm88
  %vm90 = vcmp.ge.s32.totalorder %v83, 16
  %vm91 = vcmp.lt.s32.totalorder %v83, 24
  %vm92 = vmand %vm90, %vm91
  %vm93 = vcmp.ge.s32.totalorder %v83, 24
  %vm94 = vcmp.lt.s32.totalorder %v83, 32
  %vm95 = vmand %vm93, %vm94
  %v96 = vld [vmem:[%s0] sm:$0xff]
  %v97 = vld [vmem:[%s0 + $0x8] sm:$0xff]
  %v98 = vld [vmem:[%s5] sm:$0xff]
  %v99 = vld [vmem:[%s5 + $0x8] sm:$0xff]
  %v100 = vld [vmem:[%s6] sm:$0x1]
  %v102 = vlaneseq
  %v103 = vshrl.u32 %v102, 7
  %v104 = vsub.s32 0, %v103
  %v105 = vrot.slane %v100, %v104
  %vm107 = vcmask 130048
  %v109 = vsel %vm107, %v96, 0
  %v112 = vsel %vm107, %v97, 0
  %114 = vmatprep.subr.mxu0 0.0
  %115 = vmatpush1.msra.mxu0 0.0
  %116 = vmatprep.subr.mxu0 0.0
  %117 = vmatpush1.msra.mxu0 0.0
  %118 = vmatprep.subr.mxu0 0.0
  %119 = vmatpush1.msra.mxu0 0.0
  %120 = vmatprep.subr.mxu0 0.0
  %121 = vmatpush1.msra.mxu0 0.0
  %122 = vmatprep.subr.mxu0 0.0
  %123 = vmatpush1.msra.mxu0 0.0
  %124 = vmatprep.subr.mxu0 0.0
  %125 = vmatpush1.msra.mxu0 0.0
  %126 = vmatprep.subr.mxu0 0.0
  %127 = vmatpush1.msra.mxu0 0.0
  %128 = vmatprep.subr.mxu0 0.0
  %129 = vmatpush1.msra.mxu0 0.0
  %130 = vmatprep.subr.mxu0 0.0
  %131 = vmatpush1.msra.mxu0 0.0
  %132 = vmatprep.subr.mxu0 0.0
  %133 = vmatpush1.msra.mxu0 0.0
  %134 = vmatprep.subr.mxu0 0.0
  %135 = vmatpush1.msra.mxu0 0.0
  %136 = vmatprep.subr.mxu0 0.0
  %137 = vmatpush1.msra.mxu0 0.0
  %138 = vmatprep.subr.mxu0 0.0
  %139 = vmatpush1.msra.mxu0 0.0
  %140 = vmatprep.subr.mxu0 0.0
  %141 = vmatpush1.msra.mxu0 0.0
  %142 = vmatprep.subr.mxu0 0.0
  %143 = vmatpush1.msra.mxu0 %v99
  %144 = vmatprep.subr.mxu0 0.0
  %145 = vmatpush1.msra.mxu0 %v98
  %146 = vmatprep.subr.mxu0 0.0
  %147 = vmatpush2.msra.mxu0 0.0
  %148 = vmatprep.subr.mxu0 0.0
  %149 = vmatpush2.msra.mxu0 0.0
  %150 = vmatprep.subr.mxu0 0.0
  %151 = vmatpush2.msra.mxu0 0.0
  %152 = vmatprep.subr.mxu0 0.0
  %153 = vmatpush2.msra.mxu0 0.0
  %154 = vmatprep.subr.mxu0 0.0
  %155 = vmatpush2.msra.mxu0 0.0
  %156 = vmatprep.subr.mxu0 0.0
  %157 = vmatpush2.msra.mxu0 0.0
  %158 = vmatprep.subr.mxu0 0.0
  %159 = vmatpush2.msra.mxu0 0.0
  %160 = vmatprep.subr.mxu0 0.0
  %161 = vmatpush2.msra.mxu0 0.0
  %162 = vmatprep.subr.mxu0 0.0
  %163 = vmatpush2.msra.mxu0 0.0
  %164 = vmatprep.subr.mxu0 0.0
  %165 = vmatpush2.msra.mxu0 0.0
  %166 = vmatprep.subr.mxu0 0.0
  %167 = vmatpush2.msra.mxu0 0.0
  %168 = vmatprep.subr.mxu0 0.0
  %169 = vmatpush2.msra.mxu0 0.0
  %170 = vmatprep.subr.mxu0 0.0
  %171 = vmatpush2.msra.mxu0 0.0
  %172 = vmatprep.subr.mxu0 0.0
  %173 = vmatpush2.msra.mxu0 0.0
  %174 = vmatprep.subr.mxu0 0.0
  %175 = vmatpush2.msra.mxu0 0.0
  %176 = vmatprep.subr.mxu0 0.0
  %177 = vmatpush2.msra.mxu0 0.0
  %178 = vmatprep.mubr.f32.mxu0 0.0
  %179 = vmatmul.mubr.f32.gmra.mxu0 %v109
  %v180 = vpop.f32.mrf.mxu0
  %v181 = vadd.f32 %v105, %v180
  %v182 = vpop.f32.mrf.mxu0
  %183 = vmatprep.mubr.f32.mxu0 0.0
  %184 = vmatmul.mubr.f32.gmra.mxu0 %v112
  %v185 = vpop.f32.mrf.mxu0
  %v186 = vadd.f32 %v105, %v185
  %v187 = vpop.f32.mrf.mxu0
  %188 = vdwg.mxu0
  %v189 = vmax.f32 %v181, 0.0
  %v190 = vmax.f32 %v186, 0.0
  %v191 = vld [vmem:[%s7] sm:$0xff]
  %v192 = vld [vmem:[%s7 + $0x8] sm:$0xff]
  %v193 = vld [vmem:[%s7 + $0x10] sm:$0xff]
  %v194 = vld [vmem:[%s7 + $0x18] sm:$0xff]
  %vm195 = vcmask 261120
  %v197 = vsel %vm195, %v189, 0
  %v200 = vsel %vm195, %v190, 0
  %202 = vmatprep.subr.mxu0 0.0
  %203 = vmatpush1.msra.mxu0 0.0
  %204 = vmatprep.subr.mxu0 0.0
  %205 = vmatpush1.msra.mxu0 0.0
  %206 = vmatprep.subr.mxu0 0.0
  %207 = vmatpush1.msra.mxu0 0.0
  %208 = vmatprep.subr.mxu0 0.0
  %209 = vmatpush1.msra.mxu0 0.0
  %210 = vmatprep.subr.mxu0 0.0
  %211 = vmatpush1.msra.mxu0 0.0
  %212 = vmatprep.subr.mxu0 0.0
  %213 = vmatpush1.msra.mxu0 0.0
  %214 = vmatprep.subr.mxu0 0.0
  %215 = vmatpush1.msra.mxu0 0.0
  %216 = vmatprep.subr.mxu0 0.0
  %217 = vmatpush1.msra.mxu0 0.0
  %218 = vmatprep.subr.mxu0 0.0
  %219 = vmatpush1.msra.mxu0 0.0
  %220 = vmatprep.subr.mxu0 0.0
  %221 = vmatpush1.msra.mxu0 0.0
  %222 = vmatprep.subr.mxu0 0.0
  %223 = vmatpush1.msra.mxu0 0.0
  %224 = vmatprep.subr.mxu0 0.0
  %225 = vmatpush1.msra.mxu0 0.0
  %226 = vmatprep.subr.mxu0 0.0
  %227 = vmatpush1.msra.mxu0 %v194
  %228 = vmatprep.subr.mxu0 0.0
  %229 = vmatpush1.msra.mxu0 %v193
  %230 = vmatprep.subr.mxu0 0.0
  %231 = vmatpush1.msra.mxu0 %v192
  %232 = vmatprep.subr.mxu0 0.0
  %233 = vmatpush1.msra.mxu0 %v191
  %234 = vmatprep.subr.mxu0 0.0
  %235 = vmatpush2.msra.mxu0 0.0
  %236 = vmatprep.subr.mxu0 0.0
  %237 = vmatpush2.msra.mxu0 0.0
  %238 = vmatprep.subr.mxu0 0.0
  %239 = vmatpush2.msra.mxu0 0.0
  %240 = vmatprep.subr.mxu0 0.0
  %241 = vmatpush2.msra.mxu0 0.0
  %242 = vmatprep.subr.mxu0 0.0
  %243 = vmatpush2.msra.mxu0 0.0
  %244 = vmatprep.subr.mxu0 0.0
  %245 = vmatpush2.msra.mxu0 0.0
  %246 = vmatprep.subr.mxu0 0.0
  %247 = vmatpush2.msra.mxu0 0.0
  %248 = vmatprep.subr.mxu0 0.0
  %249 = vmatpush2.msra.mxu0 0.0
  %250 = vmatprep.subr.mxu0 0.0
  %251 = vmatpush2.msra.mxu0 0.0
  %252 = vmatprep.subr.mxu0 0.0
  %253 = vmatpush2.msra.mxu0 0.0
  %254 = vmatprep.subr.mxu0 0.0
  %255 = vmatpush2.msra.mxu0 0.0
  %256 = vmatprep.subr.mxu0 0.0
  %257 = vmatpush2.msra.mxu0 0.0
  %258 = vmatprep.subr.mxu0 0.0
  %259 = vmatpush2.msra.mxu0 0.0
  %260 = vmatprep.subr.mxu0 0.0
  %261 = vmatpush2.msra.mxu0 0.0
  %262 = vmatprep.subr.mxu0 0.0
  %263 = vmatpush2.msra.mxu0 0.0
  %264 = vmatprep.subr.mxu0 0.0
  %265 = vmatpush2.msra.mxu0 0.0
  %266 = vmatprep.mubr.f32.mxu0 0.0
  %267 = vmatmul.mubr.f32.gmra.mxu0 %v197
  %v268 = vpop.f32.mrf.mxu0
  %v269 = vadd.f32 0.0, %v268
  %v270 = vpop.f32.mrf.mxu0
  %271 = vmatprep.mubr.f32.mxu0 0.0
  %272 = vmatmul.mubr.f32.gmra.mxu0 %v200
  %v273 = vpop.f32.mrf.mxu0
  %v274 = vadd.f32 0.0, %v273
  %v275 = vpop.f32.mrf.mxu0
  %276 = vdwg.mxu0
  %v277 = vld [vmem:[%s8] sm:$0xff]
  %v278 = vld [vmem:[%s8 + $0x8] sm:$0xff]
  %v279 = vld [vmem:[%s8 + $0x10] sm:$0xff]
  %v280 = vld [vmem:[%s8 + $0x18] sm:$0xff]
  %v282 = vsel %vm195, %v269, 0
  %v285 = vsel %vm195, %v274, 0
  %287 = vmatprep.subr.mxu0 0.0
  %288 = vmatpush1.msra.mxu0 0.0
  %289 = vmatprep.subr.mxu0 0.0
  %290 = vmatpush1.msra.mxu0 0.0
  %291 = vmatprep.subr.mxu0 0.0
  %292 = vmatpush1.msra.mxu0 0.0
  %293 = vmatprep.subr.mxu0 0.0
  %294 = vmatpush1.msra.mxu0 0.0
  %295 = vmatprep.subr.mxu0 0.0
  %296 = vmatpush1.msra.mxu0 0.0
  %297 = vmatprep.subr.mxu0 0.0
  %298 = vmatpush1.msra.mxu0 0.0
  %299 = vmatprep.subr.mxu0 0.0
  %300 = vmatpush1.msra.mxu0 0.0
  %301 = vmatprep.subr.mxu0 0.0
  %302 = vmatpush1.msra.mxu0 0.0
  %303 = vmatprep.subr.mxu0 0.0
  %304 = vmatpush1.msra.mxu0 0.0
  %305 = vmatprep.subr.mxu0 0.0
  %306 = vmatpush1.msra.mxu0 0.0
  %307 = vmatprep.subr.mxu0 0.0
  %308 = vmatpush1.msra.mxu0 0.0
  %309 = vmatprep.subr.mxu0 0.0
  %310 = vmatpush1.msra.mxu0 0.0
  %311 = vmatprep.subr.mxu0 0.0
  %312 = vmatpush1.msra.mxu0 %v280
  %313 = vmatprep.subr.mxu0 0.0
  %314 = vmatpush1.msra.mxu0 %v279
  %315 = vmatprep.subr.mxu0 0.0
  %316 = vmatpush1.msra.mxu0 %v278
  %317 = vmatprep.subr.mxu0 0.0
  %318 = vmatpush1.msra.mxu0 %v277
  %319 = vmatprep.subr.mxu0 0.0
  %320 = vmatpush2.msra.mxu0 0.0
  %321 = vmatprep.subr.mxu0 0.0
  %322 = vmatpush2.msra.mxu0 0.0
  %323 = vmatprep.subr.mxu0 0.0
  %324 = vmatpush2.msra.mxu0 0.0
  %325 = vmatprep.subr.mxu0 0.0
  %326 = vmatpush2.msra.mxu0 0.0
  %327 = vmatprep.subr.mxu0 0.0
  %328 = vmatpush2.msra.mxu0 0.0
  %329 = vmatprep.subr.mxu0 0.0
  %330 = vmatpush2.msra.mxu0 0.0
  %331 = vmatprep.subr.mxu0 0.0
  %332 = vmatpush2.msra.mxu0 0.0
  %333 = vmatprep.subr.mxu0 0.0
  %334 = vmatpush2.msra.mxu0 0.0
  %335 = vmatprep.subr.mxu0 0.0
  %336 = vmatpush2.msra.mxu0 0.0
  %337 = vmatprep.subr.mxu0 0.0
  %338 = vmatpush2.msra.mxu0 0.0
  %339 = vmatprep.subr.mxu0 0.0
  %340 = vmatpush2.msra.mxu0 0.0
  %341 = vmatprep.subr.mxu0 0.0
  %342 = vmatpush2.msra.mxu0 0.0
  %343 = vmatprep.subr.mxu0 0.0
  %344 = vmatpush2.msra.mxu0 0.0
  %345 = vmatprep.subr.mxu0 0.0
  %346 = vmatpush2.msra.mxu0 0.0
  %347 = vmatprep.subr.mxu0 0.0
  %348 = vmatpush2.msra.mxu0 0.0
  %349 = vmatprep.subr.mxu0 0.0
  %350 = vmatpush2.msra.mxu0 0.0
  %351 = vmatprep.mubr.f32.mxu0 0.0
  %352 = vmatmul.mubr.f32.gmra.mxu0 %v282
  %v353 = vpop.f32.mrf.mxu0
  %v354 = vadd.f32 0.0, %v353
  %v355 = vpop.f32.mrf.mxu0
  %356 = vmatprep.mubr.f32.mxu0 0.0
  %357 = vmatmul.mubr.f32.gmra.mxu0 %v285
  %v358 = vpop.f32.mrf.mxu0
  %v359 = vadd.f32 0.0, %v358
  %v360 = vpop.f32.mrf.mxu0
  %361 = vdwg.mxu0
  %362 = vxpose.xlu0.b32.start [1/16] %v354, 128
  %363 = vxpose.xlu0.b32.cont [2/16] %v359, 128
  %364 = vxpose.xlu0.b32.cont [3/16] 0.0, 128
  %365 = vxpose.xlu0.b32.cont [4/16] 0.0, 128
  %366 = vxpose.xlu0.b32.cont [5/16] 0.0, 128
  %367 = vxpose.xlu0.b32.cont [6/16] 0.0, 128
  %368 = vxpose.xlu0.b32.cont [7/16] 0.0, 128
  %369 = vxpose.xlu0.b32.cont [8/16] 0.0, 128
  %370 = vxpose.xlu0.b32.cont [9/16] 0.0, 128
  %371 = vxpose.xlu0.b32.cont [10/16] 0.0, 128
  %372 = vxpose.xlu0.b32.cont [11/16] 0.0, 128
  %373 = vxpose.xlu0.b32.cont [12/16] 0.0, 128
  %374 = vxpose.xlu0.b32.cont [13/16] 0.0, 128
  %375 = vxpose.xlu0.b32.cont [14/16] 0.0, 128
  %376 = vxpose.xlu0.b32.cont [15/16] 0.0, 128
  %377 = vxpose.xlu0.b32.end [16/16] 0.0, 128
  %v378 = vpop.trf.xlu0
  %v379 = vpop.trf.xlu0
  %v380 = vpop.trf.xlu0
  %v381 = vpop.trf.xlu0
  %v382 = vpop.trf.xlu0
  %v383 = vpop.trf.xlu0
  %v384 = vpop.trf.xlu0
  %v385 = vpop.trf.xlu0
  %v386 = vpop.trf.xlu0
  %v387 = vpop.trf.xlu0
  %v388 = vpop.trf.xlu0
  %v389 = vpop.trf.xlu0
  %v390 = vpop.trf.xlu0
  %v391 = vpop.trf.xlu0
  %v392 = vpop.trf.xlu0
  %v393 = vpop.trf.xlu0
  %395 = vset.pattern.permute.xlu0 4
  %396 = vperm.xlu0 %395, %v354
  %v397 = vpop.permute.xlu0 %396
  %400 = vset.pattern.permute.xlu0 4
  %401 = vperm.xlu0 %400, %v359
  %v402 = vpop.permute.xlu0 %401
  %v404 = vlaneseq
  %v405 = vshrl.u32 %v404, 7
  %v406 = vsub.s32 0, %v405
  %v407 = vrot.slane %v378, %v406
  %v408 = vadd.f32 %v397, %v407
  %v409 = vadd.f32 %v402, %v407
  %v410 = vmul.f32 %v408, 0.2
  %v411 = vmul.f32 %v409, 0.2
  %v412 = vmax.f32 %v408, %v410
  %v413 = vmax.f32 %v409, %v411
  %v414 = vadd.f32 %v412, %v76
  %v415 = vadd.f32 %v413, %v77
  %v416 = vsel %vm107, %v414, -inf
  %417 = vmax.xlane.f32.xlu0 %v416
  %v418 = vpop.xlane.xlu0 %417
  %v419 = vsel %vm107, %v415, -inf
  %420 = vmax.xlane.f32.xlu0 %v419
  %v421 = vpop.xlane.xlu0 %420
  %v422 = vsub.f32 %v414, %v418
  %v423 = vsub.f32 %v415, %v421
  %v424 = vmul.f32 %v422, 1.442695
  %v425 = vpow.pop %v424
  %v426 = vmul.f32 %v423, 1.442695
  %v427 = vpow.pop %v426
  %v428 = vsel %vm107, %v425, 0.0
  %429 = vadd.xlane.f32.xlu0 %v428
  %v430 = vpop.xlane.xlu0 %429
  %v431 = vsel %vm107, %v427, 0.0
  %432 = vadd.xlane.f32.xlu0 %v431
  %v433 = vpop.xlane.xlu0 %432
  %v434 = vrcp.pop %v430
  %v435 = vmul.f32 1.0, %v434
  %v436 = vrcp.pop %v433
  %v437 = vmul.f32 1.0, %v436
  %v438 = vsel %vm86, 1, 0
  %vm439 = vcmp.eq.s32.totalorder %v438, 1
  %v440 = vsel %vm439, %v269, 0.0
  %v441 = vsel %vm439, %v274, 0.0
  %v443 = vsel %vm107, %v425, 0
  %v446 = vsel %vm107, %v427, 0
  %448 = vmatprep.subr.mxu0 0.0
  %449 = vmatpush1.msra.mxu0 0.0
  %450 = vmatprep.subr.mxu0 0.0
  %451 = vmatpush1.msra.mxu0 0.0
  %452 = vmatprep.subr.mxu0 0.0
  %453 = vmatpush1.msra.mxu0 0.0
  %454 = vmatprep.subr.mxu0 0.0
  %455 = vmatpush1.msra.mxu0 0.0
  %456 = vmatprep.subr.mxu0 0.0
  %457 = vmatpush1.msra.mxu0 0.0
  %458 = vmatprep.subr.mxu0 0.0
  %459 = vmatpush1.msra.mxu0 0.0
  %460 = vmatprep.subr.mxu0 0.0
  %461 = vmatpush1.msra.mxu0 0.0
  %462 = vmatprep.subr.mxu0 0.0
  %463 = vmatpush1.msra.mxu0 0.0
  %464 = vmatprep.subr.mxu0 0.0
  %465 = vmatpush1.msra.mxu0 0.0
  %466 = vmatprep.subr.mxu0 0.0
  %467 = vmatpush1.msra.mxu0 0.0
  %468 = vmatprep.subr.mxu0 0.0
  %469 = vmatpush1.msra.mxu0 0.0
  %470 = vmatprep.subr.mxu0 0.0
  %471 = vmatpush1.msra.mxu0 0.0
  %472 = vmatprep.subr.mxu0 0.0
  %473 = vmatpush1.msra.mxu0 0.0
  %474 = vmatprep.subr.mxu0 0.0
  %475 = vmatpush1.msra.mxu0 0.0
  %476 = vmatprep.subr.mxu0 0.0
  %477 = vmatpush1.msra.mxu0 %v441
  %478 = vmatprep.subr.mxu0 0.0
  %479 = vmatpush1.msra.mxu0 %v440
  %480 = vmatprep.subr.mxu0 0.0
  %481 = vmatpush2.msra.mxu0 0.0
  %482 = vmatprep.subr.mxu0 0.0
  %483 = vmatpush2.msra.mxu0 0.0
  %484 = vmatprep.subr.mxu0 0.0
  %485 = vmatpush2.msra.mxu0 0.0
  %486 = vmatprep.subr.mxu0 0.0
  %487 = vmatpush2.msra.mxu0 0.0
  %488 = vmatprep.subr.mxu0 0.0
  %489 = vmatpush2.msra.mxu0 0.0
  %490 = vmatprep.subr.mxu0 0.0
  %491 = vmatpush2.msra.mxu0 0.0
  %492 = vmatprep.subr.mxu0 0.0
  %493 = vmatpush2.msra.mxu0 0.0
  %494 = vmatprep.subr.mxu0 0.0
  %495 = vmatpush2.msra.mxu0 0.0
  %496 = vmatprep.subr.mxu0 0.0
  %497 = vmatpush2.msra.mxu0 0.0
  %498 = vmatprep.subr.mxu0 0.0
  %499 = vmatpush2.msra.mxu0 0.0
  %500 = vmatprep.subr.mxu0 0.0
  %501 = vmatpush2.msra.mxu0 0.0
  %502 = vmatprep.subr.mxu0 0.0
  %503 = vmatpush2.msra.mxu0 0.0
  %504 = vmatprep.subr.mxu0 0.0
  %505 = vmatpush2.msra.mxu0 0.0
  %506 = vmatprep.subr.mxu0 0.0
  %507 = vmatpush2.msra.mxu0 0.0
  %508 = vmatprep.subr.mxu0 0.0
  %509 = vmatpush2.msra.mxu0 0.0
  %510 = vmatprep.subr.mxu0 0.0
  %511 = vmatpush2.msra.mxu0 0.0
  %512 = vmatprep.mubr.f32.mxu0 0.0
  %513 = vmatmul.mubr.f32.gmra.mxu0 %v443
  %v514 = vpop.f32.mrf.mxu0
  %v515 = vadd.f32 0.0, %v514
  %v516 = vpop.f32.mrf.mxu0
  %517 = vmatprep.mubr.f32.mxu0 0.0
  %518 = vmatmul.mubr.f32.gmra.mxu0 %v446
  %v519 = vpop.f32.mrf.mxu0
  %v520 = vadd.f32 0.0, %v519
  %v521 = vpop.f32.mrf.mxu0
  %522 = vdwg.mxu0
  %v523 = vmul.f32 %v515, %v435
  %v524 = vmul.f32 %v520, %v437
  %525 = vset.pattern.permute.xlu0 5
  %526 = vperm.xlu0 %525, %v354
  %v527 = vpop.permute.xlu0 %526
  %529 = vset.pattern.permute.xlu0 5
  %530 = vperm.xlu0 %529, %v359
  %v531 = vpop.permute.xlu0 %530
  %v533 = vlaneseq
  %v534 = vshrl.u32 %v533, 7
  %v535 = vsub.s32 1, %v534
  %v536 = vrot.slane %v378, %v535
  %v537 = vadd.f32 %v527, %v536
  %v538 = vadd.f32 %v531, %v536
  %v539 = vmul.f32 %v537, 0.2
  %v540 = vmul.f32 %v538, 0.2
  %v541 = vmax.f32 %v537, %v539
  %v542 = vmax.f32 %v538, %v540
  %v543 = vadd.f32 %v541, %v76
  %v544 = vadd.f32 %v542, %v77
  %v545 = vsel %vm107, %v543, -inf
  %546 = vmax.xlane.f32.xlu0 %v545
  %v547 = vpop.xlane.xlu0 %546
  %v548 = vsel %vm107, %v544, -inf
  %549 = vmax.xlane.f32.xlu0 %v548
  %v550 = vpop.xlane.xlu0 %549
  %v551 = vsub.f32 %v543, %v547
  %v552 = vsub.f32 %v544, %v550
  %v553 = vmul.f32 %v551, 1.442695
  %v554 = vpow.pop %v553
  %v555 = vmul.f32 %v552, 1.442695
  %v556 = vpow.pop %v555
  %v557 = vsel %vm107, %v554, 0.0
  %558 = vadd.xlane.f32.xlu0 %v557
  %v559 = vpop.xlane.xlu0 %558
  %v560 = vsel %vm107, %v556, 0.0
  %561 = vadd.xlane.f32.xlu0 %v560
  %v562 = vpop.xlane.xlu0 %561
  %v563 = vrcp.pop %v559
  %v564 = vmul.f32 1.0, %v563
  %v565 = vrcp.pop %v562
  %v566 = vmul.f32 1.0, %v565
  %v567 = vsel %vm89, 1, 0
  %vm568 = vcmp.eq.s32.totalorder %v567, 1
  %v569 = vsel %vm568, %v269, 0.0
  %v570 = vsel %vm568, %v274, 0.0
  %v572 = vsel %vm107, %v554, 0
  %v575 = vsel %vm107, %v556, 0
  %577 = vmatprep.subr.mxu0 0.0
  %578 = vmatpush1.msra.mxu0 0.0
  %579 = vmatprep.subr.mxu0 0.0
  %580 = vmatpush1.msra.mxu0 0.0
  %581 = vmatprep.subr.mxu0 0.0
  %582 = vmatpush1.msra.mxu0 0.0
  %583 = vmatprep.subr.mxu0 0.0
  %584 = vmatpush1.msra.mxu0 0.0
  %585 = vmatprep.subr.mxu0 0.0
  %586 = vmatpush1.msra.mxu0 0.0
  %587 = vmatprep.subr.mxu0 0.0
  %588 = vmatpush1.msra.mxu0 0.0
  %589 = vmatprep.subr.mxu0 0.0
  %590 = vmatpush1.msra.mxu0 0.0
  %591 = vmatprep.subr.mxu0 0.0
  %592 = vmatpush1.msra.mxu0 0.0
  %593 = vmatprep.subr.mxu0 0.0
  %594 = vmatpush1.msra.mxu0 0.0
  %595 = vmatprep.subr.mxu0 0.0
  %596 = vmatpush1.msra.mxu0 0.0
  %597 = vmatprep.subr.mxu0 0.0
  %598 = vmatpush1.msra.mxu0 0.0
  %599 = vmatprep.subr.mxu0 0.0
  %600 = vmatpush1.msra.mxu0 0.0
  %601 = vmatprep.subr.mxu0 0.0
  %602 = vmatpush1.msra.mxu0 0.0
  %603 = vmatprep.subr.mxu0 0.0
  %604 = vmatpush1.msra.mxu0 0.0
  %605 = vmatprep.subr.mxu0 0.0
  %606 = vmatpush1.msra.mxu0 %v570
  %607 = vmatprep.subr.mxu0 0.0
  %608 = vmatpush1.msra.mxu0 %v569
  %609 = vmatprep.subr.mxu0 0.0
  %610 = vmatpush2.msra.mxu0 0.0
  %611 = vmatprep.subr.mxu0 0.0
  %612 = vmatpush2.msra.mxu0 0.0
  %613 = vmatprep.subr.mxu0 0.0
  %614 = vmatpush2.msra.mxu0 0.0
  %615 = vmatprep.subr.mxu0 0.0
  %616 = vmatpush2.msra.mxu0 0.0
  %617 = vmatprep.subr.mxu0 0.0
  %618 = vmatpush2.msra.mxu0 0.0
  %619 = vmatprep.subr.mxu0 0.0
  %620 = vmatpush2.msra.mxu0 0.0
  %621 = vmatprep.subr.mxu0 0.0
  %622 = vmatpush2.msra.mxu0 0.0
  %623 = vmatprep.subr.mxu0 0.0
  %624 = vmatpush2.msra.mxu0 0.0
  %625 = vmatprep.subr.mxu0 0.0
  %626 = vmatpush2.msra.mxu0 0.0
  %627 = vmatprep.subr.mxu0 0.0
  %628 = vmatpush2.msra.mxu0 0.0
  %629 = vmatprep.subr.mxu0 0.0
  %630 = vmatpush2.msra.mxu0 0.0
  %631 = vmatprep.subr.mxu0 0.0
  %632 = vmatpush2.msra.mxu0 0.0
  %633 = vmatprep.subr.mxu0 0.0
  %634 = vmatpush2.msra.mxu0 0.0
  %635 = vmatprep.subr.mxu0 0.0
  %636 = vmatpush2.msra.mxu0 0.0
  %637 = vmatprep.subr.mxu0 0.0
  %638 = vmatpush2.msra.mxu0 0.0
  %639 = vmatprep.subr.mxu0 0.0
  %640 = vmatpush2.msra.mxu0 0.0
  %641 = vmatprep.mubr.f32.mxu0 0.0
  %642 = vmatmul.mubr.f32.gmra.mxu0 %v572
  %v643 = vpop.f32.mrf.mxu0
  %v644 = vadd.f32 0.0, %v643
  %v645 = vpop.f32.mrf.mxu0
  %646 = vmatprep.mubr.f32.mxu0 0.0
  %647 = vmatmul.mubr.f32.gmra.mxu0 %v575
  %v648 = vpop.f32.mrf.mxu0
  %v649 = vadd.f32 0.0, %v648
  %v650 = vpop.f32.mrf.mxu0
  %651 = vdwg.mxu0
  %v652 = vmul.f32 %v644, %v564
  %v653 = vmul.f32 %v649, %v566
  %v654 = vadd.f32 %v523, %v652
  %v655 = vadd.f32 %v524, %v653
  %656 = vset.pattern.permute.xlu0 6
  %657 = vperm.xlu0 %656, %v354
  %v658 = vpop.permute.xlu0 %657
  %660 = vset.pattern.permute.xlu0 6
  %661 = vperm.xlu0 %660, %v359
  %v662 = vpop.permute.xlu0 %661
  %v664 = vlaneseq
  %v665 = vshrl.u32 %v664, 7
  %v666 = vsub.s32 2, %v665
  %v667 = vrot.slane %v378, %v666
  %v668 = vadd.f32 %v658, %v667
  %v669 = vadd.f32 %v662, %v667
  %v670 = vmul.f32 %v668, 0.2
  %v671 = vmul.f32 %v669, 0.2
  %v672 = vmax.f32 %v668, %v670
  %v673 = vmax.f32 %v669, %v671
  %v674 = vadd.f32 %v672, %v76
  %v675 = vadd.f32 %v673, %v77
  %v676 = vsel %vm107, %v674, -inf
  %677 = vmax.xlane.f32.xlu0 %v676
  %v678 = vpop.xlane.xlu0 %677
  %v679 = vsel %vm107, %v675, -inf
  %680 = vmax.xlane.f32.xlu0 %v679
  %v681 = vpop.xlane.xlu0 %680
  %v682 = vsub.f32 %v674, %v678
  %v683 = vsub.f32 %v675, %v681
  %v684 = vmul.f32 %v682, 1.442695
  %v685 = vpow.pop %v684
  %v686 = vmul.f32 %v683, 1.442695
  %v687 = vpow.pop %v686
  %v688 = vsel %vm107, %v685, 0.0
  %689 = vadd.xlane.f32.xlu0 %v688
  %v690 = vpop.xlane.xlu0 %689
  %v691 = vsel %vm107, %v687, 0.0
  %692 = vadd.xlane.f32.xlu0 %v691
  %v693 = vpop.xlane.xlu0 %692
  %v694 = vrcp.pop %v690
  %v695 = vmul.f32 1.0, %v694
  %v696 = vrcp.pop %v693
  %v697 = vmul.f32 1.0, %v696
  %v698 = vsel %vm92, 1, 0
  %vm699 = vcmp.eq.s32.totalorder %v698, 1
  %v700 = vsel %vm699, %v269, 0.0
  %v701 = vsel %vm699, %v274, 0.0
  %v703 = vsel %vm107, %v685, 0
  %v706 = vsel %vm107, %v687, 0
  %708 = vmatprep.subr.mxu0 0.0
  %709 = vmatpush1.msra.mxu0 0.0
  %710 = vmatprep.subr.mxu0 0.0
  %711 = vmatpush1.msra.mxu0 0.0
  %712 = vmatprep.subr.mxu0 0.0
  %713 = vmatpush1.msra.mxu0 0.0
  %714 = vmatprep.subr.mxu0 0.0
  %715 = vmatpush1.msra.mxu0 0.0
  %716 = vmatprep.subr.mxu0 0.0
  %717 = vmatpush1.msra.mxu0 0.0
  %718 = vmatprep.subr.mxu0 0.0
  %719 = vmatpush1.msra.mxu0 0.0
  %720 = vmatprep.subr.mxu0 0.0
  %721 = vmatpush1.msra.mxu0 0.0
  %722 = vmatprep.subr.mxu0 0.0
  %723 = vmatpush1.msra.mxu0 0.0
  %724 = vmatprep.subr.mxu0 0.0
  %725 = vmatpush1.msra.mxu0 0.0
  %726 = vmatprep.subr.mxu0 0.0
  %727 = vmatpush1.msra.mxu0 0.0
  %728 = vmatprep.subr.mxu0 0.0
  %729 = vmatpush1.msra.mxu0 0.0
  %730 = vmatprep.subr.mxu0 0.0
  %731 = vmatpush1.msra.mxu0 0.0
  %732 = vmatprep.subr.mxu0 0.0
  %733 = vmatpush1.msra.mxu0 0.0
  %734 = vmatprep.subr.mxu0 0.0
  %735 = vmatpush1.msra.mxu0 0.0
  %736 = vmatprep.subr.mxu0 0.0
  %737 = vmatpush1.msra.mxu0 %v701
  %738 = vmatprep.subr.mxu0 0.0
  %739 = vmatpush1.msra.mxu0 %v700
  %740 = vmatprep.subr.mxu0 0.0
  %741 = vmatpush2.msra.mxu0 0.0
  %742 = vmatprep.subr.mxu0 0.0
  %743 = vmatpush2.msra.mxu0 0.0
  %744 = vmatprep.subr.mxu0 0.0
  %745 = vmatpush2.msra.mxu0 0.0
  %746 = vmatprep.subr.mxu0 0.0
  %747 = vmatpush2.msra.mxu0 0.0
  %748 = vmatprep.subr.mxu0 0.0
  %749 = vmatpush2.msra.mxu0 0.0
  %750 = vmatprep.subr.mxu0 0.0
  %751 = vmatpush2.msra.mxu0 0.0
  %752 = vmatprep.subr.mxu0 0.0
  %753 = vmatpush2.msra.mxu0 0.0
  %754 = vmatprep.subr.mxu0 0.0
  %755 = vmatpush2.msra.mxu0 0.0
  %756 = vmatprep.subr.mxu0 0.0
  %757 = vmatpush2.msra.mxu0 0.0
  %758 = vmatprep.subr.mxu0 0.0
  %759 = vmatpush2.msra.mxu0 0.0
  %760 = vmatprep.subr.mxu0 0.0
  %761 = vmatpush2.msra.mxu0 0.0
  %762 = vmatprep.subr.mxu0 0.0
  %763 = vmatpush2.msra.mxu0 0.0
  %764 = vmatprep.subr.mxu0 0.0
  %765 = vmatpush2.msra.mxu0 0.0
  %766 = vmatprep.subr.mxu0 0.0
  %767 = vmatpush2.msra.mxu0 0.0
  %768 = vmatprep.subr.mxu0 0.0
  %769 = vmatpush2.msra.mxu0 0.0
  %770 = vmatprep.subr.mxu0 0.0
  %771 = vmatpush2.msra.mxu0 0.0
  %772 = vmatprep.mubr.f32.mxu0 0.0
  %773 = vmatmul.mubr.f32.gmra.mxu0 %v703
  %v774 = vpop.f32.mrf.mxu0
  %v775 = vadd.f32 0.0, %v774
  %v776 = vpop.f32.mrf.mxu0
  %777 = vmatprep.mubr.f32.mxu0 0.0
  %778 = vmatmul.mubr.f32.gmra.mxu0 %v706
  %v779 = vpop.f32.mrf.mxu0
  %v780 = vadd.f32 0.0, %v779
  %v781 = vpop.f32.mrf.mxu0
  %782 = vdwg.mxu0
  %v783 = vmul.f32 %v775, %v695
  %v784 = vmul.f32 %v780, %v697
  %v785 = vadd.f32 %v654, %v783
  %v786 = vadd.f32 %v655, %v784
  %787 = vset.pattern.permute.xlu0 7
  %788 = vperm.xlu0 %787, %v354
  %v789 = vpop.permute.xlu0 %788
  %791 = vset.pattern.permute.xlu0 7
  %792 = vperm.xlu0 %791, %v359
  %v793 = vpop.permute.xlu0 %792
  %v795 = vlaneseq
  %v796 = vshrl.u32 %v795, 7
  %v797 = vsub.s32 3, %v796
  %v798 = vrot.slane %v378, %v797
  %v799 = vadd.f32 %v789, %v798
  %v800 = vadd.f32 %v793, %v798
  %v801 = vmul.f32 %v799, 0.2
  %v802 = vmul.f32 %v800, 0.2
  %v803 = vmax.f32 %v799, %v801
  %v804 = vmax.f32 %v800, %v802
  %v805 = vadd.f32 %v803, %v76
  %v806 = vadd.f32 %v804, %v77
  %v807 = vsel %vm107, %v805, -inf
  %808 = vmax.xlane.f32.xlu0 %v807
  %v809 = vpop.xlane.xlu0 %808
  %v810 = vsel %vm107, %v806, -inf
  %811 = vmax.xlane.f32.xlu0 %v810
  %v812 = vpop.xlane.xlu0 %811
  %v813 = vsub.f32 %v805, %v809
  %v814 = vsub.f32 %v806, %v812
  %v815 = vmul.f32 %v813, 1.442695
  %v816 = vpow.pop %v815
  %v817 = vmul.f32 %v814, 1.442695
  %v818 = vpow.pop %v817
  %v819 = vsel %vm107, %v816, 0.0
  %820 = vadd.xlane.f32.xlu0 %v819
  %v821 = vpop.xlane.xlu0 %820
  %v822 = vsel %vm107, %v818, 0.0
  %823 = vadd.xlane.f32.xlu0 %v822
  %v824 = vpop.xlane.xlu0 %823
  %v825 = vrcp.pop %v821
  %v826 = vmul.f32 1.0, %v825
  %v827 = vrcp.pop %v824
  %v828 = vmul.f32 1.0, %v827
  %v829 = vsel %vm95, 1, 0
  %vm830 = vcmp.eq.s32.totalorder %v829, 1
  %v831 = vsel %vm830, %v269, 0.0
  %v832 = vsel %vm830, %v274, 0.0
  %v834 = vsel %vm107, %v816, 0
  %v837 = vsel %vm107, %v818, 0
  %839 = vmatprep.subr.mxu0 0.0
  %840 = vmatpush1.msra.mxu0 0.0
  %841 = vmatprep.subr.mxu0 0.0
  %842 = vmatpush1.msra.mxu0 0.0
  %843 = vmatprep.subr.mxu0 0.0
  %844 = vmatpush1.msra.mxu0 0.0
  %845 = vmatprep.subr.mxu0 0.0
  %846 = vmatpush1.msra.mxu0 0.0
  %847 = vmatprep.subr.mxu0 0.0
  %848 = vmatpush1.msra.mxu0 0.0
  %849 = vmatprep.subr.mxu0 0.0
  %850 = vmatpush1.msra.mxu0 0.0
  %851 = vmatprep.subr.mxu0 0.0
  %852 = vmatpush1.msra.mxu0 0.0
  %853 = vmatprep.subr.mxu0 0.0
  %854 = vmatpush1.msra.mxu0 0.0
  %855 = vmatprep.subr.mxu0 0.0
  %856 = vmatpush1.msra.mxu0 0.0
  %857 = vmatprep.subr.mxu0 0.0
  %858 = vmatpush1.msra.mxu0 0.0
  %859 = vmatprep.subr.mxu0 0.0
  %860 = vmatpush1.msra.mxu0 0.0
  %861 = vmatprep.subr.mxu0 0.0
  %862 = vmatpush1.msra.mxu0 0.0
  %863 = vmatprep.subr.mxu0 0.0
  %864 = vmatpush1.msra.mxu0 0.0
  %865 = vmatprep.subr.mxu0 0.0
  %866 = vmatpush1.msra.mxu0 0.0
  %867 = vmatprep.subr.mxu0 0.0
  %868 = vmatpush1.msra.mxu0 %v832
  %869 = vmatprep.subr.mxu0 0.0
  %870 = vmatpush1.msra.mxu0 %v831
  %871 = vmatprep.subr.mxu0 0.0
  %872 = vmatpush2.msra.mxu0 0.0
  %873 = vmatprep.subr.mxu0 0.0
  %874 = vmatpush2.msra.mxu0 0.0
  %875 = vmatprep.subr.mxu0 0.0
  %876 = vmatpush2.msra.mxu0 0.0
  %877 = vmatprep.subr.mxu0 0.0
  %878 = vmatpush2.msra.mxu0 0.0
  %879 = vmatprep.subr.mxu0 0.0
  %880 = vmatpush2.msra.mxu0 0.0
  %881 = vmatprep.subr.mxu0 0.0
  %882 = vmatpush2.msra.mxu0 0.0
  %883 = vmatprep.subr.mxu0 0.0
  %884 = vmatpush2.msra.mxu0 0.0
  %885 = vmatprep.subr.mxu0 0.0
  %886 = vmatpush2.msra.mxu0 0.0
  %887 = vmatprep.subr.mxu0 0.0
  %888 = vmatpush2.msra.mxu0 0.0
  %889 = vmatprep.subr.mxu0 0.0
  %890 = vmatpush2.msra.mxu0 0.0
  %891 = vmatprep.subr.mxu0 0.0
  %892 = vmatpush2.msra.mxu0 0.0
  %893 = vmatprep.subr.mxu0 0.0
  %894 = vmatpush2.msra.mxu0 0.0
  %895 = vmatprep.subr.mxu0 0.0
  %896 = vmatpush2.msra.mxu0 0.0
  %897 = vmatprep.subr.mxu0 0.0
  %898 = vmatpush2.msra.mxu0 0.0
  %899 = vmatprep.subr.mxu0 0.0
  %900 = vmatpush2.msra.mxu0 0.0
  %901 = vmatprep.subr.mxu0 0.0
  %902 = vmatpush2.msra.mxu0 0.0
  %903 = vmatprep.mubr.f32.mxu0 0.0
  %904 = vmatmul.mubr.f32.gmra.mxu0 %v834
  %v905 = vpop.f32.mrf.mxu0
  %v906 = vadd.f32 0.0, %v905
  %v907 = vpop.f32.mrf.mxu0
  %908 = vmatprep.mubr.f32.mxu0 0.0
  %909 = vmatmul.mubr.f32.gmra.mxu0 %v837
  %v910 = vpop.f32.mrf.mxu0
  %v911 = vadd.f32 0.0, %v910
  %v912 = vpop.f32.mrf.mxu0
  %913 = vdwg.mxu0
  %v914 = vmul.f32 %v906, %v826
  %v915 = vmul.f32 %v911, %v828
  %v916 = vadd.f32 %v785, %v914
  %v917 = vadd.f32 %v786, %v915
  %v918 = vld [vmem:[%s9] sm:$0x1]
  %v920 = vlaneseq
  %v921 = vshrl.u32 %v920, 7
  %v922 = vsub.s32 0, %v921
  %v923 = vrot.slane %v918, %v922
  %v925 = vadd.f32 %v916, %v923
  %v926 = vadd.f32 %v917, %v923
  %v927 = vsel %vm195, %v925, 0.0
  %928 = vadd.xlane.f32.xlu0 %v927
  %v929 = vpop.xlane.xlu0 %928
  %v930 = vsel %vm195, %v926, 0.0
  %931 = vadd.xlane.f32.xlu0 %v930
  %v932 = vpop.xlane.xlu0 %931
  %v933 = vmul.f32 %v925, %v925
  %v934 = vmul.f32 %v926, %v926
  %v935 = vsel %vm195, %v933, 0.0
  %936 = vadd.xlane.f32.xlu0 %v935
  %v937 = vpop.xlane.xlu0 %936
  %v938 = vsel %vm195, %v934, 0.0
  %939 = vadd.xlane.f32.xlu0 %v938
  %v940 = vpop.xlane.xlu0 %939
  %v942 = vsel %vm107, %v80, 0
  %944 = vmatprep.subr.mxu0 0.0
  %945 = vmatpush1.msra.mxu0 0.0
  %946 = vmatprep.subr.mxu0 0.0
  %947 = vmatpush1.msra.mxu0 0.0
  %948 = vmatprep.subr.mxu0 0.0
  %949 = vmatpush1.msra.mxu0 0.0
  %950 = vmatprep.subr.mxu0 0.0
  %951 = vmatpush1.msra.mxu0 0.0
  %952 = vmatprep.subr.mxu0 0.0
  %953 = vmatpush1.msra.mxu0 0.0
  %954 = vmatprep.subr.mxu0 0.0
  %955 = vmatpush1.msra.mxu0 0.0
  %956 = vmatprep.subr.mxu0 0.0
  %957 = vmatpush1.msra.mxu0 0.0
  %958 = vmatprep.subr.mxu0 0.0
  %959 = vmatpush1.msra.mxu0 0.0
  %960 = vmatprep.subr.mxu0 0.0
  %961 = vmatpush1.msra.mxu0 0.0
  %962 = vmatprep.subr.mxu0 0.0
  %963 = vmatpush1.msra.mxu0 0.0
  %964 = vmatprep.subr.mxu0 0.0
  %965 = vmatpush1.msra.mxu0 0.0
  %966 = vmatprep.subr.mxu0 0.0
  %967 = vmatpush1.msra.mxu0 0.0
  %968 = vmatprep.subr.mxu0 0.0
  %969 = vmatpush1.msra.mxu0 0.0
  %970 = vmatprep.subr.mxu0 0.0
  %971 = vmatpush1.msra.mxu0 0.0
  %972 = vmatprep.subr.mxu0 0.0
  %973 = vmatpush1.msra.mxu0 %v932
  %974 = vmatprep.subr.mxu0 0.0
  %975 = vmatpush1.msra.mxu0 %v929
  %976 = vmatprep.subr.mxu0 0.0
  %977 = vmatpush2.msra.mxu0 0.0
  %978 = vmatprep.subr.mxu0 0.0
  %979 = vmatpush2.msra.mxu0 0.0
  %980 = vmatprep.subr.mxu0 0.0
  %981 = vmatpush2.msra.mxu0 0.0
  %982 = vmatprep.subr.mxu0 0.0
  %983 = vmatpush2.msra.mxu0 0.0
  %984 = vmatprep.subr.mxu0 0.0
  %985 = vmatpush2.msra.mxu0 0.0
  %986 = vmatprep.subr.mxu0 0.0
  %987 = vmatpush2.msra.mxu0 0.0
  %988 = vmatprep.subr.mxu0 0.0
  %989 = vmatpush2.msra.mxu0 0.0
  %990 = vmatprep.subr.mxu0 0.0
  %991 = vmatpush2.msra.mxu0 0.0
  %992 = vmatprep.subr.mxu0 0.0
  %993 = vmatpush2.msra.mxu0 0.0
  %994 = vmatprep.subr.mxu0 0.0
  %995 = vmatpush2.msra.mxu0 0.0
  %996 = vmatprep.subr.mxu0 0.0
  %997 = vmatpush2.msra.mxu0 0.0
  %998 = vmatprep.subr.mxu0 0.0
  %999 = vmatpush2.msra.mxu0 0.0
  %1000 = vmatprep.subr.mxu0 0.0
  %1001 = vmatpush2.msra.mxu0 0.0
  %1002 = vmatprep.subr.mxu0 0.0
  %1003 = vmatpush2.msra.mxu0 0.0
  %1004 = vmatprep.subr.mxu0 0.0
  %1005 = vmatpush2.msra.mxu0 0.0
  %1006 = vmatprep.subr.mxu0 0.0
  %1007 = vmatpush2.msra.mxu0 0.0
  %1008 = vmatprep.mubr.f32.mxu0 0.0
  %1009 = vmatmul.mubr.f32.gmra.mxu0 %v942
  %v1010 = vpop.f32.mrf.mxu0
  %v1011 = vadd.f32 0.0, %v1010
  %v1012 = vpop.f32.mrf.mxu0
  %1013 = vdwg.mxu0
  %v1014 = vmul.f32 %v1011, %v81
  %1015 = vmatprep.subr.mxu0 0.0
  %1016 = vmatpush1.msra.mxu0 0.0
  %1017 = vmatprep.subr.mxu0 0.0
  %1018 = vmatpush1.msra.mxu0 0.0
  %1019 = vmatprep.subr.mxu0 0.0
  %1020 = vmatpush1.msra.mxu0 0.0
  %1021 = vmatprep.subr.mxu0 0.0
  %1022 = vmatpush1.msra.mxu0 0.0
  %1023 = vmatprep.subr.mxu0 0.0
  %1024 = vmatpush1.msra.mxu0 0.0
  %1025 = vmatprep.subr.mxu0 0.0
  %1026 = vmatpush1.msra.mxu0 0.0
  %1027 = vmatprep.subr.mxu0 0.0
  %1028 = vmatpush1.msra.mxu0 0.0
  %1029 = vmatprep.subr.mxu0 0.0
  %1030 = vmatpush1.msra.mxu0 0.0
  %1031 = vmatprep.subr.mxu0 0.0
  %1032 = vmatpush1.msra.mxu0 0.0
  %1033 = vmatprep.subr.mxu0 0.0
  %1034 = vmatpush1.msra.mxu0 0.0
  %1035 = vmatprep.subr.mxu0 0.0
  %1036 = vmatpush1.msra.mxu0 0.0
  %1037 = vmatprep.subr.mxu0 0.0
  %1038 = vmatpush1.msra.mxu0 0.0
  %1039 = vmatprep.subr.mxu0 0.0
  %1040 = vmatpush1.msra.mxu0 0.0
  %1041 = vmatprep.subr.mxu0 0.0
  %1042 = vmatpush1.msra.mxu0 0.0
  %1043 = vmatprep.subr.mxu0 0.0
  %1044 = vmatpush1.msra.mxu0 %v940
  %1045 = vmatprep.subr.mxu0 0.0
  %1046 = vmatpush1.msra.mxu0 %v937
  %1047 = vmatprep.subr.mxu0 0.0
  %1048 = vmatpush2.msra.mxu0 0.0
  %1049 = vmatprep.subr.mxu0 0.0
  %1050 = vmatpush2.msra.mxu0 0.0
  %1051 = vmatprep.subr.mxu0 0.0
  %1052 = vmatpush2.msra.mxu0 0.0
  %1053 = vmatprep.subr.mxu0 0.0
  %1054 = vmatpush2.msra.mxu0 0.0
  %1055 = vmatprep.subr.mxu0 0.0
  %1056 = vmatpush2.msra.mxu0 0.0
  %1057 = vmatprep.subr.mxu0 0.0
  %1058 = vmatpush2.msra.mxu0 0.0
  %1059 = vmatprep.subr.mxu0 0.0
  %1060 = vmatpush2.msra.mxu0 0.0
  %1061 = vmatprep.subr.mxu0 0.0
  %1062 = vmatpush2.msra.mxu0 0.0
  %1063 = vmatprep.subr.mxu0 0.0
  %1064 = vmatpush2.msra.mxu0 0.0
  %1065 = vmatprep.subr.mxu0 0.0
  %1066 = vmatpush2.msra.mxu0 0.0
  %1067 = vmatprep.subr.mxu0 0.0
  %1068 = vmatpush2.msra.mxu0 0.0
  %1069 = vmatprep.subr.mxu0 0.0
  %1070 = vmatpush2.msra.mxu0 0.0
  %1071 = vmatprep.subr.mxu0 0.0
  %1072 = vmatpush2.msra.mxu0 0.0
  %1073 = vmatprep.subr.mxu0 0.0
  %1074 = vmatpush2.msra.mxu0 0.0
  %1075 = vmatprep.subr.mxu0 0.0
  %1076 = vmatpush2.msra.mxu0 0.0
  %1077 = vmatprep.subr.mxu0 0.0
  %1078 = vmatpush2.msra.mxu0 0.0
  %1079 = vmatprep.mubr.f32.mxu0 0.0
  %1080 = vmatmul.mubr.f32.gmra.mxu0 %v942
  %v1081 = vpop.f32.mrf.mxu0
  %v1082 = vadd.f32 0.0, %v1081
  %v1083 = vpop.f32.mrf.mxu0
  %1084 = vdwg.mxu0
  %v1085 = vmul.f32 %v1082, %v81
  %v1086 = vmul.f32 %v1014, %v1014
  %v1087 = vsub.f32 %v1085, %v1086
  %v1088 = vmax.f32 %v1087, 0.0
  %v1089 = vadd.f32 %v1088, 1e-05
  %v1090 = vrsqrt.pop %v1089
  %vm1091 = vcmask 15360
  %v1093 = vsel %vm1091, %v78, 0
  %v1096 = vsel %vm1091, %v79, 0
  %vm1098 = vcmask 1041408
  %v1100 = vsel %vm1098, %v1014, 0
  %1102 = vmatprep.subr.mxu0 0.0
  %1103 = vmatpush1.msra.mxu0 0.0
  %1104 = vmatprep.subr.mxu0 0.0
  %1105 = vmatpush1.msra.mxu0 0.0
  %1106 = vmatprep.subr.mxu0 0.0
  %1107 = vmatpush1.msra.mxu0 0.0
  %1108 = vmatprep.subr.mxu0 0.0
  %1109 = vmatpush1.msra.mxu0 0.0
  %1110 = vmatprep.subr.mxu0 0.0
  %1111 = vmatpush1.msra.mxu0 0.0
  %1112 = vmatprep.subr.mxu0 0.0
  %1113 = vmatpush1.msra.mxu0 0.0
  %1114 = vmatprep.subr.mxu0 0.0
  %1115 = vmatpush1.msra.mxu0 0.0
  %1116 = vmatprep.subr.mxu0 0.0
  %1117 = vmatpush1.msra.mxu0 0.0
  %1118 = vmatprep.subr.mxu0 0.0
  %1119 = vmatpush1.msra.mxu0 0.0
  %1120 = vmatprep.subr.mxu0 0.0
  %1121 = vmatpush1.msra.mxu0 0.0
  %1122 = vmatprep.subr.mxu0 0.0
  %1123 = vmatpush1.msra.mxu0 0.0
  %1124 = vmatprep.subr.mxu0 0.0
  %1125 = vmatpush1.msra.mxu0 0.0
  %1126 = vmatprep.subr.mxu0 0.0
  %1127 = vmatpush1.msra.mxu0 0.0
  %1128 = vmatprep.subr.mxu0 0.0
  %1129 = vmatpush1.msra.mxu0 0.0
  %1130 = vmatprep.subr.mxu0 0.0
  %1131 = vmatpush1.msra.mxu0 0.0
  %1132 = vmatprep.subr.mxu0 0.0
  %1133 = vmatpush1.msra.mxu0 %v1100
  %1134 = vmatprep.subr.mxu0 0.0
  %1135 = vmatpush2.msra.mxu0 0.0
  %1136 = vmatprep.subr.mxu0 0.0
  %1137 = vmatpush2.msra.mxu0 0.0
  %1138 = vmatprep.subr.mxu0 0.0
  %1139 = vmatpush2.msra.mxu0 0.0
  %1140 = vmatprep.subr.mxu0 0.0
  %1141 = vmatpush2.msra.mxu0 0.0
  %1142 = vmatprep.subr.mxu0 0.0
  %1143 = vmatpush2.msra.mxu0 0.0
  %1144 = vmatprep.subr.mxu0 0.0
  %1145 = vmatpush2.msra.mxu0 0.0
  %1146 = vmatprep.subr.mxu0 0.0
  %1147 = vmatpush2.msra.mxu0 0.0
  %1148 = vmatprep.subr.mxu0 0.0
  %1149 = vmatpush2.msra.mxu0 0.0
  %1150 = vmatprep.subr.mxu0 0.0
  %1151 = vmatpush2.msra.mxu0 0.0
  %1152 = vmatprep.subr.mxu0 0.0
  %1153 = vmatpush2.msra.mxu0 0.0
  %1154 = vmatprep.subr.mxu0 0.0
  %1155 = vmatpush2.msra.mxu0 0.0
  %1156 = vmatprep.subr.mxu0 0.0
  %1157 = vmatpush2.msra.mxu0 0.0
  %1158 = vmatprep.subr.mxu0 0.0
  %1159 = vmatpush2.msra.mxu0 0.0
  %1160 = vmatprep.subr.mxu0 0.0
  %1161 = vmatpush2.msra.mxu0 0.0
  %1162 = vmatprep.subr.mxu0 0.0
  %1163 = vmatpush2.msra.mxu0 0.0
  %1164 = vmatprep.subr.mxu0 0.0
  %1165 = vmatpush2.msra.mxu0 0.0
  %1166 = vmatprep.mubr.f32.mxu0 0.0
  %1167 = vmatmul.mubr.f32.gmra.mxu0 %v1093
  %v1168 = vpop.f32.mrf.mxu0
  %v1169 = vadd.f32 0.0, %v1168
  %v1170 = vpop.f32.mrf.mxu0
  %1171 = vmatprep.mubr.f32.mxu0 0.0
  %1172 = vmatmul.mubr.f32.gmra.mxu0 %v1096
  %v1173 = vpop.f32.mrf.mxu0
  %v1174 = vadd.f32 0.0, %v1173
  %v1175 = vpop.f32.mrf.mxu0
  %1176 = vdwg.mxu0
  %v1178 = vsel %vm1098, %v1090, 0
  %1180 = vmatprep.subr.mxu0 0.0
  %1181 = vmatpush1.msra.mxu0 0.0
  %1182 = vmatprep.subr.mxu0 0.0
  %1183 = vmatpush1.msra.mxu0 0.0
  %1184 = vmatprep.subr.mxu0 0.0
  %1185 = vmatpush1.msra.mxu0 0.0
  %1186 = vmatprep.subr.mxu0 0.0
  %1187 = vmatpush1.msra.mxu0 0.0
  %1188 = vmatprep.subr.mxu0 0.0
  %1189 = vmatpush1.msra.mxu0 0.0
  %1190 = vmatprep.subr.mxu0 0.0
  %1191 = vmatpush1.msra.mxu0 0.0
  %1192 = vmatprep.subr.mxu0 0.0
  %1193 = vmatpush1.msra.mxu0 0.0
  %1194 = vmatprep.subr.mxu0 0.0
  %1195 = vmatpush1.msra.mxu0 0.0
  %1196 = vmatprep.subr.mxu0 0.0
  %1197 = vmatpush1.msra.mxu0 0.0
  %1198 = vmatprep.subr.mxu0 0.0
  %1199 = vmatpush1.msra.mxu0 0.0
  %1200 = vmatprep.subr.mxu0 0.0
  %1201 = vmatpush1.msra.mxu0 0.0
  %1202 = vmatprep.subr.mxu0 0.0
  %1203 = vmatpush1.msra.mxu0 0.0
  %1204 = vmatprep.subr.mxu0 0.0
  %1205 = vmatpush1.msra.mxu0 0.0
  %1206 = vmatprep.subr.mxu0 0.0
  %1207 = vmatpush1.msra.mxu0 0.0
  %1208 = vmatprep.subr.mxu0 0.0
  %1209 = vmatpush1.msra.mxu0 0.0
  %1210 = vmatprep.subr.mxu0 0.0
  %1211 = vmatpush1.msra.mxu0 %v1178
  %1212 = vmatprep.subr.mxu0 0.0
  %1213 = vmatpush2.msra.mxu0 0.0
  %1214 = vmatprep.subr.mxu0 0.0
  %1215 = vmatpush2.msra.mxu0 0.0
  %1216 = vmatprep.subr.mxu0 0.0
  %1217 = vmatpush2.msra.mxu0 0.0
  %1218 = vmatprep.subr.mxu0 0.0
  %1219 = vmatpush2.msra.mxu0 0.0
  %1220 = vmatprep.subr.mxu0 0.0
  %1221 = vmatpush2.msra.mxu0 0.0
  %1222 = vmatprep.subr.mxu0 0.0
  %1223 = vmatpush2.msra.mxu0 0.0
  %1224 = vmatprep.subr.mxu0 0.0
  %1225 = vmatpush2.msra.mxu0 0.0
  %1226 = vmatprep.subr.mxu0 0.0
  %1227 = vmatpush2.msra.mxu0 0.0
  %1228 = vmatprep.subr.mxu0 0.0
  %1229 = vmatpush2.msra.mxu0 0.0
  %1230 = vmatprep.subr.mxu0 0.0
  %1231 = vmatpush2.msra.mxu0 0.0
  %1232 = vmatprep.subr.mxu0 0.0
  %1233 = vmatpush2.msra.mxu0 0.0
  %1234 = vmatprep.subr.mxu0 0.0
  %1235 = vmatpush2.msra.mxu0 0.0
  %1236 = vmatprep.subr.mxu0 0.0
  %1237 = vmatpush2.msra.mxu0 0.0
  %1238 = vmatprep.subr.mxu0 0.0
  %1239 = vmatpush2.msra.mxu0 0.0
  %1240 = vmatprep.subr.mxu0 0.0
  %1241 = vmatpush2.msra.mxu0 0.0
  %1242 = vmatprep.subr.mxu0 0.0
  %1243 = vmatpush2.msra.mxu0 0.0
  %1244 = vmatprep.mubr.f32.mxu0 0.0
  %1245 = vmatmul.mubr.f32.gmra.mxu0 %v1093
  %v1246 = vpop.f32.mrf.mxu0
  %v1247 = vadd.f32 0.0, %v1246
  %v1248 = vpop.f32.mrf.mxu0
  %1249 = vmatprep.mubr.f32.mxu0 0.0
  %1250 = vmatmul.mubr.f32.gmra.mxu0 %v1096
  %v1251 = vpop.f32.mrf.mxu0
  %v1252 = vadd.f32 0.0, %v1251
  %v1253 = vpop.f32.mrf.mxu0
  %1254 = vdwg.mxu0
  %1256 = vset.pattern.permute.xlu0 0
  %1257 = vperm.xlu0 %1256, %v1169
  %v1258 = vpop.permute.xlu0 %1257
  %1261 = vset.pattern.permute.xlu0 0
  %1262 = vperm.xlu0 %1261, %v1174
  %v1263 = vpop.permute.xlu0 %1262
  %v1265 = vsub.f32 %v925, %v1258
  %v1266 = vsub.f32 %v926, %v1263
  %1268 = vset.pattern.permute.xlu0 0
  %1269 = vperm.xlu0 %1268, %v1247
  %v1270 = vpop.permute.xlu0 %1269
  %1273 = vset.pattern.permute.xlu0 0
  %1274 = vperm.xlu0 %1273, %v1252
  %v1275 = vpop.permute.xlu0 %1274
  %v1277 = vmul.f32 %v1265, %v1270
  %v1278 = vmul.f32 %v1266, %v1275
  %v1279 = vld [vmem:[%s10] sm:$0x1]
  %v1281 = vlaneseq
  %v1282 = vshrl.u32 %v1281, 7
  %v1283 = vsub.s32 0, %v1282
  %v1284 = vrot.slane %v1279, %v1283
  %v1286 = vmul.f32 %v1277, %v1284
  %v1287 = vmul.f32 %v1278, %v1284
  %v1288 = vld [vmem:[%s11] sm:$0x1]
  %v1290 = vlaneseq
  %v1291 = vshrl.u32 %v1290, 7
  %v1292 = vsub.s32 0, %v1291
  %v1293 = vrot.slane %v1288, %v1292
  %v1295 = vadd.f32 %v1286, %v1293
  %v1296 = vadd.f32 %v1287, %v1293
  %v1297 = vmax.f32 %v1295, 0.0
  %v1298 = vmax.f32 %v1296, 0.0
  %v1299 = vld [vmem:[%s12] sm:$0xff]
  %v1300 = vld [vmem:[%s12 + $0x8] sm:$0xff]
  %v1301 = vld [vmem:[%s12 + $0x10] sm:$0xff]
  %v1302 = vld [vmem:[%s12 + $0x18] sm:$0xff]
  %v1304 = vsel %vm195, %v1297, 0
  %v1307 = vsel %vm195, %v1298, 0
  %1309 = vmatprep.subr.mxu0 0.0
  %1310 = vmatpush1.msra.mxu0 0.0
  %1311 = vmatprep.subr.mxu0 0.0
  %1312 = vmatpush1.msra.mxu0 0.0
  %1313 = vmatprep.subr.mxu0 0.0
  %1314 = vmatpush1.msra.mxu0 0.0
  %1315 = vmatprep.subr.mxu0 0.0
  %1316 = vmatpush1.msra.mxu0 0.0
  %1317 = vmatprep.subr.mxu0 0.0
  %1318 = vmatpush1.msra.mxu0 0.0
  %1319 = vmatprep.subr.mxu0 0.0
  %1320 = vmatpush1.msra.mxu0 0.0
  %1321 = vmatprep.subr.mxu0 0.0
  %1322 = vmatpush1.msra.mxu0 0.0
  %1323 = vmatprep.subr.mxu0 0.0
  %1324 = vmatpush1.msra.mxu0 0.0
  %1325 = vmatprep.subr.mxu0 0.0
  %1326 = vmatpush1.msra.mxu0 0.0
  %1327 = vmatprep.subr.mxu0 0.0
  %1328 = vmatpush1.msra.mxu0 0.0
  %1329 = vmatprep.subr.mxu0 0.0
  %1330 = vmatpush1.msra.mxu0 0.0
  %1331 = vmatprep.subr.mxu0 0.0
  %1332 = vmatpush1.msra.mxu0 0.0
  %1333 = vmatprep.subr.mxu0 0.0
  %1334 = vmatpush1.msra.mxu0 %v1302
  %1335 = vmatprep.subr.mxu0 0.0
  %1336 = vmatpush1.msra.mxu0 %v1301
  %1337 = vmatprep.subr.mxu0 0.0
  %1338 = vmatpush1.msra.mxu0 %v1300
  %1339 = vmatprep.subr.mxu0 0.0
  %1340 = vmatpush1.msra.mxu0 %v1299
  %1341 = vmatprep.subr.mxu0 0.0
  %1342 = vmatpush2.msra.mxu0 0.0
  %1343 = vmatprep.subr.mxu0 0.0
  %1344 = vmatpush2.msra.mxu0 0.0
  %1345 = vmatprep.subr.mxu0 0.0
  %1346 = vmatpush2.msra.mxu0 0.0
  %1347 = vmatprep.subr.mxu0 0.0
  %1348 = vmatpush2.msra.mxu0 0.0
  %1349 = vmatprep.subr.mxu0 0.0
  %1350 = vmatpush2.msra.mxu0 0.0
  %1351 = vmatprep.subr.mxu0 0.0
  %1352 = vmatpush2.msra.mxu0 0.0
  %1353 = vmatprep.subr.mxu0 0.0
  %1354 = vmatpush2.msra.mxu0 0.0
  %1355 = vmatprep.subr.mxu0 0.0
  %1356 = vmatpush2.msra.mxu0 0.0
  %1357 = vmatprep.subr.mxu0 0.0
  %1358 = vmatpush2.msra.mxu0 0.0
  %1359 = vmatprep.subr.mxu0 0.0
  %1360 = vmatpush2.msra.mxu0 0.0
  %1361 = vmatprep.subr.mxu0 0.0
  %1362 = vmatpush2.msra.mxu0 0.0
  %1363 = vmatprep.subr.mxu0 0.0
  %1364 = vmatpush2.msra.mxu0 0.0
  %1365 = vmatprep.subr.mxu0 0.0
  %1366 = vmatpush2.msra.mxu0 0.0
  %1367 = vmatprep.subr.mxu0 0.0
  %1368 = vmatpush2.msra.mxu0 0.0
  %1369 = vmatprep.subr.mxu0 0.0
  %1370 = vmatpush2.msra.mxu0 0.0
  %1371 = vmatprep.subr.mxu0 0.0
  %1372 = vmatpush2.msra.mxu0 0.0
  %1373 = vmatprep.mubr.f32.mxu0 0.0
  %1374 = vmatmul.mubr.f32.gmra.mxu0 %v1304
  %v1375 = vpop.f32.mrf.mxu0
  %v1376 = vadd.f32 0.0, %v1375
  %v1377 = vpop.f32.mrf.mxu0
  %1378 = vmatprep.mubr.f32.mxu0 0.0
  %1379 = vmatmul.mubr.f32.gmra.mxu0 %v1307
  %v1380 = vpop.f32.mrf.mxu0
  %v1381 = vadd.f32 0.0, %v1380
  %v1382 = vpop.f32.mrf.mxu0
  %1383 = vdwg.mxu0
  %v1384 = vld [vmem:[%s13] sm:$0xff]
  %v1385 = vld [vmem:[%s13 + $0x8] sm:$0xff]
  %v1386 = vld [vmem:[%s13 + $0x10] sm:$0xff]
  %v1387 = vld [vmem:[%s13 + $0x18] sm:$0xff]
  %v1389 = vsel %vm195, %v1376, 0
  %v1392 = vsel %vm195, %v1381, 0
  %1394 = vmatprep.subr.mxu0 0.0
  %1395 = vmatpush1.msra.mxu0 0.0
  %1396 = vmatprep.subr.mxu0 0.0
  %1397 = vmatpush1.msra.mxu0 0.0
  %1398 = vmatprep.subr.mxu0 0.0
  %1399 = vmatpush1.msra.mxu0 0.0
  %1400 = vmatprep.subr.mxu0 0.0
  %1401 = vmatpush1.msra.mxu0 0.0
  %1402 = vmatprep.subr.mxu0 0.0
  %1403 = vmatpush1.msra.mxu0 0.0
  %1404 = vmatprep.subr.mxu0 0.0
  %1405 = vmatpush1.msra.mxu0 0.0
  %1406 = vmatprep.subr.mxu0 0.0
  %1407 = vmatpush1.msra.mxu0 0.0
  %1408 = vmatprep.subr.mxu0 0.0
  %1409 = vmatpush1.msra.mxu0 0.0
  %1410 = vmatprep.subr.mxu0 0.0
  %1411 = vmatpush1.msra.mxu0 0.0
  %1412 = vmatprep.subr.mxu0 0.0
  %1413 = vmatpush1.msra.mxu0 0.0
  %1414 = vmatprep.subr.mxu0 0.0
  %1415 = vmatpush1.msra.mxu0 0.0
  %1416 = vmatprep.subr.mxu0 0.0
  %1417 = vmatpush1.msra.mxu0 0.0
  %1418 = vmatprep.subr.mxu0 0.0
  %1419 = vmatpush1.msra.mxu0 %v1387
  %1420 = vmatprep.subr.mxu0 0.0
  %1421 = vmatpush1.msra.mxu0 %v1386
  %1422 = vmatprep.subr.mxu0 0.0
  %1423 = vmatpush1.msra.mxu0 %v1385
  %1424 = vmatprep.subr.mxu0 0.0
  %1425 = vmatpush1.msra.mxu0 %v1384
  %1426 = vmatprep.subr.mxu0 0.0
  %1427 = vmatpush2.msra.mxu0 0.0
  %1428 = vmatprep.subr.mxu0 0.0
  %1429 = vmatpush2.msra.mxu0 0.0
  %1430 = vmatprep.subr.mxu0 0.0
  %1431 = vmatpush2.msra.mxu0 0.0
  %1432 = vmatprep.subr.mxu0 0.0
  %1433 = vmatpush2.msra.mxu0 0.0
  %1434 = vmatprep.subr.mxu0 0.0
  %1435 = vmatpush2.msra.mxu0 0.0
  %1436 = vmatprep.subr.mxu0 0.0
  %1437 = vmatpush2.msra.mxu0 0.0
  %1438 = vmatprep.subr.mxu0 0.0
  %1439 = vmatpush2.msra.mxu0 0.0
  %1440 = vmatprep.subr.mxu0 0.0
  %1441 = vmatpush2.msra.mxu0 0.0
  %1442 = vmatprep.subr.mxu0 0.0
  %1443 = vmatpush2.msra.mxu0 0.0
  %1444 = vmatprep.subr.mxu0 0.0
  %1445 = vmatpush2.msra.mxu0 0.0
  %1446 = vmatprep.subr.mxu0 0.0
  %1447 = vmatpush2.msra.mxu0 0.0
  %1448 = vmatprep.subr.mxu0 0.0
  %1449 = vmatpush2.msra.mxu0 0.0
  %1450 = vmatprep.subr.mxu0 0.0
  %1451 = vmatpush2.msra.mxu0 0.0
  %1452 = vmatprep.subr.mxu0 0.0
  %1453 = vmatpush2.msra.mxu0 0.0
  %1454 = vmatprep.subr.mxu0 0.0
  %1455 = vmatpush2.msra.mxu0 0.0
  %1456 = vmatprep.subr.mxu0 0.0
  %1457 = vmatpush2.msra.mxu0 0.0
  %1458 = vmatprep.mubr.f32.mxu0 0.0
  %1459 = vmatmul.mubr.f32.gmra.mxu0 %v1389
  %v1460 = vpop.f32.mrf.mxu0
  %v1461 = vadd.f32 0.0, %v1460
  %v1462 = vpop.f32.mrf.mxu0
  %1463 = vmatprep.mubr.f32.mxu0 0.0
  %1464 = vmatmul.mubr.f32.gmra.mxu0 %v1392
  %v1465 = vpop.f32.mrf.mxu0
  %v1466 = vadd.f32 0.0, %v1465
  %v1467 = vpop.f32.mrf.mxu0
  %1468 = vdwg.mxu0
  %1469 = vxpose.xlu0.b32.start [1/16] %v1461, 128
  %1470 = vxpose.xlu0.b32.cont [2/16] %v1466, 128
  %1471 = vxpose.xlu0.b32.cont [3/16] 0.0, 128
  %1472 = vxpose.xlu0.b32.cont [4/16] 0.0, 128
  %1473 = vxpose.xlu0.b32.cont [5/16] 0.0, 128
  %1474 = vxpose.xlu0.b32.cont [6/16] 0.0, 128
  %1475 = vxpose.xlu0.b32.cont [7/16] 0.0, 128
  %1476 = vxpose.xlu0.b32.cont [8/16] 0.0, 128
  %1477 = vxpose.xlu0.b32.cont [9/16] 0.0, 128
  %1478 = vxpose.xlu0.b32.cont [10/16] 0.0, 128
  %1479 = vxpose.xlu0.b32.cont [11/16] 0.0, 128
  %1480 = vxpose.xlu0.b32.cont [12/16] 0.0, 128
  %1481 = vxpose.xlu0.b32.cont [13/16] 0.0, 128
  %1482 = vxpose.xlu0.b32.cont [14/16] 0.0, 128
  %1483 = vxpose.xlu0.b32.cont [15/16] 0.0, 128
  %1484 = vxpose.xlu0.b32.end [16/16] 0.0, 128
  %v1485 = vpop.trf.xlu0
  %v1486 = vpop.trf.xlu0
  %v1487 = vpop.trf.xlu0
  %v1488 = vpop.trf.xlu0
  %v1489 = vpop.trf.xlu0
  %v1490 = vpop.trf.xlu0
  %v1491 = vpop.trf.xlu0
  %v1492 = vpop.trf.xlu0
  %v1493 = vpop.trf.xlu0
  %v1494 = vpop.trf.xlu0
  %v1495 = vpop.trf.xlu0
  %v1496 = vpop.trf.xlu0
  %v1497 = vpop.trf.xlu0
  %v1498 = vpop.trf.xlu0
  %v1499 = vpop.trf.xlu0
  %v1500 = vpop.trf.xlu0
  %1502 = vset.pattern.permute.xlu0 4
  %1503 = vperm.xlu0 %1502, %v1461
  %v1504 = vpop.permute.xlu0 %1503
  %1507 = vset.pattern.permute.xlu0 4
  %1508 = vperm.xlu0 %1507, %v1466
  %v1509 = vpop.permute.xlu0 %1508
  %v1511 = vlaneseq
  %v1512 = vshrl.u32 %v1511, 7
  %v1513 = vsub.s32 0, %v1512
  %v1514 = vrot.slane %v1485, %v1513
  %v1515 = vadd.f32 %v1504, %v1514
  %v1516 = vadd.f32 %v1509, %v1514
  %v1517 = vmul.f32 %v1515, 0.2
  %v1518 = vmul.f32 %v1516, 0.2
  %v1519 = vmax.f32 %v1515, %v1517
  %v1520 = vmax.f32 %v1516, %v1518
  %v1521 = vadd.f32 %v1519, %v76
  %v1522 = vadd.f32 %v1520, %v77
  %v1523 = vsel %vm107, %v1521, -inf
  %1524 = vmax.xlane.f32.xlu0 %v1523
  %v1525 = vpop.xlane.xlu0 %1524
  %v1526 = vsel %vm107, %v1522, -inf
  %1527 = vmax.xlane.f32.xlu0 %v1526
  %v1528 = vpop.xlane.xlu0 %1527
  %v1529 = vsub.f32 %v1521, %v1525
  %v1530 = vsub.f32 %v1522, %v1528
  %v1531 = vmul.f32 %v1529, 1.442695
  %v1532 = vpow.pop %v1531
  %v1533 = vmul.f32 %v1530, 1.442695
  %v1534 = vpow.pop %v1533
  %v1535 = vsel %vm107, %v1532, 0.0
  %1536 = vadd.xlane.f32.xlu0 %v1535
  %v1537 = vpop.xlane.xlu0 %1536
  %v1538 = vsel %vm107, %v1534, 0.0
  %1539 = vadd.xlane.f32.xlu0 %v1538
  %v1540 = vpop.xlane.xlu0 %1539
  %v1541 = vrcp.pop %v1537
  %v1542 = vmul.f32 1.0, %v1541
  %v1543 = vrcp.pop %v1540
  %v1544 = vmul.f32 1.0, %v1543
  %v1545 = vsel %vm439, %v1376, 0.0
  %v1546 = vsel %vm439, %v1381, 0.0
  %v1548 = vsel %vm107, %v1532, 0
  %v1551 = vsel %vm107, %v1534, 0
  %1553 = vmatprep.subr.mxu0 0.0
  %1554 = vmatpush1.msra.mxu0 0.0
  %1555 = vmatprep.subr.mxu0 0.0
  %1556 = vmatpush1.msra.mxu0 0.0
  %1557 = vmatprep.subr.mxu0 0.0
  %1558 = vmatpush1.msra.mxu0 0.0
  %1559 = vmatprep.subr.mxu0 0.0
  %1560 = vmatpush1.msra.mxu0 0.0
  %1561 = vmatprep.subr.mxu0 0.0
  %1562 = vmatpush1.msra.mxu0 0.0
  %1563 = vmatprep.subr.mxu0 0.0
  %1564 = vmatpush1.msra.mxu0 0.0
  %1565 = vmatprep.subr.mxu0 0.0
  %1566 = vmatpush1.msra.mxu0 0.0
  %1567 = vmatprep.subr.mxu0 0.0
  %1568 = vmatpush1.msra.mxu0 0.0
  %1569 = vmatprep.subr.mxu0 0.0
  %1570 = vmatpush1.msra.mxu0 0.0
  %1571 = vmatprep.subr.mxu0 0.0
  %1572 = vmatpush1.msra.mxu0 0.0
  %1573 = vmatprep.subr.mxu0 0.0
  %1574 = vmatpush1.msra.mxu0 0.0
  %1575 = vmatprep.subr.mxu0 0.0
  %1576 = vmatpush1.msra.mxu0 0.0
  %1577 = vmatprep.subr.mxu0 0.0
  %1578 = vmatpush1.msra.mxu0 0.0
  %1579 = vmatprep.subr.mxu0 0.0
  %1580 = vmatpush1.msra.mxu0 0.0
  %1581 = vmatprep.subr.mxu0 0.0
  %1582 = vmatpush1.msra.mxu0 %v1546
  %1583 = vmatprep.subr.mxu0 0.0
  %1584 = vmatpush1.msra.mxu0 %v1545
  %1585 = vmatprep.subr.mxu0 0.0
  %1586 = vmatpush2.msra.mxu0 0.0
  %1587 = vmatprep.subr.mxu0 0.0
  %1588 = vmatpush2.msra.mxu0 0.0
  %1589 = vmatprep.subr.mxu0 0.0
  %1590 = vmatpush2.msra.mxu0 0.0
  %1591 = vmatprep.subr.mxu0 0.0
  %1592 = vmatpush2.msra.mxu0 0.0
  %1593 = vmatprep.subr.mxu0 0.0
  %1594 = vmatpush2.msra.mxu0 0.0
  %1595 = vmatprep.subr.mxu0 0.0
  %1596 = vmatpush2.msra.mxu0 0.0
  %1597 = vmatprep.subr.mxu0 0.0
  %1598 = vmatpush2.msra.mxu0 0.0
  %1599 = vmatprep.subr.mxu0 0.0
  %1600 = vmatpush2.msra.mxu0 0.0
  %1601 = vmatprep.subr.mxu0 0.0
  %1602 = vmatpush2.msra.mxu0 0.0
  %1603 = vmatprep.subr.mxu0 0.0
  %1604 = vmatpush2.msra.mxu0 0.0
  %1605 = vmatprep.subr.mxu0 0.0
  %1606 = vmatpush2.msra.mxu0 0.0
  %1607 = vmatprep.subr.mxu0 0.0
  %1608 = vmatpush2.msra.mxu0 0.0
  %1609 = vmatprep.subr.mxu0 0.0
  %1610 = vmatpush2.msra.mxu0 0.0
  %1611 = vmatprep.subr.mxu0 0.0
  %1612 = vmatpush2.msra.mxu0 0.0
  %1613 = vmatprep.subr.mxu0 0.0
  %1614 = vmatpush2.msra.mxu0 0.0
  %1615 = vmatprep.subr.mxu0 0.0
  %1616 = vmatpush2.msra.mxu0 0.0
  %1617 = vmatprep.mubr.f32.mxu0 0.0
  %1618 = vmatmul.mubr.f32.gmra.mxu0 %v1548
  %v1619 = vpop.f32.mrf.mxu0
  %v1620 = vadd.f32 0.0, %v1619
  %v1621 = vpop.f32.mrf.mxu0
  %1622 = vmatprep.mubr.f32.mxu0 0.0
  %1623 = vmatmul.mubr.f32.gmra.mxu0 %v1551
  %v1624 = vpop.f32.mrf.mxu0
  %v1625 = vadd.f32 0.0, %v1624
  %v1626 = vpop.f32.mrf.mxu0
  %1627 = vdwg.mxu0
  %v1628 = vmul.f32 %v1620, %v1542
  %v1629 = vmul.f32 %v1625, %v1544
  %1630 = vset.pattern.permute.xlu0 5
  %1631 = vperm.xlu0 %1630, %v1461
  %v1632 = vpop.permute.xlu0 %1631
  %1634 = vset.pattern.permute.xlu0 5
  %1635 = vperm.xlu0 %1634, %v1466
  %v1636 = vpop.permute.xlu0 %1635
  %v1638 = vlaneseq
  %v1639 = vshrl.u32 %v1638, 7
  %v1640 = vsub.s32 1, %v1639
  %v1641 = vrot.slane %v1485, %v1640
  %v1642 = vadd.f32 %v1632, %v1641
  %v1643 = vadd.f32 %v1636, %v1641
  %v1644 = vmul.f32 %v1642, 0.2
  %v1645 = vmul.f32 %v1643, 0.2
  %v1646 = vmax.f32 %v1642, %v1644
  %v1647 = vmax.f32 %v1643, %v1645
  %v1648 = vadd.f32 %v1646, %v76
  %v1649 = vadd.f32 %v1647, %v77
  %v1650 = vsel %vm107, %v1648, -inf
  %1651 = vmax.xlane.f32.xlu0 %v1650
  %v1652 = vpop.xlane.xlu0 %1651
  %v1653 = vsel %vm107, %v1649, -inf
  %1654 = vmax.xlane.f32.xlu0 %v1653
  %v1655 = vpop.xlane.xlu0 %1654
  %v1656 = vsub.f32 %v1648, %v1652
  %v1657 = vsub.f32 %v1649, %v1655
  %v1658 = vmul.f32 %v1656, 1.442695
  %v1659 = vpow.pop %v1658
  %v1660 = vmul.f32 %v1657, 1.442695
  %v1661 = vpow.pop %v1660
  %v1662 = vsel %vm107, %v1659, 0.0
  %1663 = vadd.xlane.f32.xlu0 %v1662
  %v1664 = vpop.xlane.xlu0 %1663
  %v1665 = vsel %vm107, %v1661, 0.0
  %1666 = vadd.xlane.f32.xlu0 %v1665
  %v1667 = vpop.xlane.xlu0 %1666
  %v1668 = vrcp.pop %v1664
  %v1669 = vmul.f32 1.0, %v1668
  %v1670 = vrcp.pop %v1667
  %v1671 = vmul.f32 1.0, %v1670
  %v1672 = vsel %vm568, %v1376, 0.0
  %v1673 = vsel %vm568, %v1381, 0.0
  %v1675 = vsel %vm107, %v1659, 0
  %v1678 = vsel %vm107, %v1661, 0
  %1680 = vmatprep.subr.mxu0 0.0
  %1681 = vmatpush1.msra.mxu0 0.0
  %1682 = vmatprep.subr.mxu0 0.0
  %1683 = vmatpush1.msra.mxu0 0.0
  %1684 = vmatprep.subr.mxu0 0.0
  %1685 = vmatpush1.msra.mxu0 0.0
  %1686 = vmatprep.subr.mxu0 0.0
  %1687 = vmatpush1.msra.mxu0 0.0
  %1688 = vmatprep.subr.mxu0 0.0
  %1689 = vmatpush1.msra.mxu0 0.0
  %1690 = vmatprep.subr.mxu0 0.0
  %1691 = vmatpush1.msra.mxu0 0.0
  %1692 = vmatprep.subr.mxu0 0.0
  %1693 = vmatpush1.msra.mxu0 0.0
  %1694 = vmatprep.subr.mxu0 0.0
  %1695 = vmatpush1.msra.mxu0 0.0
  %1696 = vmatprep.subr.mxu0 0.0
  %1697 = vmatpush1.msra.mxu0 0.0
  %1698 = vmatprep.subr.mxu0 0.0
  %1699 = vmatpush1.msra.mxu0 0.0
  %1700 = vmatprep.subr.mxu0 0.0
  %1701 = vmatpush1.msra.mxu0 0.0
  %1702 = vmatprep.subr.mxu0 0.0
  %1703 = vmatpush1.msra.mxu0 0.0
  %1704 = vmatprep.subr.mxu0 0.0
  %1705 = vmatpush1.msra.mxu0 0.0
  %1706 = vmatprep.subr.mxu0 0.0
  %1707 = vmatpush1.msra.mxu0 0.0
  %1708 = vmatprep.subr.mxu0 0.0
  %1709 = vmatpush1.msra.mxu0 %v1673
  %1710 = vmatprep.subr.mxu0 0.0
  %1711 = vmatpush1.msra.mxu0 %v1672
  %1712 = vmatprep.subr.mxu0 0.0
  %1713 = vmatpush2.msra.mxu0 0.0
  %1714 = vmatprep.subr.mxu0 0.0
  %1715 = vmatpush2.msra.mxu0 0.0
  %1716 = vmatprep.subr.mxu0 0.0
  %1717 = vmatpush2.msra.mxu0 0.0
  %1718 = vmatprep.subr.mxu0 0.0
  %1719 = vmatpush2.msra.mxu0 0.0
  %1720 = vmatprep.subr.mxu0 0.0
  %1721 = vmatpush2.msra.mxu0 0.0
  %1722 = vmatprep.subr.mxu0 0.0
  %1723 = vmatpush2.msra.mxu0 0.0
  %1724 = vmatprep.subr.mxu0 0.0
  %1725 = vmatpush2.msra.mxu0 0.0
  %1726 = vmatprep.subr.mxu0 0.0
  %1727 = vmatpush2.msra.mxu0 0.0
  %1728 = vmatprep.subr.mxu0 0.0
  %1729 = vmatpush2.msra.mxu0 0.0
  %1730 = vmatprep.subr.mxu0 0.0
  %1731 = vmatpush2.msra.mxu0 0.0
  %1732 = vmatprep.subr.mxu0 0.0
  %1733 = vmatpush2.msra.mxu0 0.0
  %1734 = vmatprep.subr.mxu0 0.0
  %1735 = vmatpush2.msra.mxu0 0.0
  %1736 = vmatprep.subr.mxu0 0.0
  %1737 = vmatpush2.msra.mxu0 0.0
  %1738 = vmatprep.subr.mxu0 0.0
  %1739 = vmatpush2.msra.mxu0 0.0
  %1740 = vmatprep.subr.mxu0 0.0
  %1741 = vmatpush2.msra.mxu0 0.0
  %1742 = vmatprep.subr.mxu0 0.0
  %1743 = vmatpush2.msra.mxu0 0.0
  %1744 = vmatprep.mubr.f32.mxu0 0.0
  %1745 = vmatmul.mubr.f32.gmra.mxu0 %v1675
  %v1746 = vpop.f32.mrf.mxu0
  %v1747 = vadd.f32 0.0, %v1746
  %v1748 = vpop.f32.mrf.mxu0
  %1749 = vmatprep.mubr.f32.mxu0 0.0
  %1750 = vmatmul.mubr.f32.gmra.mxu0 %v1678
  %v1751 = vpop.f32.mrf.mxu0
  %v1752 = vadd.f32 0.0, %v1751
  %v1753 = vpop.f32.mrf.mxu0
  %1754 = vdwg.mxu0
  %v1755 = vmul.f32 %v1747, %v1669
  %v1756 = vmul.f32 %v1752, %v1671
  %v1757 = vadd.f32 %v1628, %v1755
  %v1758 = vadd.f32 %v1629, %v1756
  %1759 = vset.pattern.permute.xlu0 6
  %1760 = vperm.xlu0 %1759, %v1461
  %v1761 = vpop.permute.xlu0 %1760
  %1763 = vset.pattern.permute.xlu0 6
  %1764 = vperm.xlu0 %1763, %v1466
  %v1765 = vpop.permute.xlu0 %1764
  %v1767 = vlaneseq
  %v1768 = vshrl.u32 %v1767, 7
  %v1769 = vsub.s32 2, %v1768
  %v1770 = vrot.slane %v1485, %v1769
  %v1771 = vadd.f32 %v1761, %v1770
  %v1772 = vadd.f32 %v1765, %v1770
  %v1773 = vmul.f32 %v1771, 0.2
  %v1774 = vmul.f32 %v1772, 0.2
  %v1775 = vmax.f32 %v1771, %v1773
  %v1776 = vmax.f32 %v1772, %v1774
  %v1777 = vadd.f32 %v1775, %v76
  %v1778 = vadd.f32 %v1776, %v77
  %v1779 = vsel %vm107, %v1777, -inf
  %1780 = vmax.xlane.f32.xlu0 %v1779
  %v1781 = vpop.xlane.xlu0 %1780
  %v1782 = vsel %vm107, %v1778, -inf
  %1783 = vmax.xlane.f32.xlu0 %v1782
  %v1784 = vpop.xlane.xlu0 %1783
  %v1785 = vsub.f32 %v1777, %v1781
  %v1786 = vsub.f32 %v1778, %v1784
  %v1787 = vmul.f32 %v1785, 1.442695
  %v1788 = vpow.pop %v1787
  %v1789 = vmul.f32 %v1786, 1.442695
  %v1790 = vpow.pop %v1789
  %v1791 = vsel %vm107, %v1788, 0.0
  %1792 = vadd.xlane.f32.xlu0 %v1791
  %v1793 = vpop.xlane.xlu0 %1792
  %v1794 = vsel %vm107, %v1790, 0.0
  %1795 = vadd.xlane.f32.xlu0 %v1794
  %v1796 = vpop.xlane.xlu0 %1795
  %v1797 = vrcp.pop %v1793
  %v1798 = vmul.f32 1.0, %v1797
  %v1799 = vrcp.pop %v1796
  %v1800 = vmul.f32 1.0, %v1799
  %v1801 = vsel %vm699, %v1376, 0.0
  %v1802 = vsel %vm699, %v1381, 0.0
  %v1804 = vsel %vm107, %v1788, 0
  %v1807 = vsel %vm107, %v1790, 0
  %1809 = vmatprep.subr.mxu0 0.0
  %1810 = vmatpush1.msra.mxu0 0.0
  %1811 = vmatprep.subr.mxu0 0.0
  %1812 = vmatpush1.msra.mxu0 0.0
  %1813 = vmatprep.subr.mxu0 0.0
  %1814 = vmatpush1.msra.mxu0 0.0
  %1815 = vmatprep.subr.mxu0 0.0
  %1816 = vmatpush1.msra.mxu0 0.0
  %1817 = vmatprep.subr.mxu0 0.0
  %1818 = vmatpush1.msra.mxu0 0.0
  %1819 = vmatprep.subr.mxu0 0.0
  %1820 = vmatpush1.msra.mxu0 0.0
  %1821 = vmatprep.subr.mxu0 0.0
  %1822 = vmatpush1.msra.mxu0 0.0
  %1823 = vmatprep.subr.mxu0 0.0
  %1824 = vmatpush1.msra.mxu0 0.0
  %1825 = vmatprep.subr.mxu0 0.0
  %1826 = vmatpush1.msra.mxu0 0.0
  %1827 = vmatprep.subr.mxu0 0.0
  %1828 = vmatpush1.msra.mxu0 0.0
  %1829 = vmatprep.subr.mxu0 0.0
  %1830 = vmatpush1.msra.mxu0 0.0
  %1831 = vmatprep.subr.mxu0 0.0
  %1832 = vmatpush1.msra.mxu0 0.0
  %1833 = vmatprep.subr.mxu0 0.0
  %1834 = vmatpush1.msra.mxu0 0.0
  %1835 = vmatprep.subr.mxu0 0.0
  %1836 = vmatpush1.msra.mxu0 0.0
  %1837 = vmatprep.subr.mxu0 0.0
  %1838 = vmatpush1.msra.mxu0 %v1802
  %1839 = vmatprep.subr.mxu0 0.0
  %1840 = vmatpush1.msra.mxu0 %v1801
  %1841 = vmatprep.subr.mxu0 0.0
  %1842 = vmatpush2.msra.mxu0 0.0
  %1843 = vmatprep.subr.mxu0 0.0
  %1844 = vmatpush2.msra.mxu0 0.0
  %1845 = vmatprep.subr.mxu0 0.0
  %1846 = vmatpush2.msra.mxu0 0.0
  %1847 = vmatprep.subr.mxu0 0.0
  %1848 = vmatpush2.msra.mxu0 0.0
  %1849 = vmatprep.subr.mxu0 0.0
  %1850 = vmatpush2.msra.mxu0 0.0
  %1851 = vmatprep.subr.mxu0 0.0
  %1852 = vmatpush2.msra.mxu0 0.0
  %1853 = vmatprep.subr.mxu0 0.0
  %1854 = vmatpush2.msra.mxu0 0.0
  %1855 = vmatprep.subr.mxu0 0.0
  %1856 = vmatpush2.msra.mxu0 0.0
  %1857 = vmatprep.subr.mxu0 0.0
  %1858 = vmatpush2.msra.mxu0 0.0
  %1859 = vmatprep.subr.mxu0 0.0
  %1860 = vmatpush2.msra.mxu0 0.0
  %1861 = vmatprep.subr.mxu0 0.0
  %1862 = vmatpush2.msra.mxu0 0.0
  %1863 = vmatprep.subr.mxu0 0.0
  %1864 = vmatpush2.msra.mxu0 0.0
  %1865 = vmatprep.subr.mxu0 0.0
  %1866 = vmatpush2.msra.mxu0 0.0
  %1867 = vmatprep.subr.mxu0 0.0
  %1868 = vmatpush2.msra.mxu0 0.0
  %1869 = vmatprep.subr.mxu0 0.0
  %1870 = vmatpush2.msra.mxu0 0.0
  %1871 = vmatprep.subr.mxu0 0.0
  %1872 = vmatpush2.msra.mxu0 0.0
  %1873 = vmatprep.mubr.f32.mxu0 0.0
  %1874 = vmatmul.mubr.f32.gmra.mxu0 %v1804
  %v1875 = vpop.f32.mrf.mxu0
  %v1876 = vadd.f32 0.0, %v1875
  %v1877 = vpop.f32.mrf.mxu0
  %1878 = vmatprep.mubr.f32.mxu0 0.0
  %1879 = vmatmul.mubr.f32.gmra.mxu0 %v1807
  %v1880 = vpop.f32.mrf.mxu0
  %v1881 = vadd.f32 0.0, %v1880
  %v1882 = vpop.f32.mrf.mxu0
  %1883 = vdwg.mxu0
  %v1884 = vmul.f32 %v1876, %v1798
  %v1885 = vmul.f32 %v1881, %v1800
  %v1886 = vadd.f32 %v1757, %v1884
  %v1887 = vadd.f32 %v1758, %v1885
  %1888 = vset.pattern.permute.xlu0 7
  %1889 = vperm.xlu0 %1888, %v1461
  %v1890 = vpop.permute.xlu0 %1889
  %1892 = vset.pattern.permute.xlu0 7
  %1893 = vperm.xlu0 %1892, %v1466
  %v1894 = vpop.permute.xlu0 %1893
  %v1896 = vlaneseq
  %v1897 = vshrl.u32 %v1896, 7
  %v1898 = vsub.s32 3, %v1897
  %v1899 = vrot.slane %v1485, %v1898
  %v1900 = vadd.f32 %v1890, %v1899
  %v1901 = vadd.f32 %v1894, %v1899
  %v1902 = vmul.f32 %v1900, 0.2
  %v1903 = vmul.f32 %v1901, 0.2
  %v1904 = vmax.f32 %v1900, %v1902
  %v1905 = vmax.f32 %v1901, %v1903
  %v1906 = vadd.f32 %v1904, %v76
  %v1907 = vadd.f32 %v1905, %v77
  %v1908 = vsel %vm107, %v1906, -inf
  %1909 = vmax.xlane.f32.xlu0 %v1908
  %v1910 = vpop.xlane.xlu0 %1909
  %v1911 = vsel %vm107, %v1907, -inf
  %1912 = vmax.xlane.f32.xlu0 %v1911
  %v1913 = vpop.xlane.xlu0 %1912
  %v1914 = vsub.f32 %v1906, %v1910
  %v1915 = vsub.f32 %v1907, %v1913
  %v1916 = vmul.f32 %v1914, 1.442695
  %v1917 = vpow.pop %v1916
  %v1918 = vmul.f32 %v1915, 1.442695
  %v1919 = vpow.pop %v1918
  %v1920 = vsel %vm107, %v1917, 0.0
  %1921 = vadd.xlane.f32.xlu0 %v1920
  %v1922 = vpop.xlane.xlu0 %1921
  %v1923 = vsel %vm107, %v1919, 0.0
  %1924 = vadd.xlane.f32.xlu0 %v1923
  %v1925 = vpop.xlane.xlu0 %1924
  %v1926 = vrcp.pop %v1922
  %v1927 = vmul.f32 1.0, %v1926
  %v1928 = vrcp.pop %v1925
  %v1929 = vmul.f32 1.0, %v1928
  %v1930 = vsel %vm830, %v1376, 0.0
  %v1931 = vsel %vm830, %v1381, 0.0
  %v1933 = vsel %vm107, %v1917, 0
  %v1936 = vsel %vm107, %v1919, 0
  %1938 = vmatprep.subr.mxu0 0.0
  %1939 = vmatpush1.msra.mxu0 0.0
  %1940 = vmatprep.subr.mxu0 0.0
  %1941 = vmatpush1.msra.mxu0 0.0
  %1942 = vmatprep.subr.mxu0 0.0
  %1943 = vmatpush1.msra.mxu0 0.0
  %1944 = vmatprep.subr.mxu0 0.0
  %1945 = vmatpush1.msra.mxu0 0.0
  %1946 = vmatprep.subr.mxu0 0.0
  %1947 = vmatpush1.msra.mxu0 0.0
  %1948 = vmatprep.subr.mxu0 0.0
  %1949 = vmatpush1.msra.mxu0 0.0
  %1950 = vmatprep.subr.mxu0 0.0
  %1951 = vmatpush1.msra.mxu0 0.0
  %1952 = vmatprep.subr.mxu0 0.0
  %1953 = vmatpush1.msra.mxu0 0.0
  %1954 = vmatprep.subr.mxu0 0.0
  %1955 = vmatpush1.msra.mxu0 0.0
  %1956 = vmatprep.subr.mxu0 0.0
  %1957 = vmatpush1.msra.mxu0 0.0
  %1958 = vmatprep.subr.mxu0 0.0
  %1959 = vmatpush1.msra.mxu0 0.0
  %1960 = vmatprep.subr.mxu0 0.0
  %1961 = vmatpush1.msra.mxu0 0.0
  %1962 = vmatprep.subr.mxu0 0.0
  %1963 = vmatpush1.msra.mxu0 0.0
  %1964 = vmatprep.subr.mxu0 0.0
  %1965 = vmatpush1.msra.mxu0 0.0
  %1966 = vmatprep.subr.mxu0 0.0
  %1967 = vmatpush1.msra.mxu0 %v1931
  %1968 = vmatprep.subr.mxu0 0.0
  %1969 = vmatpush1.msra.mxu0 %v1930
  %1970 = vmatprep.subr.mxu0 0.0
  %1971 = vmatpush2.msra.mxu0 0.0
  %1972 = vmatprep.subr.mxu0 0.0
  %1973 = vmatpush2.msra.mxu0 0.0
  %1974 = vmatprep.subr.mxu0 0.0
  %1975 = vmatpush2.msra.mxu0 0.0
  %1976 = vmatprep.subr.mxu0 0.0
  %1977 = vmatpush2.msra.mxu0 0.0
  %1978 = vmatprep.subr.mxu0 0.0
  %1979 = vmatpush2.msra.mxu0 0.0
  %1980 = vmatprep.subr.mxu0 0.0
  %1981 = vmatpush2.msra.mxu0 0.0
  %1982 = vmatprep.subr.mxu0 0.0
  %1983 = vmatpush2.msra.mxu0 0.0
  %1984 = vmatprep.subr.mxu0 0.0
  %1985 = vmatpush2.msra.mxu0 0.0
  %1986 = vmatprep.subr.mxu0 0.0
  %1987 = vmatpush2.msra.mxu0 0.0
  %1988 = vmatprep.subr.mxu0 0.0
  %1989 = vmatpush2.msra.mxu0 0.0
  %1990 = vmatprep.subr.mxu0 0.0
  %1991 = vmatpush2.msra.mxu0 0.0
  %1992 = vmatprep.subr.mxu0 0.0
  %1993 = vmatpush2.msra.mxu0 0.0
  %1994 = vmatprep.subr.mxu0 0.0
  %1995 = vmatpush2.msra.mxu0 0.0
  %1996 = vmatprep.subr.mxu0 0.0
  %1997 = vmatpush2.msra.mxu0 0.0
  %1998 = vmatprep.subr.mxu0 0.0
  %1999 = vmatpush2.msra.mxu0 0.0
  %2000 = vmatprep.subr.mxu0 0.0
  %2001 = vmatpush2.msra.mxu0 0.0
  %2002 = vmatprep.mubr.f32.mxu0 0.0
  %2003 = vmatmul.mubr.f32.gmra.mxu0 %v1933
  %v2004 = vpop.f32.mrf.mxu0
  %v2005 = vadd.f32 0.0, %v2004
  %v2006 = vpop.f32.mrf.mxu0
  %2007 = vmatprep.mubr.f32.mxu0 0.0
  %2008 = vmatmul.mubr.f32.gmra.mxu0 %v1936
  %v2009 = vpop.f32.mrf.mxu0
  %v2010 = vadd.f32 0.0, %v2009
  %v2011 = vpop.f32.mrf.mxu0
  %2012 = vdwg.mxu0
  %v2013 = vmul.f32 %v2005, %v1927
  %v2014 = vmul.f32 %v2010, %v1929
  %v2015 = vadd.f32 %v1886, %v2013
  %v2016 = vadd.f32 %v1887, %v2014
  %v2017 = vld [vmem:[%s14] sm:$0x1]
  %v2019 = vlaneseq
  %v2020 = vshrl.u32 %v2019, 7
  %v2021 = vsub.s32 0, %v2020
  %v2022 = vrot.slane %v2017, %v2021
  %v2024 = vadd.f32 %v2015, %v2022
  %v2025 = vadd.f32 %v2016, %v2022
  %v2026 = vsel %vm195, %v2024, 0.0
  %2027 = vadd.xlane.f32.xlu0 %v2026
  %v2028 = vpop.xlane.xlu0 %2027
  %v2029 = vsel %vm195, %v2025, 0.0
  %2030 = vadd.xlane.f32.xlu0 %v2029
  %v2031 = vpop.xlane.xlu0 %2030
  %v2032 = vmul.f32 %v2024, %v2024
  %v2033 = vmul.f32 %v2025, %v2025
  %v2034 = vsel %vm195, %v2032, 0.0
  %2035 = vadd.xlane.f32.xlu0 %v2034
  %v2036 = vpop.xlane.xlu0 %2035
  %v2037 = vsel %vm195, %v2033, 0.0
  %2038 = vadd.xlane.f32.xlu0 %v2037
  %v2039 = vpop.xlane.xlu0 %2038
  %2040 = vmatprep.subr.mxu0 0.0
  %2041 = vmatpush1.msra.mxu0 0.0
  %2042 = vmatprep.subr.mxu0 0.0
  %2043 = vmatpush1.msra.mxu0 0.0
  %2044 = vmatprep.subr.mxu0 0.0
  %2045 = vmatpush1.msra.mxu0 0.0
  %2046 = vmatprep.subr.mxu0 0.0
  %2047 = vmatpush1.msra.mxu0 0.0
  %2048 = vmatprep.subr.mxu0 0.0
  %2049 = vmatpush1.msra.mxu0 0.0
  %2050 = vmatprep.subr.mxu0 0.0
  %2051 = vmatpush1.msra.mxu0 0.0
  %2052 = vmatprep.subr.mxu0 0.0
  %2053 = vmatpush1.msra.mxu0 0.0
  %2054 = vmatprep.subr.mxu0 0.0
  %2055 = vmatpush1.msra.mxu0 0.0
  %2056 = vmatprep.subr.mxu0 0.0
  %2057 = vmatpush1.msra.mxu0 0.0
  %2058 = vmatprep.subr.mxu0 0.0
  %2059 = vmatpush1.msra.mxu0 0.0
  %2060 = vmatprep.subr.mxu0 0.0
  %2061 = vmatpush1.msra.mxu0 0.0
  %2062 = vmatprep.subr.mxu0 0.0
  %2063 = vmatpush1.msra.mxu0 0.0
  %2064 = vmatprep.subr.mxu0 0.0
  %2065 = vmatpush1.msra.mxu0 0.0
  %2066 = vmatprep.subr.mxu0 0.0
  %2067 = vmatpush1.msra.mxu0 0.0
  %2068 = vmatprep.subr.mxu0 0.0
  %2069 = vmatpush1.msra.mxu0 %v2031
  %2070 = vmatprep.subr.mxu0 0.0
  %2071 = vmatpush1.msra.mxu0 %v2028
  %2072 = vmatprep.subr.mxu0 0.0
  %2073 = vmatpush2.msra.mxu0 0.0
  %2074 = vmatprep.subr.mxu0 0.0
  %2075 = vmatpush2.msra.mxu0 0.0
  %2076 = vmatprep.subr.mxu0 0.0
  %2077 = vmatpush2.msra.mxu0 0.0
  %2078 = vmatprep.subr.mxu0 0.0
  %2079 = vmatpush2.msra.mxu0 0.0
  %2080 = vmatprep.subr.mxu0 0.0
  %2081 = vmatpush2.msra.mxu0 0.0
  %2082 = vmatprep.subr.mxu0 0.0
  %2083 = vmatpush2.msra.mxu0 0.0
  %2084 = vmatprep.subr.mxu0 0.0
  %2085 = vmatpush2.msra.mxu0 0.0
  %2086 = vmatprep.subr.mxu0 0.0
  %2087 = vmatpush2.msra.mxu0 0.0
  %2088 = vmatprep.subr.mxu0 0.0
  %2089 = vmatpush2.msra.mxu0 0.0
  %2090 = vmatprep.subr.mxu0 0.0
  %2091 = vmatpush2.msra.mxu0 0.0
  %2092 = vmatprep.subr.mxu0 0.0
  %2093 = vmatpush2.msra.mxu0 0.0
  %2094 = vmatprep.subr.mxu0 0.0
  %2095 = vmatpush2.msra.mxu0 0.0
  %2096 = vmatprep.subr.mxu0 0.0
  %2097 = vmatpush2.msra.mxu0 0.0
  %2098 = vmatprep.subr.mxu0 0.0
  %2099 = vmatpush2.msra.mxu0 0.0
  %2100 = vmatprep.subr.mxu0 0.0
  %2101 = vmatpush2.msra.mxu0 0.0
  %2102 = vmatprep.subr.mxu0 0.0
  %2103 = vmatpush2.msra.mxu0 0.0
  %2104 = vmatprep.mubr.f32.mxu0 0.0
  %2105 = vmatmul.mubr.f32.gmra.mxu0 %v942
  %v2106 = vpop.f32.mrf.mxu0
  %v2107 = vadd.f32 0.0, %v2106
  %v2108 = vpop.f32.mrf.mxu0
  %2109 = vdwg.mxu0
  %v2110 = vmul.f32 %v2107, %v81
  %2111 = vmatprep.subr.mxu0 0.0
  %2112 = vmatpush1.msra.mxu0 0.0
  %2113 = vmatprep.subr.mxu0 0.0
  %2114 = vmatpush1.msra.mxu0 0.0
  %2115 = vmatprep.subr.mxu0 0.0
  %2116 = vmatpush1.msra.mxu0 0.0
  %2117 = vmatprep.subr.mxu0 0.0
  %2118 = vmatpush1.msra.mxu0 0.0
  %2119 = vmatprep.subr.mxu0 0.0
  %2120 = vmatpush1.msra.mxu0 0.0
  %2121 = vmatprep.subr.mxu0 0.0
  %2122 = vmatpush1.msra.mxu0 0.0
  %2123 = vmatprep.subr.mxu0 0.0
  %2124 = vmatpush1.msra.mxu0 0.0
  %2125 = vmatprep.subr.mxu0 0.0
  %2126 = vmatpush1.msra.mxu0 0.0
  %2127 = vmatprep.subr.mxu0 0.0
  %2128 = vmatpush1.msra.mxu0 0.0
  %2129 = vmatprep.subr.mxu0 0.0
  %2130 = vmatpush1.msra.mxu0 0.0
  %2131 = vmatprep.subr.mxu0 0.0
  %2132 = vmatpush1.msra.mxu0 0.0
  %2133 = vmatprep.subr.mxu0 0.0
  %2134 = vmatpush1.msra.mxu0 0.0
  %2135 = vmatprep.subr.mxu0 0.0
  %2136 = vmatpush1.msra.mxu0 0.0
  %2137 = vmatprep.subr.mxu0 0.0
  %2138 = vmatpush1.msra.mxu0 0.0
  %2139 = vmatprep.subr.mxu0 0.0
  %2140 = vmatpush1.msra.mxu0 %v2039
  %2141 = vmatprep.subr.mxu0 0.0
  %2142 = vmatpush1.msra.mxu0 %v2036
  %2143 = vmatprep.subr.mxu0 0.0
  %2144 = vmatpush2.msra.mxu0 0.0
  %2145 = vmatprep.subr.mxu0 0.0
  %2146 = vmatpush2.msra.mxu0 0.0
  %2147 = vmatprep.subr.mxu0 0.0
  %2148 = vmatpush2.msra.mxu0 0.0
  %2149 = vmatprep.subr.mxu0 0.0
  %2150 = vmatpush2.msra.mxu0 0.0
  %2151 = vmatprep.subr.mxu0 0.0
  %2152 = vmatpush2.msra.mxu0 0.0
  %2153 = vmatprep.subr.mxu0 0.0
  %2154 = vmatpush2.msra.mxu0 0.0
  %2155 = vmatprep.subr.mxu0 0.0
  %2156 = vmatpush2.msra.mxu0 0.0
  %2157 = vmatprep.subr.mxu0 0.0
  %2158 = vmatpush2.msra.mxu0 0.0
  %2159 = vmatprep.subr.mxu0 0.0
  %2160 = vmatpush2.msra.mxu0 0.0
  %2161 = vmatprep.subr.mxu0 0.0
  %2162 = vmatpush2.msra.mxu0 0.0
  %2163 = vmatprep.subr.mxu0 0.0
  %2164 = vmatpush2.msra.mxu0 0.0
  %2165 = vmatprep.subr.mxu0 0.0
  %2166 = vmatpush2.msra.mxu0 0.0
  %2167 = vmatprep.subr.mxu0 0.0
  %2168 = vmatpush2.msra.mxu0 0.0
  %2169 = vmatprep.subr.mxu0 0.0
  %2170 = vmatpush2.msra.mxu0 0.0
  %2171 = vmatprep.subr.mxu0 0.0
  %2172 = vmatpush2.msra.mxu0 0.0
  %2173 = vmatprep.subr.mxu0 0.0
  %2174 = vmatpush2.msra.mxu0 0.0
  %2175 = vmatprep.mubr.f32.mxu0 0.0
  %2176 = vmatmul.mubr.f32.gmra.mxu0 %v942
  %v2177 = vpop.f32.mrf.mxu0
  %v2178 = vadd.f32 0.0, %v2177
  %v2179 = vpop.f32.mrf.mxu0
  %2180 = vdwg.mxu0
  %v2181 = vmul.f32 %v2178, %v81
  %v2182 = vmul.f32 %v2110, %v2110
  %v2183 = vsub.f32 %v2181, %v2182
  %v2184 = vmax.f32 %v2183, 0.0
  %v2185 = vadd.f32 %v2184, 1e-05
  %v2186 = vrsqrt.pop %v2185
  %v2188 = vsel %vm1098, %v2110, 0
  %2190 = vmatprep.subr.mxu0 0.0
  %2191 = vmatpush1.msra.mxu0 0.0
  %2192 = vmatprep.subr.mxu0 0.0
  %2193 = vmatpush1.msra.mxu0 0.0
  %2194 = vmatprep.subr.mxu0 0.0
  %2195 = vmatpush1.msra.mxu0 0.0
  %2196 = vmatprep.subr.mxu0 0.0
  %2197 = vmatpush1.msra.mxu0 0.0
  %2198 = vmatprep.subr.mxu0 0.0
  %2199 = vmatpush1.msra.mxu0 0.0
  %2200 = vmatprep.subr.mxu0 0.0
  %2201 = vmatpush1.msra.mxu0 0.0
  %2202 = vmatprep.subr.mxu0 0.0
  %2203 = vmatpush1.msra.mxu0 0.0
  %2204 = vmatprep.subr.mxu0 0.0
  %2205 = vmatpush1.msra.mxu0 0.0
  %2206 = vmatprep.subr.mxu0 0.0
  %2207 = vmatpush1.msra.mxu0 0.0
  %2208 = vmatprep.subr.mxu0 0.0
  %2209 = vmatpush1.msra.mxu0 0.0
  %2210 = vmatprep.subr.mxu0 0.0
  %2211 = vmatpush1.msra.mxu0 0.0
  %2212 = vmatprep.subr.mxu0 0.0
  %2213 = vmatpush1.msra.mxu0 0.0
  %2214 = vmatprep.subr.mxu0 0.0
  %2215 = vmatpush1.msra.mxu0 0.0
  %2216 = vmatprep.subr.mxu0 0.0
  %2217 = vmatpush1.msra.mxu0 0.0
  %2218 = vmatprep.subr.mxu0 0.0
  %2219 = vmatpush1.msra.mxu0 0.0
  %2220 = vmatprep.subr.mxu0 0.0
  %2221 = vmatpush1.msra.mxu0 %v2188
  %2222 = vmatprep.subr.mxu0 0.0
  %2223 = vmatpush2.msra.mxu0 0.0
  %2224 = vmatprep.subr.mxu0 0.0
  %2225 = vmatpush2.msra.mxu0 0.0
  %2226 = vmatprep.subr.mxu0 0.0
  %2227 = vmatpush2.msra.mxu0 0.0
  %2228 = vmatprep.subr.mxu0 0.0
  %2229 = vmatpush2.msra.mxu0 0.0
  %2230 = vmatprep.subr.mxu0 0.0
  %2231 = vmatpush2.msra.mxu0 0.0
  %2232 = vmatprep.subr.mxu0 0.0
  %2233 = vmatpush2.msra.mxu0 0.0
  %2234 = vmatprep.subr.mxu0 0.0
  %2235 = vmatpush2.msra.mxu0 0.0
  %2236 = vmatprep.subr.mxu0 0.0
  %2237 = vmatpush2.msra.mxu0 0.0
  %2238 = vmatprep.subr.mxu0 0.0
  %2239 = vmatpush2.msra.mxu0 0.0
  %2240 = vmatprep.subr.mxu0 0.0
  %2241 = vmatpush2.msra.mxu0 0.0
  %2242 = vmatprep.subr.mxu0 0.0
  %2243 = vmatpush2.msra.mxu0 0.0
  %2244 = vmatprep.subr.mxu0 0.0
  %2245 = vmatpush2.msra.mxu0 0.0
  %2246 = vmatprep.subr.mxu0 0.0
  %2247 = vmatpush2.msra.mxu0 0.0
  %2248 = vmatprep.subr.mxu0 0.0
  %2249 = vmatpush2.msra.mxu0 0.0
  %2250 = vmatprep.subr.mxu0 0.0
  %2251 = vmatpush2.msra.mxu0 0.0
  %2252 = vmatprep.subr.mxu0 0.0
  %2253 = vmatpush2.msra.mxu0 0.0
  %2254 = vmatprep.mubr.f32.mxu0 0.0
  %2255 = vmatmul.mubr.f32.gmra.mxu0 %v1093
  %v2256 = vpop.f32.mrf.mxu0
  %v2257 = vadd.f32 0.0, %v2256
  %v2258 = vpop.f32.mrf.mxu0
  %2259 = vmatprep.mubr.f32.mxu0 0.0
  %2260 = vmatmul.mubr.f32.gmra.mxu0 %v1096
  %v2261 = vpop.f32.mrf.mxu0
  %v2262 = vadd.f32 0.0, %v2261
  %v2263 = vpop.f32.mrf.mxu0
  %2264 = vdwg.mxu0
  %v2266 = vsel %vm1098, %v2186, 0
  %2268 = vmatprep.subr.mxu0 0.0
  %2269 = vmatpush1.msra.mxu0 0.0
  %2270 = vmatprep.subr.mxu0 0.0
  %2271 = vmatpush1.msra.mxu0 0.0
  %2272 = vmatprep.subr.mxu0 0.0
  %2273 = vmatpush1.msra.mxu0 0.0
  %2274 = vmatprep.subr.mxu0 0.0
  %2275 = vmatpush1.msra.mxu0 0.0
  %2276 = vmatprep.subr.mxu0 0.0
  %2277 = vmatpush1.msra.mxu0 0.0
  %2278 = vmatprep.subr.mxu0 0.0
  %2279 = vmatpush1.msra.mxu0 0.0
  %2280 = vmatprep.subr.mxu0 0.0
  %2281 = vmatpush1.msra.mxu0 0.0
  %2282 = vmatprep.subr.mxu0 0.0
  %2283 = vmatpush1.msra.mxu0 0.0
  %2284 = vmatprep.subr.mxu0 0.0
  %2285 = vmatpush1.msra.mxu0 0.0
  %2286 = vmatprep.subr.mxu0 0.0
  %2287 = vmatpush1.msra.mxu0 0.0
  %2288 = vmatprep.subr.mxu0 0.0
  %2289 = vmatpush1.msra.mxu0 0.0
  %2290 = vmatprep.subr.mxu0 0.0
  %2291 = vmatpush1.msra.mxu0 0.0
  %2292 = vmatprep.subr.mxu0 0.0
  %2293 = vmatpush1.msra.mxu0 0.0
  %2294 = vmatprep.subr.mxu0 0.0
  %2295 = vmatpush1.msra.mxu0 0.0
  %2296 = vmatprep.subr.mxu0 0.0
  %2297 = vmatpush1.msra.mxu0 0.0
  %2298 = vmatprep.subr.mxu0 0.0
  %2299 = vmatpush1.msra.mxu0 %v2266
  %2300 = vmatprep.subr.mxu0 0.0
  %2301 = vmatpush2.msra.mxu0 0.0
  %2302 = vmatprep.subr.mxu0 0.0
  %2303 = vmatpush2.msra.mxu0 0.0
  %2304 = vmatprep.subr.mxu0 0.0
  %2305 = vmatpush2.msra.mxu0 0.0
  %2306 = vmatprep.subr.mxu0 0.0
  %2307 = vmatpush2.msra.mxu0 0.0
  %2308 = vmatprep.subr.mxu0 0.0
  %2309 = vmatpush2.msra.mxu0 0.0
  %2310 = vmatprep.subr.mxu0 0.0
  %2311 = vmatpush2.msra.mxu0 0.0
  %2312 = vmatprep.subr.mxu0 0.0
  %2313 = vmatpush2.msra.mxu0 0.0
  %2314 = vmatprep.subr.mxu0 0.0
  %2315 = vmatpush2.msra.mxu0 0.0
  %2316 = vmatprep.subr.mxu0 0.0
  %2317 = vmatpush2.msra.mxu0 0.0
  %2318 = vmatprep.subr.mxu0 0.0
  %2319 = vmatpush2.msra.mxu0 0.0
  %2320 = vmatprep.subr.mxu0 0.0
  %2321 = vmatpush2.msra.mxu0 0.0
  %2322 = vmatprep.subr.mxu0 0.0
  %2323 = vmatpush2.msra.mxu0 0.0
  %2324 = vmatprep.subr.mxu0 0.0
  %2325 = vmatpush2.msra.mxu0 0.0
  %2326 = vmatprep.subr.mxu0 0.0
  %2327 = vmatpush2.msra.mxu0 0.0
  %2328 = vmatprep.subr.mxu0 0.0
  %2329 = vmatpush2.msra.mxu0 0.0
  %2330 = vmatprep.subr.mxu0 0.0
  %2331 = vmatpush2.msra.mxu0 0.0
  %2332 = vmatprep.mubr.f32.mxu0 0.0
  %2333 = vmatmul.mubr.f32.gmra.mxu0 %v1093
  %v2334 = vpop.f32.mrf.mxu0
  %v2335 = vadd.f32 0.0, %v2334
  %v2336 = vpop.f32.mrf.mxu0
  %2337 = vmatprep.mubr.f32.mxu0 0.0
  %2338 = vmatmul.mubr.f32.gmra.mxu0 %v1096
  %v2339 = vpop.f32.mrf.mxu0
  %v2340 = vadd.f32 0.0, %v2339
  %v2341 = vpop.f32.mrf.mxu0
  %2342 = vdwg.mxu0
  %2344 = vset.pattern.permute.xlu0 0
  %2345 = vperm.xlu0 %2344, %v2257
  %v2346 = vpop.permute.xlu0 %2345
  %2349 = vset.pattern.permute.xlu0 0
  %2350 = vperm.xlu0 %2349, %v2262
  %v2351 = vpop.permute.xlu0 %2350
  %v2353 = vsub.f32 %v2024, %v2346
  %v2354 = vsub.f32 %v2025, %v2351
  %2356 = vset.pattern.permute.xlu0 0
  %2357 = vperm.xlu0 %2356, %v2335
  %v2358 = vpop.permute.xlu0 %2357
  %2361 = vset.pattern.permute.xlu0 0
  %2362 = vperm.xlu0 %2361, %v2340
  %v2363 = vpop.permute.xlu0 %2362
  %v2365 = vmul.f32 %v2353, %v2358
  %v2366 = vmul.f32 %v2354, %v2363
  %v2367 = vld [vmem:[%s15] sm:$0x1]
  %v2369 = vlaneseq
  %v2370 = vshrl.u32 %v2369, 7
  %v2371 = vsub.s32 0, %v2370
  %v2372 = vrot.slane %v2367, %v2371
  %v2374 = vmul.f32 %v2365, %v2372
  %v2375 = vmul.f32 %v2366, %v2372
  %v2376 = vld [vmem:[%s16] sm:$0x1]
  %v2378 = vlaneseq
  %v2379 = vshrl.u32 %v2378, 7
  %v2380 = vsub.s32 0, %v2379
  %v2381 = vrot.slane %v2376, %v2380
  %v2383 = vadd.f32 %v2374, %v2381
  %v2384 = vadd.f32 %v2375, %v2381
  %v2385 = vmax.f32 %v2383, 0.0
  %v2386 = vmax.f32 %v2384, 0.0
  %v2387 = vld [vmem:[%s17] sm:$0xff]
  %v2388 = vld [vmem:[%s17 + $0x8] sm:$0xff]
  %v2389 = vld [vmem:[%s17 + $0x10] sm:$0xff]
  %v2390 = vld [vmem:[%s17 + $0x18] sm:$0xff]
  %v2392 = vsel %vm195, %v2385, 0
  %v2395 = vsel %vm195, %v2386, 0
  %2397 = vmatprep.subr.mxu0 0.0
  %2398 = vmatpush1.msra.mxu0 0.0
  %2399 = vmatprep.subr.mxu0 0.0
  %2400 = vmatpush1.msra.mxu0 0.0
  %2401 = vmatprep.subr.mxu0 0.0
  %2402 = vmatpush1.msra.mxu0 0.0
  %2403 = vmatprep.subr.mxu0 0.0
  %2404 = vmatpush1.msra.mxu0 0.0
  %2405 = vmatprep.subr.mxu0 0.0
  %2406 = vmatpush1.msra.mxu0 0.0
  %2407 = vmatprep.subr.mxu0 0.0
  %2408 = vmatpush1.msra.mxu0 0.0
  %2409 = vmatprep.subr.mxu0 0.0
  %2410 = vmatpush1.msra.mxu0 0.0
  %2411 = vmatprep.subr.mxu0 0.0
  %2412 = vmatpush1.msra.mxu0 0.0
  %2413 = vmatprep.subr.mxu0 0.0
  %2414 = vmatpush1.msra.mxu0 0.0
  %2415 = vmatprep.subr.mxu0 0.0
  %2416 = vmatpush1.msra.mxu0 0.0
  %2417 = vmatprep.subr.mxu0 0.0
  %2418 = vmatpush1.msra.mxu0 0.0
  %2419 = vmatprep.subr.mxu0 0.0
  %2420 = vmatpush1.msra.mxu0 0.0
  %2421 = vmatprep.subr.mxu0 0.0
  %2422 = vmatpush1.msra.mxu0 %v2390
  %2423 = vmatprep.subr.mxu0 0.0
  %2424 = vmatpush1.msra.mxu0 %v2389
  %2425 = vmatprep.subr.mxu0 0.0
  %2426 = vmatpush1.msra.mxu0 %v2388
  %2427 = vmatprep.subr.mxu0 0.0
  %2428 = vmatpush1.msra.mxu0 %v2387
  %2429 = vmatprep.subr.mxu0 0.0
  %2430 = vmatpush2.msra.mxu0 0.0
  %2431 = vmatprep.subr.mxu0 0.0
  %2432 = vmatpush2.msra.mxu0 0.0
  %2433 = vmatprep.subr.mxu0 0.0
  %2434 = vmatpush2.msra.mxu0 0.0
  %2435 = vmatprep.subr.mxu0 0.0
  %2436 = vmatpush2.msra.mxu0 0.0
  %2437 = vmatprep.subr.mxu0 0.0
  %2438 = vmatpush2.msra.mxu0 0.0
  %2439 = vmatprep.subr.mxu0 0.0
  %2440 = vmatpush2.msra.mxu0 0.0
  %2441 = vmatprep.subr.mxu0 0.0
  %2442 = vmatpush2.msra.mxu0 0.0
  %2443 = vmatprep.subr.mxu0 0.0
  %2444 = vmatpush2.msra.mxu0 0.0
  %2445 = vmatprep.subr.mxu0 0.0
  %2446 = vmatpush2.msra.mxu0 0.0
  %2447 = vmatprep.subr.mxu0 0.0
  %2448 = vmatpush2.msra.mxu0 0.0
  %2449 = vmatprep.subr.mxu0 0.0
  %2450 = vmatpush2.msra.mxu0 0.0
  %2451 = vmatprep.subr.mxu0 0.0
  %2452 = vmatpush2.msra.mxu0 0.0
  %2453 = vmatprep.subr.mxu0 0.0
  %2454 = vmatpush2.msra.mxu0 0.0
  %2455 = vmatprep.subr.mxu0 0.0
  %2456 = vmatpush2.msra.mxu0 0.0
  %2457 = vmatprep.subr.mxu0 0.0
  %2458 = vmatpush2.msra.mxu0 0.0
  %2459 = vmatprep.subr.mxu0 0.0
  %2460 = vmatpush2.msra.mxu0 0.0
  %2461 = vmatprep.mubr.f32.mxu0 0.0
  %2462 = vmatmul.mubr.f32.gmra.mxu0 %v2392
  %v2463 = vpop.f32.mrf.mxu0
  %v2464 = vadd.f32 0.0, %v2463
  %v2465 = vpop.f32.mrf.mxu0
  %2466 = vmatprep.mubr.f32.mxu0 0.0
  %2467 = vmatmul.mubr.f32.gmra.mxu0 %v2395
  %v2468 = vpop.f32.mrf.mxu0
  %v2469 = vadd.f32 0.0, %v2468
  %v2470 = vpop.f32.mrf.mxu0
  %2471 = vdwg.mxu0
  %v2472 = vld [vmem:[%s18] sm:$0xff]
  %v2473 = vld [vmem:[%s18 + $0x8] sm:$0xff]
  %v2474 = vld [vmem:[%s18 + $0x10] sm:$0xff]
  %v2475 = vld [vmem:[%s18 + $0x18] sm:$0xff]
  %v2477 = vsel %vm195, %v2464, 0
  %v2480 = vsel %vm195, %v2469, 0
  %2482 = vmatprep.subr.mxu0 0.0
  %2483 = vmatpush1.msra.mxu0 0.0
  %2484 = vmatprep.subr.mxu0 0.0
  %2485 = vmatpush1.msra.mxu0 0.0
  %2486 = vmatprep.subr.mxu0 0.0
  %2487 = vmatpush1.msra.mxu0 0.0
  %2488 = vmatprep.subr.mxu0 0.0
  %2489 = vmatpush1.msra.mxu0 0.0
  %2490 = vmatprep.subr.mxu0 0.0
  %2491 = vmatpush1.msra.mxu0 0.0
  %2492 = vmatprep.subr.mxu0 0.0
  %2493 = vmatpush1.msra.mxu0 0.0
  %2494 = vmatprep.subr.mxu0 0.0
  %2495 = vmatpush1.msra.mxu0 0.0
  %2496 = vmatprep.subr.mxu0 0.0
  %2497 = vmatpush1.msra.mxu0 0.0
  %2498 = vmatprep.subr.mxu0 0.0
  %2499 = vmatpush1.msra.mxu0 0.0
  %2500 = vmatprep.subr.mxu0 0.0
  %2501 = vmatpush1.msra.mxu0 0.0
  %2502 = vmatprep.subr.mxu0 0.0
  %2503 = vmatpush1.msra.mxu0 0.0
  %2504 = vmatprep.subr.mxu0 0.0
  %2505 = vmatpush1.msra.mxu0 0.0
  %2506 = vmatprep.subr.mxu0 0.0
  %2507 = vmatpush1.msra.mxu0 %v2475
  %2508 = vmatprep.subr.mxu0 0.0
  %2509 = vmatpush1.msra.mxu0 %v2474
  %2510 = vmatprep.subr.mxu0 0.0
  %2511 = vmatpush1.msra.mxu0 %v2473
  %2512 = vmatprep.subr.mxu0 0.0
  %2513 = vmatpush1.msra.mxu0 %v2472
  %2514 = vmatprep.subr.mxu0 0.0
  %2515 = vmatpush2.msra.mxu0 0.0
  %2516 = vmatprep.subr.mxu0 0.0
  %2517 = vmatpush2.msra.mxu0 0.0
  %2518 = vmatprep.subr.mxu0 0.0
  %2519 = vmatpush2.msra.mxu0 0.0
  %2520 = vmatprep.subr.mxu0 0.0
  %2521 = vmatpush2.msra.mxu0 0.0
  %2522 = vmatprep.subr.mxu0 0.0
  %2523 = vmatpush2.msra.mxu0 0.0
  %2524 = vmatprep.subr.mxu0 0.0
  %2525 = vmatpush2.msra.mxu0 0.0
  %2526 = vmatprep.subr.mxu0 0.0
  %2527 = vmatpush2.msra.mxu0 0.0
  %2528 = vmatprep.subr.mxu0 0.0
  %2529 = vmatpush2.msra.mxu0 0.0
  %2530 = vmatprep.subr.mxu0 0.0
  %2531 = vmatpush2.msra.mxu0 0.0
  %2532 = vmatprep.subr.mxu0 0.0
  %2533 = vmatpush2.msra.mxu0 0.0
  %2534 = vmatprep.subr.mxu0 0.0
  %2535 = vmatpush2.msra.mxu0 0.0
  %2536 = vmatprep.subr.mxu0 0.0
  %2537 = vmatpush2.msra.mxu0 0.0
  %2538 = vmatprep.subr.mxu0 0.0
  %2539 = vmatpush2.msra.mxu0 0.0
  %2540 = vmatprep.subr.mxu0 0.0
  %2541 = vmatpush2.msra.mxu0 0.0
  %2542 = vmatprep.subr.mxu0 0.0
  %2543 = vmatpush2.msra.mxu0 0.0
  %2544 = vmatprep.subr.mxu0 0.0
  %2545 = vmatpush2.msra.mxu0 0.0
  %2546 = vmatprep.mubr.f32.mxu0 0.0
  %2547 = vmatmul.mubr.f32.gmra.mxu0 %v2477
  %v2548 = vpop.f32.mrf.mxu0
  %v2549 = vadd.f32 0.0, %v2548
  %v2550 = vpop.f32.mrf.mxu0
  %2551 = vmatprep.mubr.f32.mxu0 0.0
  %2552 = vmatmul.mubr.f32.gmra.mxu0 %v2480
  %v2553 = vpop.f32.mrf.mxu0
  %v2554 = vadd.f32 0.0, %v2553
  %v2555 = vpop.f32.mrf.mxu0
  %2556 = vdwg.mxu0
  %2557 = vxpose.xlu0.b32.start [1/16] %v2549, 128
  %2558 = vxpose.xlu0.b32.cont [2/16] %v2554, 128
  %2559 = vxpose.xlu0.b32.cont [3/16] 0.0, 128
  %2560 = vxpose.xlu0.b32.cont [4/16] 0.0, 128
  %2561 = vxpose.xlu0.b32.cont [5/16] 0.0, 128
  %2562 = vxpose.xlu0.b32.cont [6/16] 0.0, 128
  %2563 = vxpose.xlu0.b32.cont [7/16] 0.0, 128
  %2564 = vxpose.xlu0.b32.cont [8/16] 0.0, 128
  %2565 = vxpose.xlu0.b32.cont [9/16] 0.0, 128
  %2566 = vxpose.xlu0.b32.cont [10/16] 0.0, 128
  %2567 = vxpose.xlu0.b32.cont [11/16] 0.0, 128
  %2568 = vxpose.xlu0.b32.cont [12/16] 0.0, 128
  %2569 = vxpose.xlu0.b32.cont [13/16] 0.0, 128
  %2570 = vxpose.xlu0.b32.cont [14/16] 0.0, 128
  %2571 = vxpose.xlu0.b32.cont [15/16] 0.0, 128
  %2572 = vxpose.xlu0.b32.end [16/16] 0.0, 128
  %v2573 = vpop.trf.xlu0
  %v2574 = vpop.trf.xlu0
  %v2575 = vpop.trf.xlu0
  %v2576 = vpop.trf.xlu0
  %v2577 = vpop.trf.xlu0
  %v2578 = vpop.trf.xlu0
  %v2579 = vpop.trf.xlu0
  %v2580 = vpop.trf.xlu0
  %v2581 = vpop.trf.xlu0
  %v2582 = vpop.trf.xlu0
  %v2583 = vpop.trf.xlu0
  %v2584 = vpop.trf.xlu0
  %v2585 = vpop.trf.xlu0
  %v2586 = vpop.trf.xlu0
  %v2587 = vpop.trf.xlu0
  %v2588 = vpop.trf.xlu0
  %2590 = vset.pattern.permute.xlu0 4
  %2591 = vperm.xlu0 %2590, %v2549
  %v2592 = vpop.permute.xlu0 %2591
  %2595 = vset.pattern.permute.xlu0 4
  %2596 = vperm.xlu0 %2595, %v2554
  %v2597 = vpop.permute.xlu0 %2596
  %v2599 = vlaneseq
  %v2600 = vshrl.u32 %v2599, 7
  %v2601 = vsub.s32 0, %v2600
  %v2602 = vrot.slane %v2573, %v2601
  %v2603 = vadd.f32 %v2592, %v2602
  %v2604 = vadd.f32 %v2597, %v2602
  %v2605 = vmul.f32 %v2603, 0.2
  %v2606 = vmul.f32 %v2604, 0.2
  %v2607 = vmax.f32 %v2603, %v2605
  %v2608 = vmax.f32 %v2604, %v2606
  %v2609 = vadd.f32 %v2607, %v76
  %v2610 = vadd.f32 %v2608, %v77
  %v2611 = vsel %vm107, %v2609, -inf
  %2612 = vmax.xlane.f32.xlu0 %v2611
  %v2613 = vpop.xlane.xlu0 %2612
  %v2614 = vsel %vm107, %v2610, -inf
  %2615 = vmax.xlane.f32.xlu0 %v2614
  %v2616 = vpop.xlane.xlu0 %2615
  %v2617 = vsub.f32 %v2609, %v2613
  %v2618 = vsub.f32 %v2610, %v2616
  %v2619 = vmul.f32 %v2617, 1.442695
  %v2620 = vpow.pop %v2619
  %v2621 = vmul.f32 %v2618, 1.442695
  %v2622 = vpow.pop %v2621
  %v2623 = vsel %vm107, %v2620, 0.0
  %2624 = vadd.xlane.f32.xlu0 %v2623
  %v2625 = vpop.xlane.xlu0 %2624
  %v2626 = vsel %vm107, %v2622, 0.0
  %2627 = vadd.xlane.f32.xlu0 %v2626
  %v2628 = vpop.xlane.xlu0 %2627
  %v2629 = vrcp.pop %v2625
  %v2630 = vmul.f32 1.0, %v2629
  %v2631 = vrcp.pop %v2628
  %v2632 = vmul.f32 1.0, %v2631
  %v2634 = vsel %vm107, %v2620, 0
  %v2637 = vsel %vm107, %v2622, 0
  %2639 = vmatprep.subr.mxu0 0.0
  %2640 = vmatpush1.msra.mxu0 0.0
  %2641 = vmatprep.subr.mxu0 0.0
  %2642 = vmatpush1.msra.mxu0 0.0
  %2643 = vmatprep.subr.mxu0 0.0
  %2644 = vmatpush1.msra.mxu0 0.0
  %2645 = vmatprep.subr.mxu0 0.0
  %2646 = vmatpush1.msra.mxu0 0.0
  %2647 = vmatprep.subr.mxu0 0.0
  %2648 = vmatpush1.msra.mxu0 0.0
  %2649 = vmatprep.subr.mxu0 0.0
  %2650 = vmatpush1.msra.mxu0 0.0
  %2651 = vmatprep.subr.mxu0 0.0
  %2652 = vmatpush1.msra.mxu0 0.0
  %2653 = vmatprep.subr.mxu0 0.0
  %2654 = vmatpush1.msra.mxu0 0.0
  %2655 = vmatprep.subr.mxu0 0.0
  %2656 = vmatpush1.msra.mxu0 0.0
  %2657 = vmatprep.subr.mxu0 0.0
  %2658 = vmatpush1.msra.mxu0 0.0
  %2659 = vmatprep.subr.mxu0 0.0
  %2660 = vmatpush1.msra.mxu0 0.0
  %2661 = vmatprep.subr.mxu0 0.0
  %2662 = vmatpush1.msra.mxu0 0.0
  %2663 = vmatprep.subr.mxu0 0.0
  %2664 = vmatpush1.msra.mxu0 0.0
  %2665 = vmatprep.subr.mxu0 0.0
  %2666 = vmatpush1.msra.mxu0 0.0
  %2667 = vmatprep.subr.mxu0 0.0
  %2668 = vmatpush1.msra.mxu0 %v2469
  %2669 = vmatprep.subr.mxu0 0.0
  %2670 = vmatpush1.msra.mxu0 %v2464
  %2671 = vmatprep.subr.mxu0 0.0
  %2672 = vmatpush2.msra.mxu0 0.0
  %2673 = vmatprep.subr.mxu0 0.0
  %2674 = vmatpush2.msra.mxu0 0.0
  %2675 = vmatprep.subr.mxu0 0.0
  %2676 = vmatpush2.msra.mxu0 0.0
  %2677 = vmatprep.subr.mxu0 0.0
  %2678 = vmatpush2.msra.mxu0 0.0
  %2679 = vmatprep.subr.mxu0 0.0
  %2680 = vmatpush2.msra.mxu0 0.0
  %2681 = vmatprep.subr.mxu0 0.0
  %2682 = vmatpush2.msra.mxu0 0.0
  %2683 = vmatprep.subr.mxu0 0.0
  %2684 = vmatpush2.msra.mxu0 0.0
  %2685 = vmatprep.subr.mxu0 0.0
  %2686 = vmatpush2.msra.mxu0 0.0
  %2687 = vmatprep.subr.mxu0 0.0
  %2688 = vmatpush2.msra.mxu0 0.0
  %2689 = vmatprep.subr.mxu0 0.0
  %2690 = vmatpush2.msra.mxu0 0.0
  %2691 = vmatprep.subr.mxu0 0.0
  %2692 = vmatpush2.msra.mxu0 0.0
  %2693 = vmatprep.subr.mxu0 0.0
  %2694 = vmatpush2.msra.mxu0 0.0
  %2695 = vmatprep.subr.mxu0 0.0
  %2696 = vmatpush2.msra.mxu0 0.0
  %2697 = vmatprep.subr.mxu0 0.0
  %2698 = vmatpush2.msra.mxu0 0.0
  %2699 = vmatprep.subr.mxu0 0.0
  %2700 = vmatpush2.msra.mxu0 0.0
  %2701 = vmatprep.subr.mxu0 0.0
  %2702 = vmatpush2.msra.mxu0 0.0
  %2703 = vmatprep.mubr.f32.mxu0 0.0
  %2704 = vmatmul.mubr.f32.gmra.mxu0 %v2634
  %v2705 = vpop.f32.mrf.mxu0
  %v2706 = vadd.f32 0.0, %v2705
  %v2707 = vpop.f32.mrf.mxu0
  %2708 = vmatprep.mubr.f32.mxu0 0.0
  %2709 = vmatmul.mubr.f32.gmra.mxu0 %v2637
  %v2710 = vpop.f32.mrf.mxu0
  %v2711 = vadd.f32 0.0, %v2710
  %v2712 = vpop.f32.mrf.mxu0
  %2713 = vdwg.mxu0
  %v2714 = vmul.f32 %v2706, %v2630
  %v2715 = vmul.f32 %v2711, %v2632
  %v2716 = vld [vmem:[%s19] sm:$0x1]
  %v2718 = vlaneseq
  %v2719 = vshrl.u32 %v2718, 7
  %v2720 = vsub.s32 0, %v2719
  %v2721 = vrot.slane %v2716, %v2720
  %v2723 = vadd.f32 %v2714, %v2721
  %v2724 = vadd.f32 %v2715, %v2721
  %v2725 = vsel %vm195, %v2723, 0.0
  %2726 = vadd.xlane.f32.xlu0 %v2725
  %v2727 = vpop.xlane.xlu0 %2726
  %v2728 = vsel %vm195, %v2724, 0.0
  %2729 = vadd.xlane.f32.xlu0 %v2728
  %v2730 = vpop.xlane.xlu0 %2729
  %v2731 = vmul.f32 %v2723, %v2723
  %v2732 = vmul.f32 %v2724, %v2724
  %v2733 = vsel %vm195, %v2731, 0.0
  %2734 = vadd.xlane.f32.xlu0 %v2733
  %v2735 = vpop.xlane.xlu0 %2734
  %v2736 = vsel %vm195, %v2732, 0.0
  %2737 = vadd.xlane.f32.xlu0 %v2736
  %v2738 = vpop.xlane.xlu0 %2737
  %2739 = vmatprep.subr.mxu0 0.0
  %2740 = vmatpush1.msra.mxu0 0.0
  %2741 = vmatprep.subr.mxu0 0.0
  %2742 = vmatpush1.msra.mxu0 0.0
  %2743 = vmatprep.subr.mxu0 0.0
  %2744 = vmatpush1.msra.mxu0 0.0
  %2745 = vmatprep.subr.mxu0 0.0
  %2746 = vmatpush1.msra.mxu0 0.0
  %2747 = vmatprep.subr.mxu0 0.0
  %2748 = vmatpush1.msra.mxu0 0.0
  %2749 = vmatprep.subr.mxu0 0.0
  %2750 = vmatpush1.msra.mxu0 0.0
  %2751 = vmatprep.subr.mxu0 0.0
  %2752 = vmatpush1.msra.mxu0 0.0
  %2753 = vmatprep.subr.mxu0 0.0
  %2754 = vmatpush1.msra.mxu0 0.0
  %2755 = vmatprep.subr.mxu0 0.0
  %2756 = vmatpush1.msra.mxu0 0.0
  %2757 = vmatprep.subr.mxu0 0.0
  %2758 = vmatpush1.msra.mxu0 0.0
  %2759 = vmatprep.subr.mxu0 0.0
  %2760 = vmatpush1.msra.mxu0 0.0
  %2761 = vmatprep.subr.mxu0 0.0
  %2762 = vmatpush1.msra.mxu0 0.0
  %2763 = vmatprep.subr.mxu0 0.0
  %2764 = vmatpush1.msra.mxu0 0.0
  %2765 = vmatprep.subr.mxu0 0.0
  %2766 = vmatpush1.msra.mxu0 0.0
  %2767 = vmatprep.subr.mxu0 0.0
  %2768 = vmatpush1.msra.mxu0 %v2730
  %2769 = vmatprep.subr.mxu0 0.0
  %2770 = vmatpush1.msra.mxu0 %v2727
  %2771 = vmatprep.subr.mxu0 0.0
  %2772 = vmatpush2.msra.mxu0 0.0
  %2773 = vmatprep.subr.mxu0 0.0
  %2774 = vmatpush2.msra.mxu0 0.0
  %2775 = vmatprep.subr.mxu0 0.0
  %2776 = vmatpush2.msra.mxu0 0.0
  %2777 = vmatprep.subr.mxu0 0.0
  %2778 = vmatpush2.msra.mxu0 0.0
  %2779 = vmatprep.subr.mxu0 0.0
  %2780 = vmatpush2.msra.mxu0 0.0
  %2781 = vmatprep.subr.mxu0 0.0
  %2782 = vmatpush2.msra.mxu0 0.0
  %2783 = vmatprep.subr.mxu0 0.0
  %2784 = vmatpush2.msra.mxu0 0.0
  %2785 = vmatprep.subr.mxu0 0.0
  %2786 = vmatpush2.msra.mxu0 0.0
  %2787 = vmatprep.subr.mxu0 0.0
  %2788 = vmatpush2.msra.mxu0 0.0
  %2789 = vmatprep.subr.mxu0 0.0
  %2790 = vmatpush2.msra.mxu0 0.0
  %2791 = vmatprep.subr.mxu0 0.0
  %2792 = vmatpush2.msra.mxu0 0.0
  %2793 = vmatprep.subr.mxu0 0.0
  %2794 = vmatpush2.msra.mxu0 0.0
  %2795 = vmatprep.subr.mxu0 0.0
  %2796 = vmatpush2.msra.mxu0 0.0
  %2797 = vmatprep.subr.mxu0 0.0
  %2798 = vmatpush2.msra.mxu0 0.0
  %2799 = vmatprep.subr.mxu0 0.0
  %2800 = vmatpush2.msra.mxu0 0.0
  %2801 = vmatprep.subr.mxu0 0.0
  %2802 = vmatpush2.msra.mxu0 0.0
  %2803 = vmatprep.mubr.f32.mxu0 0.0
  %2804 = vmatmul.mubr.f32.gmra.mxu0 %v942
  %v2805 = vpop.f32.mrf.mxu0
  %v2806 = vadd.f32 0.0, %v2805
  %v2807 = vpop.f32.mrf.mxu0
  %2808 = vdwg.mxu0
  %v2809 = vmul.f32 %v2806, %v81
  %2810 = vmatprep.subr.mxu0 0.0
  %2811 = vmatpush1.msra.mxu0 0.0
  %2812 = vmatprep.subr.mxu0 0.0
  %2813 = vmatpush1.msra.mxu0 0.0
  %2814 = vmatprep.subr.mxu0 0.0
  %2815 = vmatpush1.msra.mxu0 0.0
  %2816 = vmatprep.subr.mxu0 0.0
  %2817 = vmatpush1.msra.mxu0 0.0
  %2818 = vmatprep.subr.mxu0 0.0
  %2819 = vmatpush1.msra.mxu0 0.0
  %2820 = vmatprep.subr.mxu0 0.0
  %2821 = vmatpush1.msra.mxu0 0.0
  %2822 = vmatprep.subr.mxu0 0.0
  %2823 = vmatpush1.msra.mxu0 0.0
  %2824 = vmatprep.subr.mxu0 0.0
  %2825 = vmatpush1.msra.mxu0 0.0
  %2826 = vmatprep.subr.mxu0 0.0
  %2827 = vmatpush1.msra.mxu0 0.0
  %2828 = vmatprep.subr.mxu0 0.0
  %2829 = vmatpush1.msra.mxu0 0.0
  %2830 = vmatprep.subr.mxu0 0.0
  %2831 = vmatpush1.msra.mxu0 0.0
  %2832 = vmatprep.subr.mxu0 0.0
  %2833 = vmatpush1.msra.mxu0 0.0
  %2834 = vmatprep.subr.mxu0 0.0
  %2835 = vmatpush1.msra.mxu0 0.0
  %2836 = vmatprep.subr.mxu0 0.0
  %2837 = vmatpush1.msra.mxu0 0.0
  %2838 = vmatprep.subr.mxu0 0.0
  %2839 = vmatpush1.msra.mxu0 %v2738
  %2840 = vmatprep.subr.mxu0 0.0
  %2841 = vmatpush1.msra.mxu0 %v2735
  %2842 = vmatprep.subr.mxu0 0.0
  %2843 = vmatpush2.msra.mxu0 0.0
  %2844 = vmatprep.subr.mxu0 0.0
  %2845 = vmatpush2.msra.mxu0 0.0
  %2846 = vmatprep.subr.mxu0 0.0
  %2847 = vmatpush2.msra.mxu0 0.0
  %2848 = vmatprep.subr.mxu0 0.0
  %2849 = vmatpush2.msra.mxu0 0.0
  %2850 = vmatprep.subr.mxu0 0.0
  %2851 = vmatpush2.msra.mxu0 0.0
  %2852 = vmatprep.subr.mxu0 0.0
  %2853 = vmatpush2.msra.mxu0 0.0
  %2854 = vmatprep.subr.mxu0 0.0
  %2855 = vmatpush2.msra.mxu0 0.0
  %2856 = vmatprep.subr.mxu0 0.0
  %2857 = vmatpush2.msra.mxu0 0.0
  %2858 = vmatprep.subr.mxu0 0.0
  %2859 = vmatpush2.msra.mxu0 0.0
  %2860 = vmatprep.subr.mxu0 0.0
  %2861 = vmatpush2.msra.mxu0 0.0
  %2862 = vmatprep.subr.mxu0 0.0
  %2863 = vmatpush2.msra.mxu0 0.0
  %2864 = vmatprep.subr.mxu0 0.0
  %2865 = vmatpush2.msra.mxu0 0.0
  %2866 = vmatprep.subr.mxu0 0.0
  %2867 = vmatpush2.msra.mxu0 0.0
  %2868 = vmatprep.subr.mxu0 0.0
  %2869 = vmatpush2.msra.mxu0 0.0
  %2870 = vmatprep.subr.mxu0 0.0
  %2871 = vmatpush2.msra.mxu0 0.0
  %2872 = vmatprep.subr.mxu0 0.0
  %2873 = vmatpush2.msra.mxu0 0.0
  %2874 = vmatprep.mubr.f32.mxu0 0.0
  %2875 = vmatmul.mubr.f32.gmra.mxu0 %v942
  %v2876 = vpop.f32.mrf.mxu0
  %v2877 = vadd.f32 0.0, %v2876
  %v2878 = vpop.f32.mrf.mxu0
  %2879 = vdwg.mxu0
  %v2880 = vmul.f32 %v2877, %v81
  %v2881 = vmul.f32 %v2809, %v2809
  %v2882 = vsub.f32 %v2880, %v2881
  %v2883 = vmax.f32 %v2882, 0.0
  %v2884 = vadd.f32 %v2883, 1e-05
  %v2885 = vrsqrt.pop %v2884
  %v2887 = vsel %vm1098, %v2809, 0
  %2889 = vmatprep.subr.mxu0 0.0
  %2890 = vmatpush1.msra.mxu0 0.0
  %2891 = vmatprep.subr.mxu0 0.0
  %2892 = vmatpush1.msra.mxu0 0.0
  %2893 = vmatprep.subr.mxu0 0.0
  %2894 = vmatpush1.msra.mxu0 0.0
  %2895 = vmatprep.subr.mxu0 0.0
  %2896 = vmatpush1.msra.mxu0 0.0
  %2897 = vmatprep.subr.mxu0 0.0
  %2898 = vmatpush1.msra.mxu0 0.0
  %2899 = vmatprep.subr.mxu0 0.0
  %2900 = vmatpush1.msra.mxu0 0.0
  %2901 = vmatprep.subr.mxu0 0.0
  %2902 = vmatpush1.msra.mxu0 0.0
  %2903 = vmatprep.subr.mxu0 0.0
  %2904 = vmatpush1.msra.mxu0 0.0
  %2905 = vmatprep.subr.mxu0 0.0
  %2906 = vmatpush1.msra.mxu0 0.0
  %2907 = vmatprep.subr.mxu0 0.0
  %2908 = vmatpush1.msra.mxu0 0.0
  %2909 = vmatprep.subr.mxu0 0.0
  %2910 = vmatpush1.msra.mxu0 0.0
  %2911 = vmatprep.subr.mxu0 0.0
  %2912 = vmatpush1.msra.mxu0 0.0
  %2913 = vmatprep.subr.mxu0 0.0
  %2914 = vmatpush1.msra.mxu0 0.0
  %2915 = vmatprep.subr.mxu0 0.0
  %2916 = vmatpush1.msra.mxu0 0.0
  %2917 = vmatprep.subr.mxu0 0.0
  %2918 = vmatpush1.msra.mxu0 0.0
  %2919 = vmatprep.subr.mxu0 0.0
  %2920 = vmatpush1.msra.mxu0 %v2887
  %2921 = vmatprep.subr.mxu0 0.0
  %2922 = vmatpush2.msra.mxu0 0.0
  %2923 = vmatprep.subr.mxu0 0.0
  %2924 = vmatpush2.msra.mxu0 0.0
  %2925 = vmatprep.subr.mxu0 0.0
  %2926 = vmatpush2.msra.mxu0 0.0
  %2927 = vmatprep.subr.mxu0 0.0
  %2928 = vmatpush2.msra.mxu0 0.0
  %2929 = vmatprep.subr.mxu0 0.0
  %2930 = vmatpush2.msra.mxu0 0.0
  %2931 = vmatprep.subr.mxu0 0.0
  %2932 = vmatpush2.msra.mxu0 0.0
  %2933 = vmatprep.subr.mxu0 0.0
  %2934 = vmatpush2.msra.mxu0 0.0
  %2935 = vmatprep.subr.mxu0 0.0
  %2936 = vmatpush2.msra.mxu0 0.0
  %2937 = vmatprep.subr.mxu0 0.0
  %2938 = vmatpush2.msra.mxu0 0.0
  %2939 = vmatprep.subr.mxu0 0.0
  %2940 = vmatpush2.msra.mxu0 0.0
  %2941 = vmatprep.subr.mxu0 0.0
  %2942 = vmatpush2.msra.mxu0 0.0
  %2943 = vmatprep.subr.mxu0 0.0
  %2944 = vmatpush2.msra.mxu0 0.0
  %2945 = vmatprep.subr.mxu0 0.0
  %2946 = vmatpush2.msra.mxu0 0.0
  %2947 = vmatprep.subr.mxu0 0.0
  %2948 = vmatpush2.msra.mxu0 0.0
  %2949 = vmatprep.subr.mxu0 0.0
  %2950 = vmatpush2.msra.mxu0 0.0
  %2951 = vmatprep.subr.mxu0 0.0
  %2952 = vmatpush2.msra.mxu0 0.0
  %2953 = vmatprep.mubr.f32.mxu0 0.0
  %2954 = vmatmul.mubr.f32.gmra.mxu0 %v1093
  %v2955 = vpop.f32.mrf.mxu0
  %v2956 = vadd.f32 0.0, %v2955
  %v2957 = vpop.f32.mrf.mxu0
  %2958 = vmatprep.mubr.f32.mxu0 0.0
  %2959 = vmatmul.mubr.f32.gmra.mxu0 %v1096
  %v2960 = vpop.f32.mrf.mxu0
  %v2961 = vadd.f32 0.0, %v2960
  %v2962 = vpop.f32.mrf.mxu0
  %2963 = vdwg.mxu0
  %v2965 = vsel %vm1098, %v2885, 0
  %2967 = vmatprep.subr.mxu0 0.0
  %2968 = vmatpush1.msra.mxu0 0.0
  %2969 = vmatprep.subr.mxu0 0.0
  %2970 = vmatpush1.msra.mxu0 0.0
  %2971 = vmatprep.subr.mxu0 0.0
  %2972 = vmatpush1.msra.mxu0 0.0
  %2973 = vmatprep.subr.mxu0 0.0
  %2974 = vmatpush1.msra.mxu0 0.0
  %2975 = vmatprep.subr.mxu0 0.0
  %2976 = vmatpush1.msra.mxu0 0.0
  %2977 = vmatprep.subr.mxu0 0.0
  %2978 = vmatpush1.msra.mxu0 0.0
  %2979 = vmatprep.subr.mxu0 0.0
  %2980 = vmatpush1.msra.mxu0 0.0
  %2981 = vmatprep.subr.mxu0 0.0
  %2982 = vmatpush1.msra.mxu0 0.0
  %2983 = vmatprep.subr.mxu0 0.0
  %2984 = vmatpush1.msra.mxu0 0.0
  %2985 = vmatprep.subr.mxu0 0.0
  %2986 = vmatpush1.msra.mxu0 0.0
  %2987 = vmatprep.subr.mxu0 0.0
  %2988 = vmatpush1.msra.mxu0 0.0
  %2989 = vmatprep.subr.mxu0 0.0
  %2990 = vmatpush1.msra.mxu0 0.0
  %2991 = vmatprep.subr.mxu0 0.0
  %2992 = vmatpush1.msra.mxu0 0.0
  %2993 = vmatprep.subr.mxu0 0.0
  %2994 = vmatpush1.msra.mxu0 0.0
  %2995 = vmatprep.subr.mxu0 0.0
  %2996 = vmatpush1.msra.mxu0 0.0
  %2997 = vmatprep.subr.mxu0 0.0
  %2998 = vmatpush1.msra.mxu0 %v2965
  %2999 = vmatprep.subr.mxu0 0.0
  %3000 = vmatpush2.msra.mxu0 0.0
  %3001 = vmatprep.subr.mxu0 0.0
  %3002 = vmatpush2.msra.mxu0 0.0
  %3003 = vmatprep.subr.mxu0 0.0
  %3004 = vmatpush2.msra.mxu0 0.0
  %3005 = vmatprep.subr.mxu0 0.0
  %3006 = vmatpush2.msra.mxu0 0.0
  %3007 = vmatprep.subr.mxu0 0.0
  %3008 = vmatpush2.msra.mxu0 0.0
  %3009 = vmatprep.subr.mxu0 0.0
  %3010 = vmatpush2.msra.mxu0 0.0
  %3011 = vmatprep.subr.mxu0 0.0
  %3012 = vmatpush2.msra.mxu0 0.0
  %3013 = vmatprep.subr.mxu0 0.0
  %3014 = vmatpush2.msra.mxu0 0.0
  %3015 = vmatprep.subr.mxu0 0.0
  %3016 = vmatpush2.msra.mxu0 0.0
  %3017 = vmatprep.subr.mxu0 0.0
  %3018 = vmatpush2.msra.mxu0 0.0
  %3019 = vmatprep.subr.mxu0 0.0
  %3020 = vmatpush2.msra.mxu0 0.0
  %3021 = vmatprep.subr.mxu0 0.0
  %3022 = vmatpush2.msra.mxu0 0.0
  %3023 = vmatprep.subr.mxu0 0.0
  %3024 = vmatpush2.msra.mxu0 0.0
  %3025 = vmatprep.subr.mxu0 0.0
  %3026 = vmatpush2.msra.mxu0 0.0
  %3027 = vmatprep.subr.mxu0 0.0
  %3028 = vmatpush2.msra.mxu0 0.0
  %3029 = vmatprep.subr.mxu0 0.0
  %3030 = vmatpush2.msra.mxu0 0.0
  %3031 = vmatprep.mubr.f32.mxu0 0.0
  %3032 = vmatmul.mubr.f32.gmra.mxu0 %v1093
  %v3033 = vpop.f32.mrf.mxu0
  %v3034 = vadd.f32 0.0, %v3033
  %v3035 = vpop.f32.mrf.mxu0
  %3036 = vmatprep.mubr.f32.mxu0 0.0
  %3037 = vmatmul.mubr.f32.gmra.mxu0 %v1096
  %v3038 = vpop.f32.mrf.mxu0
  %v3039 = vadd.f32 0.0, %v3038
  %v3040 = vpop.f32.mrf.mxu0
  %3041 = vdwg.mxu0
  %3043 = vset.pattern.permute.xlu0 0
  %3044 = vperm.xlu0 %3043, %v2956
  %v3045 = vpop.permute.xlu0 %3044
  %3048 = vset.pattern.permute.xlu0 0
  %3049 = vperm.xlu0 %3048, %v2961
  %v3050 = vpop.permute.xlu0 %3049
  %v3052 = vsub.f32 %v2723, %v3045
  %v3053 = vsub.f32 %v2724, %v3050
  %3055 = vset.pattern.permute.xlu0 0
  %3056 = vperm.xlu0 %3055, %v3034
  %v3057 = vpop.permute.xlu0 %3056
  %3060 = vset.pattern.permute.xlu0 0
  %3061 = vperm.xlu0 %3060, %v3039
  %v3062 = vpop.permute.xlu0 %3061
  %v3064 = vmul.f32 %v3052, %v3057
  %v3065 = vmul.f32 %v3053, %v3062
  %v3066 = vld [vmem:[%s20] sm:$0x1]
  %v3068 = vlaneseq
  %v3069 = vshrl.u32 %v3068, 7
  %v3070 = vsub.s32 0, %v3069
  %v3071 = vrot.slane %v3066, %v3070
  %v3073 = vmul.f32 %v3064, %v3071
  %v3074 = vmul.f32 %v3065, %v3071
  %v3075 = vld [vmem:[%s21] sm:$0x1]
  %v3077 = vlaneseq
  %v3078 = vshrl.u32 %v3077, 7
  %v3079 = vsub.s32 0, %v3078
  %v3080 = vrot.slane %v3075, %v3079
  %v3082 = vadd.f32 %v3073, %v3080
  %v3083 = vadd.f32 %v3074, %v3080
  %v3084 = vmax.f32 %v3082, 0.0
  %v3085 = vmax.f32 %v3083, 0.0
  %3086 = vst.msk [vmem:[%s23] sm:$0xff] %vm195, %v3084
  %3087 = vst.msk [vmem:[%s23 + $0x8] sm:$0xff] %vm195, %v3085
  %v3088 = vld [vmem:[%s22] sm:$0xff]
  %v3089 = vld [vmem:[%s22 + $0x8] sm:$0xff]
  %v3090 = vld [vmem:[%s22 + $0x10] sm:$0xff]
  %v3091 = vld [vmem:[%s22 + $0x18] sm:$0xff]
  %v3093 = vsel %vm195, %v3084, 0
  %v3096 = vsel %vm195, %v3085, 0
  %3098 = vmatprep.subr.mxu0 0.0
  %3099 = vmatpush1.msra.mxu0 0.0
  %3100 = vmatprep.subr.mxu0 0.0
  %3101 = vmatpush1.msra.mxu0 0.0
  %3102 = vmatprep.subr.mxu0 0.0
  %3103 = vmatpush1.msra.mxu0 0.0
  %3104 = vmatprep.subr.mxu0 0.0
  %3105 = vmatpush1.msra.mxu0 0.0
  %3106 = vmatprep.subr.mxu0 0.0
  %3107 = vmatpush1.msra.mxu0 0.0
  %3108 = vmatprep.subr.mxu0 0.0
  %3109 = vmatpush1.msra.mxu0 0.0
  %3110 = vmatprep.subr.mxu0 0.0
  %3111 = vmatpush1.msra.mxu0 0.0
  %3112 = vmatprep.subr.mxu0 0.0
  %3113 = vmatpush1.msra.mxu0 0.0
  %3114 = vmatprep.subr.mxu0 0.0
  %3115 = vmatpush1.msra.mxu0 0.0
  %3116 = vmatprep.subr.mxu0 0.0
  %3117 = vmatpush1.msra.mxu0 0.0
  %3118 = vmatprep.subr.mxu0 0.0
  %3119 = vmatpush1.msra.mxu0 0.0
  %3120 = vmatprep.subr.mxu0 0.0
  %3121 = vmatpush1.msra.mxu0 0.0
  %3122 = vmatprep.subr.mxu0 0.0
  %3123 = vmatpush1.msra.mxu0 %v3091
  %3124 = vmatprep.subr.mxu0 0.0
  %3125 = vmatpush1.msra.mxu0 %v3090
  %3126 = vmatprep.subr.mxu0 0.0
  %3127 = vmatpush1.msra.mxu0 %v3089
  %3128 = vmatprep.subr.mxu0 0.0
  %3129 = vmatpush1.msra.mxu0 %v3088
  %3130 = vmatprep.subr.mxu0 0.0
  %3131 = vmatpush2.msra.mxu0 0.0
  %3132 = vmatprep.subr.mxu0 0.0
  %3133 = vmatpush2.msra.mxu0 0.0
  %3134 = vmatprep.subr.mxu0 0.0
  %3135 = vmatpush2.msra.mxu0 0.0
  %3136 = vmatprep.subr.mxu0 0.0
  %3137 = vmatpush2.msra.mxu0 0.0
  %3138 = vmatprep.subr.mxu0 0.0
  %3139 = vmatpush2.msra.mxu0 0.0
  %3140 = vmatprep.subr.mxu0 0.0
  %3141 = vmatpush2.msra.mxu0 0.0
  %3142 = vmatprep.subr.mxu0 0.0
  %3143 = vmatpush2.msra.mxu0 0.0
  %3144 = vmatprep.subr.mxu0 0.0
  %3145 = vmatpush2.msra.mxu0 0.0
  %3146 = vmatprep.subr.mxu0 0.0
  %3147 = vmatpush2.msra.mxu0 0.0
  %3148 = vmatprep.subr.mxu0 0.0
  %3149 = vmatpush2.msra.mxu0 0.0
  %3150 = vmatprep.subr.mxu0 0.0
  %3151 = vmatpush2.msra.mxu0 0.0
  %3152 = vmatprep.subr.mxu0 0.0
  %3153 = vmatpush2.msra.mxu0 0.0
  %3154 = vmatprep.subr.mxu0 0.0
  %3155 = vmatpush2.msra.mxu0 0.0
  %3156 = vmatprep.subr.mxu0 0.0
  %3157 = vmatpush2.msra.mxu0 0.0
  %3158 = vmatprep.subr.mxu0 0.0
  %3159 = vmatpush2.msra.mxu0 0.0
  %3160 = vmatprep.subr.mxu0 0.0
  %3161 = vmatpush2.msra.mxu0 0.0
  %3162 = vmatprep.mubr.f32.mxu0 0.0
  %3163 = vmatmul.mubr.f32.gmra.mxu0 %v3093
  %v3164 = vpop.f32.mrf.mxu0
  %v3165 = vadd.f32 0.0, %v3164
  %v3166 = vpop.f32.mrf.mxu0
  %3167 = vmatprep.mubr.f32.mxu0 0.0
  %3168 = vmatmul.mubr.f32.gmra.mxu0 %v3096
  %v3169 = vpop.f32.mrf.mxu0
  %v3170 = vadd.f32 0.0, %v3169
  %v3171 = vpop.f32.mrf.mxu0
  %3172 = vdwg.mxu0
  %v3173 = vtanh.pop %v3165
  %v3174 = vtanh.pop %v3170
  %vm3175 = vcmask 7168
  %3176 = vst.msk [vmem:[%s24] sm:$0xff] %vm3175, %v3173
  %3177 = vst.msk [vmem:[%s24 + $0x8] sm:$0xff] %vm3175, %v3174
  // Predicated region
  $region94: #{single_gat_forward.2} parent=0 // pred_check
    _
  $region95: #{single_gat_forward.2} parent=0 // pred_check_branch
    %3179 = sbr.rel (0) target = $region97
  $region96: #{single_gat_forward.2} parent=0 // pred_region
    _
  $region97: #{single_gat_forward.2} parent=0 // pred_fallthru
    _
  // Predicated region
  $region98: #{single_gat_forward.2} parent=0 // pred_check
    _
  $region99: #{single_gat_forward.2} parent=0 // pred_check_branch
    %3181 = sbr.rel (0) target = $region101
  $region100: #{single_gat_forward.2} parent=0 // pred_region
    _
  $region101: #{single_gat_forward.2} parent=0 // pred_fallthru
    _
  // Predicated region
  $region102: #{single_gat_forward.2} parent=0 // pred_check
    _
  $region103: #{single_gat_forward.2} parent=0 // pred_check_branch
    %3183 = sbr.rel (0) target = $region105
  $region104: #{single_gat_forward.2} parent=0 // pred_region
    _
  $region105: #{single_gat_forward.2} parent=0 // pred_fallthru
    _
  // Predicated region
  $region106: #{single_gat_forward.2} parent=0 // pred_check
    _
  $region107: #{single_gat_forward.2} parent=0 // pred_check_branch
    %3185 = sbr.rel (0) target = $region109
  $region108: #{single_gat_forward.2} parent=0 // pred_region
    _
  $region109: #{single_gat_forward.2} parent=0 // pred_fallthru
    _

</llo_original>
